<compile_context>
chip_gen: v7x
topology: tpu7x:2x2x1
jax: 0.10.0
libtpu: 0.0.40
codegen_flags: <defaults>
</compile_context>

<pallas_src>
import functools

import jax
import jax.numpy as jnp
from jax.experimental import pallas as pl
from jax.experimental.pallas import tpu as pltpu

BN_EPS = 1e-5


# ------------------------------ fused kernel --------------------------------

def _fused_dvd_kernel(*refs, P, Channel, z_dim):
    (x_ref, eps_ref,
     w19_ref, b19_ref, g19_ref, be19_ref,          # fc1||fc9, bn1||bn9
     w2_ref, b2_ref, g2_ref, be2_ref,              # fc2, bn2
     w3_ref, b3_ref, g3_ref, be3_ref,              # fc3, bn3
     w45_ref, b45_ref,                             # fc4||fc5
     w10_ref, b10_ref, g10_ref, be10_ref,          # fc10, bn10
     w11_ref, b11_ref, g11_ref, be11_ref,          # fc11, bn11
     w12_ref, b12_ref, g12_ref, be12_ref,          # fc12, bn12
     w13_ref, b13_ref,                             # fc13
     w6_ref, b6_ref, g6_ref, be6_ref,              # fc6, bn6
     w7_ref, b7_ref, g7_ref, be7_ref,              # fc7, bn7
     w8_ref, b8_ref,                               # fc8
     yhat_ref, mu_ref, logvar_ref, a_ref, em_ref) = refs

    x = x_ref[...]
    B = x.shape[0]

    def linear(h, w_ref, b_ref):
        return jnp.dot(h, w_ref[...], preferred_element_type=jnp.float32) + b_ref[...]

    def bn_relu(h, g_ref, be_ref):
        # BatchNorm1d training semantics: batch mean, biased batch variance.
        mean = jnp.mean(h, axis=0, keepdims=True)
        var = jnp.mean(jnp.square(h - mean), axis=0, keepdims=True)
        h = g_ref[...] * (h - mean) * jax.lax.rsqrt(var + BN_EPS) + be_ref[...]
        return jnp.maximum(h, 0.0)                 # leaky_relu(slope=0.0) == relu

    # --- shared first layer: fc1 and fc9 fused into one (Channel, 64P) matmul
    h19 = bn_relu(linear(x, w19_ref, b19_ref), g19_ref, be19_ref)
    n1 = 32 * P
    hz = h19[:, :n1]                               # encoder_z branch
    ha = h19[:, n1:]                               # encoder_a branch

    # --- encoder_z
    hz = bn_relu(linear(hz, w2_ref, b2_ref), g2_ref, be2_ref)
    hz = bn_relu(linear(hz, w3_ref, b3_ref), g3_ref, be3_ref)
    mu_lv = linear(hz, w45_ref, b45_ref)           # fc4||fc5 fused
    mu = mu_lv[:, :z_dim]
    log_var = mu_lv[:, z_dim:]

    # --- encoder_a
    ha = bn_relu(linear(ha, w10_ref, b10_ref), g10_ref, be10_ref)
    ha = bn_relu(linear(ha, w11_ref, b11_ref), g11_ref, be11_ref)
    ha = bn_relu(linear(ha, w12_ref, b12_ref), g12_ref, be12_ref)
    logits = linear(ha, w13_ref, b13_ref)          # (B, P)
    logits = logits - jnp.max(logits, axis=-1, keepdims=True)
    e = jnp.exp(logits)
    a = e * pl.reciprocal(jnp.sum(e, axis=-1, keepdims=True), approx=True)

    # --- reparameterize (eps supplied deterministically from outside)
    z = mu + eps_ref[...] * jnp.exp(0.5 * log_var)

    # --- decoder
    hd = bn_relu(linear(z, w6_ref, b6_ref), g6_ref, be6_ref)
    hd = bn_relu(linear(hd, w7_ref, b7_ref), g7_ref, be7_ref)
    em = jax.nn.sigmoid(linear(hd, w8_ref, b8_ref))    # (B, P*Channel), lane-dense

    # --- combine in-kernel: y_hat[b, c] = sum_p a[b, p] * em[b, p*Channel + c]
    yh = jnp.zeros((B, Channel), jnp.float32)
    for pp in range(P):                                # static, tiny unrolled loop
        yh = yh + a[:, pp:pp + 1] * em[:, pp * Channel:(pp + 1) * Channel]

    yhat_ref[...] = yh
    mu_ref[...] = mu
    logvar_ref[...] = log_var
    a_ref[...] = a
    em_ref[...] = em


# ----------------------------- parameter setup ------------------------------

def _init_linear(key, fan_in, fan_out):
    # deterministic init mimicking PyTorch default U(-1/sqrt(fan_in), 1/sqrt(fan_in))
    kw, kb = jax.random.split(key)
    bound = 1.0 / jnp.sqrt(jnp.float32(fan_in))
    w = jax.random.uniform(kw, (fan_in, fan_out), jnp.float32, -bound, bound)
    b = jax.random.uniform(kb, (fan_out,), jnp.float32, -bound, bound)
    return w, b


def _init_bn(dim):
    return jnp.ones((dim,), jnp.float32), jnp.zeros((dim,), jnp.float32)


def make_params(key, P, Channel, z_dim):
    dims = {
        "fc1": (Channel, 32 * P), "fc2": (32 * P, 16 * P), "fc3": (16 * P, 4 * P),
        "fc4": (4 * P, z_dim), "fc5": (4 * P, z_dim),
        "fc9": (Channel, 32 * P), "fc10": (32 * P, 16 * P), "fc11": (16 * P, 4 * P),
        "fc12": (4 * P, 4 * P), "fc13": (4 * P, 1 * P),
        "fc6": (z_dim, 4 * P), "fc7": (4 * P, 64 * P), "fc8": (64 * P, Channel * P),
    }
    bns = {"bn1": 32 * P, "bn2": 16 * P, "bn3": 4 * P,
           "bn9": 32 * P, "bn10": 16 * P, "bn11": 4 * P, "bn12": 4 * P,
           "bn6": 4 * P, "bn7": 64 * P}
    params = {}
    keys = jax.random.split(key, len(dims))
    for k, (name, (fi, fo)) in zip(keys, dims.items()):
        params[name] = _init_linear(k, fi, fo)
    for name, d in bns.items():
        params[name] = _init_bn(d)
    return params


# ------------------------------- forward pass --------------------------------

def test_dvd_forward(params, x, eps, P, Channel, z_dim):
    p = params
    row = lambda v: v.reshape(1, -1)

    # fuse fc1/fc9 (same input) and bn1/bn9 along the output/feature axis
    w19 = jnp.concatenate([p["fc1"][0], p["fc9"][0]], axis=1)
    b19 = row(jnp.concatenate([p["fc1"][1], p["fc9"][1]]))
    g19 = row(jnp.concatenate([p["bn1"][0], p["bn9"][0]]))
    be19 = row(jnp.concatenate([p["bn1"][1], p["bn9"][1]]))
    # fuse fc4/fc5 (same input)
    w45 = jnp.concatenate([p["fc4"][0], p["fc5"][0]], axis=1)
    b45 = row(jnp.concatenate([p["fc4"][1], p["fc5"][1]]))

    args = [
        x, eps,
        w19, b19, g19, be19,
        p["fc2"][0], row(p["fc2"][1]), row(p["bn2"][0]), row(p["bn2"][1]),
        p["fc3"][0], row(p["fc3"][1]), row(p["bn3"][0]), row(p["bn3"][1]),
        w45, b45,
        p["fc10"][0], row(p["fc10"][1]), row(p["bn10"][0]), row(p["bn10"][1]),
        p["fc11"][0], row(p["fc11"][1]), row(p["bn11"][0]), row(p["bn11"][1]),
        p["fc12"][0], row(p["fc12"][1]), row(p["bn12"][0]), row(p["bn12"][1]),
        p["fc13"][0], row(p["fc13"][1]),
        p["fc6"][0], row(p["fc6"][1]), row(p["bn6"][0]), row(p["bn6"][1]),
        p["fc7"][0], row(p["fc7"][1]), row(p["bn7"][0]), row(p["bn7"][1]),
        p["fc8"][0], row(p["fc8"][1]),
    ]

    B = x.shape[0]
    vmem = pl.BlockSpec(memory_space=pltpu.MemorySpace.VMEM)
    kernel = functools.partial(_fused_dvd_kernel, P=P, Channel=Channel, z_dim=z_dim)
    out_shapes = (
        jax.ShapeDtypeStruct((B, Channel), jnp.float32),       # y_hat
        jax.ShapeDtypeStruct((B, z_dim), jnp.float32),         # mu
        jax.ShapeDtypeStruct((B, z_dim), jnp.float32),         # log_var
        jax.ShapeDtypeStruct((B, P), jnp.float32),             # a
        jax.ShapeDtypeStruct((B, Channel * P), jnp.float32),   # em (flat, lane-dense)
    )
    y_hat, mu, log_var, a, em = pl.pallas_call(
        kernel,
        out_shape=out_shapes,
        in_specs=[vmem] * len(args),
        out_specs=(vmem,) * len(out_shapes),
    )(*args)

    em_tensor = em.reshape(B, P, Channel)   # metadata-only reshape outside kernel
    return y_hat, mu, log_var, a, em_tensor


# --------------------------- pure-JAX reference ------------------------------

def _reference_forward(params, x, eps, P, Channel):
    def lin(h, name):
        w, b = params[name]
        return h @ w + b

    def bnr(h, fc, bnn):
        h = lin(h, fc)
        g, be = params[bnn]
        m = h.mean(0, keepdims=True)
        v = jnp.mean(jnp.square(h - m), axis=0, keepdims=True)
        h = g * (h - m) / jnp.sqrt(v + BN_EPS) + be
        return jnp.maximum(h, 0.0)

    hz = bnr(x, "fc1", "bn1"); hz = bnr(hz, "fc2", "bn2"); hz = bnr(hz, "fc3", "bn3")
    mu = lin(hz, "fc4"); log_var = lin(hz, "fc5")
    ha = bnr(x, "fc9", "bn9"); ha = bnr(ha, "fc10", "bn10")
    ha = bnr(ha, "fc11", "bn11"); ha = bnr(ha, "fc12", "bn12")
    a = jax.nn.softmax(lin(ha, "fc13"), axis=1)
    z = mu + eps * jnp.exp(0.5 * log_var)
    hd = bnr(z, "fc6", "bn6"); hd = bnr(hd, "fc7", "bn7")
    em = jax.nn.sigmoid(lin(hd, "fc8"))
    em_t = em.reshape(-1, P, Channel)
    y_hat = jnp.einsum("bp,bpc->bc", a, em_t)
    return y_hat, mu, log_var, a, em_t


# ------------------------------------ main ------------------------------------

if __name__ == "__main__":
    P, Channel, z_dim = 8, 16, 4
    B = 8   # small demo batch; for throughput, batch to M>=128 and grid over batch.

    key = jax.random.PRNGKey(0)
    k_params, k_x, k_eps = jax.random.split(key, 3)

    params = make_params(k_params, P, Channel, z_dim)
    x = jax.random.normal(k_x, (B, Channel), jnp.float32)
    eps = jax.random.normal(k_eps, (B, z_dim), jnp.float32)  # replaces torch.randn

    fwd = jax.jit(functools.partial(test_dvd_forward, P=P, Channel=Channel, z_dim=z_dim))
    outs = fwd(params, x, eps)
    jax.block_until_ready(outs)
    y_hat, mu, log_var, a, em_tensor = outs

    assert y_hat.shape == (B, Channel)
    assert mu.shape == (B, z_dim) and log_var.shape == (B, z_dim)
    assert a.shape == (B, P) and em_tensor.shape == (B, P, Channel)

    refs = _reference_forward(params, x, eps, P, Channel)
    for got, want in zip(outs, refs):
        assert jnp.allclose(got, want, rtol=1e-2, atol=1e-2), "mismatch vs reference"

    print("KERNEL_OK")
</pallas_src>

<mosaic_0001>
module attributes {stable_mosaic.version = 11 : i64} {
  func.func @_fused_dvd_kernel(%arg0: memref<8x16xf32, #tpu.memory_space<vmem>>, %arg1: memref<8x4xf32, #tpu.memory_space<vmem>>, %arg2: memref<16x512xf32, #tpu.memory_space<vmem>>, %arg3: memref<1x512xf32, #tpu.memory_space<vmem>>, %arg4: memref<1x512xf32, #tpu.memory_space<vmem>>, %arg5: memref<1x512xf32, #tpu.memory_space<vmem>>, %arg6: memref<256x128xf32, #tpu.memory_space<vmem>>, %arg7: memref<1x128xf32, #tpu.memory_space<vmem>>, %arg8: memref<1x128xf32, #tpu.memory_space<vmem>>, %arg9: memref<1x128xf32, #tpu.memory_space<vmem>>, %arg10: memref<128x32xf32, #tpu.memory_space<vmem>>, %arg11: memref<1x32xf32, #tpu.memory_space<vmem>>, %arg12: memref<1x32xf32, #tpu.memory_space<vmem>>, %arg13: memref<1x32xf32, #tpu.memory_space<vmem>>, %arg14: memref<32x8xf32, #tpu.memory_space<vmem>>, %arg15: memref<1x8xf32, #tpu.memory_space<vmem>>, %arg16: memref<256x128xf32, #tpu.memory_space<vmem>>, %arg17: memref<1x128xf32, #tpu.memory_space<vmem>>, %arg18: memref<1x128xf32, #tpu.memory_space<vmem>>, %arg19: memref<1x128xf32, #tpu.memory_space<vmem>>, %arg20: memref<128x32xf32, #tpu.memory_space<vmem>>, %arg21: memref<1x32xf32, #tpu.memory_space<vmem>>, %arg22: memref<1x32xf32, #tpu.memory_space<vmem>>, %arg23: memref<1x32xf32, #tpu.memory_space<vmem>>, %arg24: memref<32x32xf32, #tpu.memory_space<vmem>>, %arg25: memref<1x32xf32, #tpu.memory_space<vmem>>, %arg26: memref<1x32xf32, #tpu.memory_space<vmem>>, %arg27: memref<1x32xf32, #tpu.memory_space<vmem>>, %arg28: memref<32x8xf32, #tpu.memory_space<vmem>>, %arg29: memref<1x8xf32, #tpu.memory_space<vmem>>, %arg30: memref<4x32xf32, #tpu.memory_space<vmem>>, %arg31: memref<1x32xf32, #tpu.memory_space<vmem>>, %arg32: memref<1x32xf32, #tpu.memory_space<vmem>>, %arg33: memref<1x32xf32, #tpu.memory_space<vmem>>, %arg34: memref<32x512xf32, #tpu.memory_space<vmem>>, %arg35: memref<1x512xf32, #tpu.memory_space<vmem>>, %arg36: memref<1x512xf32, #tpu.memory_space<vmem>>, %arg37: memref<1x512xf32, #tpu.memory_space<vmem>>, %arg38: memref<512x128xf32, #tpu.memory_space<vmem>>, %arg39: memref<1x128xf32, #tpu.memory_space<vmem>>, %arg40: memref<8x16xf32, #tpu.memory_space<vmem>>, %arg41: memref<8x4xf32, #tpu.memory_space<vmem>>, %arg42: memref<8x4xf32, #tpu.memory_space<vmem>>, %arg43: memref<8x8xf32, #tpu.memory_space<vmem>>, %arg44: memref<8x128xf32, #tpu.memory_space<vmem>>) attributes {dimension_semantics = [], scalar_prefetch = 0 : i64, scratch_operands = 0 : i64, tpu.core_type = #tpu.core_type<tc>} {
    %c0 = arith.constant 0 : index
    %c0_0 = arith.constant 0 : index
    %0 = vector.load %arg0[%c0, %c0_0] : memref<8x16xf32, #tpu.memory_space<vmem>>, vector<8x16xf32>
    %c0_1 = arith.constant 0 : index
    %c0_2 = arith.constant 0 : index
    %1 = vector.load %arg2[%c0_1, %c0_2] : memref<16x512xf32, #tpu.memory_space<vmem>>, vector<16x512xf32>
    %cst = arith.constant dense<0.000000e+00> : vector<8x512xf32>
    %2 = tpu.matmul %0, %1, %cst {dimension_numbers = #tpu.dot_dimension_numbers<[1], [0], [0], [1], [0, 0, 1, 1], [], []>} : vector<8x16xf32>, vector<16x512xf32>, vector<8x512xf32> -> vector<8x512xf32>
    %c0_3 = arith.constant 0 : index
    %c0_4 = arith.constant 0 : index
    %3 = vector.load %arg3[%c0_3, %c0_4] : memref<1x512xf32, #tpu.memory_space<vmem>>, vector<1x512xf32>
    %4 = vector.broadcast %3 : vector<1x512xf32> to vector<8x512xf32>
    %5 = arith.addf %2, %4 : vector<8x512xf32>
    %cst_5 = arith.constant dense<0.000000e+00> : vector<512xf32>
    %6 = vector.multi_reduction <add>, %5, %cst_5 [0] : vector<8x512xf32> to vector<512xf32>
    %7 = vector.shape_cast %6 : vector<512xf32> to vector<1x512xf32>
    %cst_6 = arith.constant 8.000000e+00 : f32
    %8 = vector.broadcast %cst_6 : f32 to vector<1x512xf32>
    %9 = arith.divf %7, %8 : vector<1x512xf32>
    %10 = vector.broadcast %9 : vector<1x512xf32> to vector<8x512xf32>
    %11 = arith.subf %5, %10 : vector<8x512xf32>
    %12 = arith.mulf %11, %11 : vector<8x512xf32>
    %cst_7 = arith.constant dense<0.000000e+00> : vector<512xf32>
    %13 = vector.multi_reduction <add>, %12, %cst_7 [0] : vector<8x512xf32> to vector<512xf32>
    %14 = vector.shape_cast %13 : vector<512xf32> to vector<1x512xf32>
    %cst_8 = arith.constant 8.000000e+00 : f32
    %15 = vector.broadcast %cst_8 : f32 to vector<1x512xf32>
    %16 = arith.divf %14, %15 : vector<1x512xf32>
    %c0_9 = arith.constant 0 : index
    %c0_10 = arith.constant 0 : index
    %17 = vector.load %arg4[%c0_9, %c0_10] : memref<1x512xf32, #tpu.memory_space<vmem>>, vector<1x512xf32>
    %18 = vector.broadcast %9 : vector<1x512xf32> to vector<8x512xf32>
    %19 = arith.subf %5, %18 : vector<8x512xf32>
    %20 = vector.broadcast %17 : vector<1x512xf32> to vector<8x512xf32>
    %21 = arith.mulf %20, %19 : vector<8x512xf32>
    %cst_11 = arith.constant 9.99999974E-6 : f32
    %22 = vector.broadcast %cst_11 : f32 to vector<1x512xf32>
    %23 = arith.addf %16, %22 : vector<1x512xf32>
    %24 = math.rsqrt %23 : vector<1x512xf32>
    %25 = vector.broadcast %24 : vector<1x512xf32> to vector<8x512xf32>
    %26 = arith.mulf %21, %25 : vector<8x512xf32>
    %c0_12 = arith.constant 0 : index
    %c0_13 = arith.constant 0 : index
    %27 = vector.load %arg5[%c0_12, %c0_13] : memref<1x512xf32, #tpu.memory_space<vmem>>, vector<1x512xf32>
    %28 = vector.broadcast %27 : vector<1x512xf32> to vector<8x512xf32>
    %29 = arith.addf %26, %28 : vector<8x512xf32>
    %cst_14 = arith.constant 0.000000e+00 : f32
    %30 = vector.broadcast %cst_14 : f32 to vector<8x512xf32>
    %31 = arith.maximumf %29, %30 : vector<8x512xf32>
    %32 = vector.extract_strided_slice %31 {offsets = [0, 0], sizes = [8, 256], strides = [1, 1]} : vector<8x512xf32> to vector<8x256xf32>
    %33 = vector.extract_strided_slice %31 {offsets = [0, 256], sizes = [8, 256], strides = [1, 1]} : vector<8x512xf32> to vector<8x256xf32>
    %c0_15 = arith.constant 0 : index
    %c0_16 = arith.constant 0 : index
    %34 = vector.load %arg6[%c0_15, %c0_16] : memref<256x128xf32, #tpu.memory_space<vmem>>, vector<256x128xf32>
    %cst_17 = arith.constant dense<0.000000e+00> : vector<8x128xf32>
    %35 = tpu.matmul %32, %34, %cst_17 {dimension_numbers = #tpu.dot_dimension_numbers<[1], [0], [0], [1], [0, 0, 1, 1], [], []>} : vector<8x256xf32>, vector<256x128xf32>, vector<8x128xf32> -> vector<8x128xf32>
    %c0_18 = arith.constant 0 : index
    %c0_19 = arith.constant 0 : index
    %36 = vector.load %arg7[%c0_18, %c0_19] : memref<1x128xf32, #tpu.memory_space<vmem>>, vector<1x128xf32>
    %37 = vector.broadcast %36 : vector<1x128xf32> to vector<8x128xf32>
    %38 = arith.addf %35, %37 : vector<8x128xf32>
    %cst_20 = arith.constant dense<0.000000e+00> : vector<128xf32>
    %39 = vector.multi_reduction <add>, %38, %cst_20 [0] : vector<8x128xf32> to vector<128xf32>
    %40 = vector.shape_cast %39 : vector<128xf32> to vector<1x128xf32>
    %cst_21 = arith.constant 8.000000e+00 : f32
    %41 = vector.broadcast %cst_21 : f32 to vector<1x128xf32>
    %42 = arith.divf %40, %41 : vector<1x128xf32>
    %43 = vector.broadcast %42 : vector<1x128xf32> to vector<8x128xf32>
    %44 = arith.subf %38, %43 : vector<8x128xf32>
    %45 = arith.mulf %44, %44 : vector<8x128xf32>
    %cst_22 = arith.constant dense<0.000000e+00> : vector<128xf32>
    %46 = vector.multi_reduction <add>, %45, %cst_22 [0] : vector<8x128xf32> to vector<128xf32>
    %47 = vector.shape_cast %46 : vector<128xf32> to vector<1x128xf32>
    %cst_23 = arith.constant 8.000000e+00 : f32
    %48 = vector.broadcast %cst_23 : f32 to vector<1x128xf32>
    %49 = arith.divf %47, %48 : vector<1x128xf32>
    %c0_24 = arith.constant 0 : index
    %c0_25 = arith.constant 0 : index
    %50 = vector.load %arg8[%c0_24, %c0_25] : memref<1x128xf32, #tpu.memory_space<vmem>>, vector<1x128xf32>
    %51 = vector.broadcast %42 : vector<1x128xf32> to vector<8x128xf32>
    %52 = arith.subf %38, %51 : vector<8x128xf32>
    %53 = vector.broadcast %50 : vector<1x128xf32> to vector<8x128xf32>
    %54 = arith.mulf %53, %52 : vector<8x128xf32>
    %cst_26 = arith.constant 9.99999974E-6 : f32
    %55 = vector.broadcast %cst_26 : f32 to vector<1x128xf32>
    %56 = arith.addf %49, %55 : vector<1x128xf32>
    %57 = math.rsqrt %56 : vector<1x128xf32>
    %58 = vector.broadcast %57 : vector<1x128xf32> to vector<8x128xf32>
    %59 = arith.mulf %54, %58 : vector<8x128xf32>
    %c0_27 = arith.constant 0 : index
    %c0_28 = arith.constant 0 : index
    %60 = vector.load %arg9[%c0_27, %c0_28] : memref<1x128xf32, #tpu.memory_space<vmem>>, vector<1x128xf32>
    %61 = vector.broadcast %60 : vector<1x128xf32> to vector<8x128xf32>
    %62 = arith.addf %59, %61 : vector<8x128xf32>
    %cst_29 = arith.constant 0.000000e+00 : f32
    %63 = vector.broadcast %cst_29 : f32 to vector<8x128xf32>
    %64 = arith.maximumf %62, %63 : vector<8x128xf32>
    %c0_30 = arith.constant 0 : index
    %c0_31 = arith.constant 0 : index
    %65 = vector.load %arg10[%c0_30, %c0_31] : memref<128x32xf32, #tpu.memory_space<vmem>>, vector<128x32xf32>
    %cst_32 = arith.constant dense<0.000000e+00> : vector<8x32xf32>
    %66 = tpu.matmul %64, %65, %cst_32 {dimension_numbers = #tpu.dot_dimension_numbers<[1], [0], [0], [1], [0, 0, 1, 1], [], []>} : vector<8x128xf32>, vector<128x32xf32>, vector<8x32xf32> -> vector<8x32xf32>
    %c0_33 = arith.constant 0 : index
    %c0_34 = arith.constant 0 : index
    %67 = vector.load %arg11[%c0_33, %c0_34] : memref<1x32xf32, #tpu.memory_space<vmem>>, vector<1x32xf32>
    %68 = vector.broadcast %67 : vector<1x32xf32> to vector<8x32xf32>
    %69 = arith.addf %66, %68 : vector<8x32xf32>
    %cst_35 = arith.constant dense<0.000000e+00> : vector<32xf32>
    %70 = vector.multi_reduction <add>, %69, %cst_35 [0] : vector<8x32xf32> to vector<32xf32>
    %71 = vector.shape_cast %70 : vector<32xf32> to vector<1x32xf32>
    %cst_36 = arith.constant 8.000000e+00 : f32
    %72 = vector.broadcast %cst_36 : f32 to vector<1x32xf32>
    %73 = arith.divf %71, %72 : vector<1x32xf32>
    %74 = vector.broadcast %73 : vector<1x32xf32> to vector<8x32xf32>
    %75 = arith.subf %69, %74 : vector<8x32xf32>
    %76 = arith.mulf %75, %75 : vector<8x32xf32>
    %cst_37 = arith.constant dense<0.000000e+00> : vector<32xf32>
    %77 = vector.multi_reduction <add>, %76, %cst_37 [0] : vector<8x32xf32> to vector<32xf32>
    %78 = vector.shape_cast %77 : vector<32xf32> to vector<1x32xf32>
    %cst_38 = arith.constant 8.000000e+00 : f32
    %79 = vector.broadcast %cst_38 : f32 to vector<1x32xf32>
    %80 = arith.divf %78, %79 : vector<1x32xf32>
    %c0_39 = arith.constant 0 : index
    %c0_40 = arith.constant 0 : index
    %81 = vector.load %arg12[%c0_39, %c0_40] : memref<1x32xf32, #tpu.memory_space<vmem>>, vector<1x32xf32>
    %82 = vector.broadcast %73 : vector<1x32xf32> to vector<8x32xf32>
    %83 = arith.subf %69, %82 : vector<8x32xf32>
    %84 = vector.broadcast %81 : vector<1x32xf32> to vector<8x32xf32>
    %85 = arith.mulf %84, %83 : vector<8x32xf32>
    %cst_41 = arith.constant 9.99999974E-6 : f32
    %86 = vector.broadcast %cst_41 : f32 to vector<1x32xf32>
    %87 = arith.addf %80, %86 : vector<1x32xf32>
    %88 = math.rsqrt %87 : vector<1x32xf32>
    %89 = vector.broadcast %88 : vector<1x32xf32> to vector<8x32xf32>
    %90 = arith.mulf %85, %89 : vector<8x32xf32>
    %c0_42 = arith.constant 0 : index
    %c0_43 = arith.constant 0 : index
    %91 = vector.load %arg13[%c0_42, %c0_43] : memref<1x32xf32, #tpu.memory_space<vmem>>, vector<1x32xf32>
    %92 = vector.broadcast %91 : vector<1x32xf32> to vector<8x32xf32>
    %93 = arith.addf %90, %92 : vector<8x32xf32>
    %cst_44 = arith.constant 0.000000e+00 : f32
    %94 = vector.broadcast %cst_44 : f32 to vector<8x32xf32>
    %95 = arith.maximumf %93, %94 : vector<8x32xf32>
    %c0_45 = arith.constant 0 : index
    %c0_46 = arith.constant 0 : index
    %96 = vector.load %arg14[%c0_45, %c0_46] : memref<32x8xf32, #tpu.memory_space<vmem>>, vector<32x8xf32>
    %cst_47 = arith.constant dense<0.000000e+00> : vector<8x8xf32>
    %97 = tpu.matmul %95, %96, %cst_47 {dimension_numbers = #tpu.dot_dimension_numbers<[1], [0], [0], [1], [0, 0, 1, 1], [], []>} : vector<8x32xf32>, vector<32x8xf32>, vector<8x8xf32> -> vector<8x8xf32>
    %c0_48 = arith.constant 0 : index
    %c0_49 = arith.constant 0 : index
    %98 = vector.load %arg15[%c0_48, %c0_49] : memref<1x8xf32, #tpu.memory_space<vmem>>, vector<1x8xf32>
    %99 = vector.broadcast %98 : vector<1x8xf32> to vector<8x8xf32>
    %100 = arith.addf %97, %99 : vector<8x8xf32>
    %101 = vector.extract_strided_slice %100 {offsets = [0, 0], sizes = [8, 4], strides = [1, 1]} : vector<8x8xf32> to vector<8x4xf32>
    %102 = vector.extract_strided_slice %100 {offsets = [0, 4], sizes = [8, 4], strides = [1, 1]} : vector<8x8xf32> to vector<8x4xf32>
    %c0_50 = arith.constant 0 : index
    %c0_51 = arith.constant 0 : index
    %103 = vector.load %arg16[%c0_50, %c0_51] : memref<256x128xf32, #tpu.memory_space<vmem>>, vector<256x128xf32>
    %cst_52 = arith.constant dense<0.000000e+00> : vector<8x128xf32>
    %104 = tpu.matmul %33, %103, %cst_52 {dimension_numbers = #tpu.dot_dimension_numbers<[1], [0], [0], [1], [0, 0, 1, 1], [], []>} : vector<8x256xf32>, vector<256x128xf32>, vector<8x128xf32> -> vector<8x128xf32>
    %c0_53 = arith.constant 0 : index
    %c0_54 = arith.constant 0 : index
    %105 = vector.load %arg17[%c0_53, %c0_54] : memref<1x128xf32, #tpu.memory_space<vmem>>, vector<1x128xf32>
    %106 = vector.broadcast %105 : vector<1x128xf32> to vector<8x128xf32>
    %107 = arith.addf %104, %106 : vector<8x128xf32>
    %cst_55 = arith.constant dense<0.000000e+00> : vector<128xf32>
    %108 = vector.multi_reduction <add>, %107, %cst_55 [0] : vector<8x128xf32> to vector<128xf32>
    %109 = vector.shape_cast %108 : vector<128xf32> to vector<1x128xf32>
    %cst_56 = arith.constant 8.000000e+00 : f32
    %110 = vector.broadcast %cst_56 : f32 to vector<1x128xf32>
    %111 = arith.divf %109, %110 : vector<1x128xf32>
    %112 = vector.broadcast %111 : vector<1x128xf32> to vector<8x128xf32>
    %113 = arith.subf %107, %112 : vector<8x128xf32>
    %114 = arith.mulf %113, %113 : vector<8x128xf32>
    %cst_57 = arith.constant dense<0.000000e+00> : vector<128xf32>
    %115 = vector.multi_reduction <add>, %114, %cst_57 [0] : vector<8x128xf32> to vector<128xf32>
    %116 = vector.shape_cast %115 : vector<128xf32> to vector<1x128xf32>
    %cst_58 = arith.constant 8.000000e+00 : f32
    %117 = vector.broadcast %cst_58 : f32 to vector<1x128xf32>
    %118 = arith.divf %116, %117 : vector<1x128xf32>
    %c0_59 = arith.constant 0 : index
    %c0_60 = arith.constant 0 : index
    %119 = vector.load %arg18[%c0_59, %c0_60] : memref<1x128xf32, #tpu.memory_space<vmem>>, vector<1x128xf32>
    %120 = vector.broadcast %111 : vector<1x128xf32> to vector<8x128xf32>
    %121 = arith.subf %107, %120 : vector<8x128xf32>
    %122 = vector.broadcast %119 : vector<1x128xf32> to vector<8x128xf32>
    %123 = arith.mulf %122, %121 : vector<8x128xf32>
    %cst_61 = arith.constant 9.99999974E-6 : f32
    %124 = vector.broadcast %cst_61 : f32 to vector<1x128xf32>
    %125 = arith.addf %118, %124 : vector<1x128xf32>
    %126 = math.rsqrt %125 : vector<1x128xf32>
    %127 = vector.broadcast %126 : vector<1x128xf32> to vector<8x128xf32>
    %128 = arith.mulf %123, %127 : vector<8x128xf32>
    %c0_62 = arith.constant 0 : index
    %c0_63 = arith.constant 0 : index
    %129 = vector.load %arg19[%c0_62, %c0_63] : memref<1x128xf32, #tpu.memory_space<vmem>>, vector<1x128xf32>
    %130 = vector.broadcast %129 : vector<1x128xf32> to vector<8x128xf32>
    %131 = arith.addf %128, %130 : vector<8x128xf32>
    %cst_64 = arith.constant 0.000000e+00 : f32
    %132 = vector.broadcast %cst_64 : f32 to vector<8x128xf32>
    %133 = arith.maximumf %131, %132 : vector<8x128xf32>
    %c0_65 = arith.constant 0 : index
    %c0_66 = arith.constant 0 : index
    %134 = vector.load %arg20[%c0_65, %c0_66] : memref<128x32xf32, #tpu.memory_space<vmem>>, vector<128x32xf32>
    %cst_67 = arith.constant dense<0.000000e+00> : vector<8x32xf32>
    %135 = tpu.matmul %133, %134, %cst_67 {dimension_numbers = #tpu.dot_dimension_numbers<[1], [0], [0], [1], [0, 0, 1, 1], [], []>} : vector<8x128xf32>, vector<128x32xf32>, vector<8x32xf32> -> vector<8x32xf32>
    %c0_68 = arith.constant 0 : index
    %c0_69 = arith.constant 0 : index
    %136 = vector.load %arg21[%c0_68, %c0_69] : memref<1x32xf32, #tpu.memory_space<vmem>>, vector<1x32xf32>
    %137 = vector.broadcast %136 : vector<1x32xf32> to vector<8x32xf32>
    %138 = arith.addf %135, %137 : vector<8x32xf32>
    %cst_70 = arith.constant dense<0.000000e+00> : vector<32xf32>
    %139 = vector.multi_reduction <add>, %138, %cst_70 [0] : vector<8x32xf32> to vector<32xf32>
    %140 = vector.shape_cast %139 : vector<32xf32> to vector<1x32xf32>
    %cst_71 = arith.constant 8.000000e+00 : f32
    %141 = vector.broadcast %cst_71 : f32 to vector<1x32xf32>
    %142 = arith.divf %140, %141 : vector<1x32xf32>
    %143 = vector.broadcast %142 : vector<1x32xf32> to vector<8x32xf32>
    %144 = arith.subf %138, %143 : vector<8x32xf32>
    %145 = arith.mulf %144, %144 : vector<8x32xf32>
    %cst_72 = arith.constant dense<0.000000e+00> : vector<32xf32>
    %146 = vector.multi_reduction <add>, %145, %cst_72 [0] : vector<8x32xf32> to vector<32xf32>
    %147 = vector.shape_cast %146 : vector<32xf32> to vector<1x32xf32>
    %cst_73 = arith.constant 8.000000e+00 : f32
    %148 = vector.broadcast %cst_73 : f32 to vector<1x32xf32>
    %149 = arith.divf %147, %148 : vector<1x32xf32>
    %c0_74 = arith.constant 0 : index
    %c0_75 = arith.constant 0 : index
    %150 = vector.load %arg22[%c0_74, %c0_75] : memref<1x32xf32, #tpu.memory_space<vmem>>, vector<1x32xf32>
    %151 = vector.broadcast %142 : vector<1x32xf32> to vector<8x32xf32>
    %152 = arith.subf %138, %151 : vector<8x32xf32>
    %153 = vector.broadcast %150 : vector<1x32xf32> to vector<8x32xf32>
    %154 = arith.mulf %153, %152 : vector<8x32xf32>
    %cst_76 = arith.constant 9.99999974E-6 : f32
    %155 = vector.broadcast %cst_76 : f32 to vector<1x32xf32>
    %156 = arith.addf %149, %155 : vector<1x32xf32>
    %157 = math.rsqrt %156 : vector<1x32xf32>
    %158 = vector.broadcast %157 : vector<1x32xf32> to vector<8x32xf32>
    %159 = arith.mulf %154, %158 : vector<8x32xf32>
    %c0_77 = arith.constant 0 : index
    %c0_78 = arith.constant 0 : index
    %160 = vector.load %arg23[%c0_77, %c0_78] : memref<1x32xf32, #tpu.memory_space<vmem>>, vector<1x32xf32>
    %161 = vector.broadcast %160 : vector<1x32xf32> to vector<8x32xf32>
    %162 = arith.addf %159, %161 : vector<8x32xf32>
    %cst_79 = arith.constant 0.000000e+00 : f32
    %163 = vector.broadcast %cst_79 : f32 to vector<8x32xf32>
    %164 = arith.maximumf %162, %163 : vector<8x32xf32>
    %c0_80 = arith.constant 0 : index
    %c0_81 = arith.constant 0 : index
    %165 = vector.load %arg24[%c0_80, %c0_81] : memref<32x32xf32, #tpu.memory_space<vmem>>, vector<32x32xf32>
    %cst_82 = arith.constant dense<0.000000e+00> : vector<8x32xf32>
    %166 = tpu.matmul %164, %165, %cst_82 {dimension_numbers = #tpu.dot_dimension_numbers<[1], [0], [0], [1], [0, 0, 1, 1], [], []>} : vector<8x32xf32>, vector<32x32xf32>, vector<8x32xf32> -> vector<8x32xf32>
    %c0_83 = arith.constant 0 : index
    %c0_84 = arith.constant 0 : index
    %167 = vector.load %arg25[%c0_83, %c0_84] : memref<1x32xf32, #tpu.memory_space<vmem>>, vector<1x32xf32>
    %168 = vector.broadcast %167 : vector<1x32xf32> to vector<8x32xf32>
    %169 = arith.addf %166, %168 : vector<8x32xf32>
    %cst_85 = arith.constant dense<0.000000e+00> : vector<32xf32>
    %170 = vector.multi_reduction <add>, %169, %cst_85 [0] : vector<8x32xf32> to vector<32xf32>
    %171 = vector.shape_cast %170 : vector<32xf32> to vector<1x32xf32>
    %cst_86 = arith.constant 8.000000e+00 : f32
    %172 = vector.broadcast %cst_86 : f32 to vector<1x32xf32>
    %173 = arith.divf %171, %172 : vector<1x32xf32>
    %174 = vector.broadcast %173 : vector<1x32xf32> to vector<8x32xf32>
    %175 = arith.subf %169, %174 : vector<8x32xf32>
    %176 = arith.mulf %175, %175 : vector<8x32xf32>
    %cst_87 = arith.constant dense<0.000000e+00> : vector<32xf32>
    %177 = vector.multi_reduction <add>, %176, %cst_87 [0] : vector<8x32xf32> to vector<32xf32>
    %178 = vector.shape_cast %177 : vector<32xf32> to vector<1x32xf32>
    %cst_88 = arith.constant 8.000000e+00 : f32
    %179 = vector.broadcast %cst_88 : f32 to vector<1x32xf32>
    %180 = arith.divf %178, %179 : vector<1x32xf32>
    %c0_89 = arith.constant 0 : index
    %c0_90 = arith.constant 0 : index
    %181 = vector.load %arg26[%c0_89, %c0_90] : memref<1x32xf32, #tpu.memory_space<vmem>>, vector<1x32xf32>
    %182 = vector.broadcast %173 : vector<1x32xf32> to vector<8x32xf32>
    %183 = arith.subf %169, %182 : vector<8x32xf32>
    %184 = vector.broadcast %181 : vector<1x32xf32> to vector<8x32xf32>
    %185 = arith.mulf %184, %183 : vector<8x32xf32>
    %cst_91 = arith.constant 9.99999974E-6 : f32
    %186 = vector.broadcast %cst_91 : f32 to vector<1x32xf32>
    %187 = arith.addf %180, %186 : vector<1x32xf32>
    %188 = math.rsqrt %187 : vector<1x32xf32>
    %189 = vector.broadcast %188 : vector<1x32xf32> to vector<8x32xf32>
    %190 = arith.mulf %185, %189 : vector<8x32xf32>
    %c0_92 = arith.constant 0 : index
    %c0_93 = arith.constant 0 : index
    %191 = vector.load %arg27[%c0_92, %c0_93] : memref<1x32xf32, #tpu.memory_space<vmem>>, vector<1x32xf32>
    %192 = vector.broadcast %191 : vector<1x32xf32> to vector<8x32xf32>
    %193 = arith.addf %190, %192 : vector<8x32xf32>
    %cst_94 = arith.constant 0.000000e+00 : f32
    %194 = vector.broadcast %cst_94 : f32 to vector<8x32xf32>
    %195 = arith.maximumf %193, %194 : vector<8x32xf32>
    %c0_95 = arith.constant 0 : index
    %c0_96 = arith.constant 0 : index
    %196 = vector.load %arg28[%c0_95, %c0_96] : memref<32x8xf32, #tpu.memory_space<vmem>>, vector<32x8xf32>
    %cst_97 = arith.constant dense<0.000000e+00> : vector<8x8xf32>
    %197 = tpu.matmul %195, %196, %cst_97 {dimension_numbers = #tpu.dot_dimension_numbers<[1], [0], [0], [1], [0, 0, 1, 1], [], []>} : vector<8x32xf32>, vector<32x8xf32>, vector<8x8xf32> -> vector<8x8xf32>
    %c0_98 = arith.constant 0 : index
    %c0_99 = arith.constant 0 : index
    %198 = vector.load %arg29[%c0_98, %c0_99] : memref<1x8xf32, #tpu.memory_space<vmem>>, vector<1x8xf32>
    %199 = vector.broadcast %198 : vector<1x8xf32> to vector<8x8xf32>
    %200 = arith.addf %197, %199 : vector<8x8xf32>
    %cst_100 = arith.constant dense<0xFF800000> : vector<8xf32>
    %201 = vector.multi_reduction <maximumf>, %200, %cst_100 [1] : vector<8x8xf32> to vector<8xf32>
    %202 = vector.shape_cast %201 : vector<8xf32> to vector<8x1xf32>
    %203 = vector.broadcast %202 : vector<8x1xf32> to vector<8x8xf32>
    %204 = arith.subf %200, %203 : vector<8x8xf32>
    %205 = math.exp %204 : vector<8x8xf32>
    %cst_101 = arith.constant dense<0.000000e+00> : vector<8xf32>
    %206 = vector.multi_reduction <add>, %205, %cst_101 [1] : vector<8x8xf32> to vector<8xf32>
    %207 = vector.shape_cast %206 : vector<8xf32> to vector<8x1xf32>
    %208 = tpu.reciprocal %207 {approx = true} : vector<8x1xf32> -> vector<8x1xf32>
    %209 = vector.broadcast %208 : vector<8x1xf32> to vector<8x8xf32>
    %210 = arith.mulf %205, %209 : vector<8x8xf32>
    %c0_102 = arith.constant 0 : index
    %c0_103 = arith.constant 0 : index
    %211 = vector.load %arg1[%c0_102, %c0_103] : memref<8x4xf32, #tpu.memory_space<vmem>>, vector<8x4xf32>
    %cst_104 = arith.constant 5.000000e-01 : f32
    %212 = vector.broadcast %cst_104 : f32 to vector<8x4xf32>
    %213 = arith.mulf %212, %102 : vector<8x4xf32>
    %214 = math.exp %213 : vector<8x4xf32>
    %215 = arith.mulf %211, %214 : vector<8x4xf32>
    %216 = arith.addf %101, %215 : vector<8x4xf32>
    %c0_105 = arith.constant 0 : index
    %c0_106 = arith.constant 0 : index
    %217 = vector.load %arg30[%c0_105, %c0_106] : memref<4x32xf32, #tpu.memory_space<vmem>>, vector<4x32xf32>
    %cst_107 = arith.constant dense<0.000000e+00> : vector<8x32xf32>
    %218 = tpu.matmul %216, %217, %cst_107 {dimension_numbers = #tpu.dot_dimension_numbers<[1], [0], [0], [1], [0, 0, 1, 1], [], []>} : vector<8x4xf32>, vector<4x32xf32>, vector<8x32xf32> -> vector<8x32xf32>
    %c0_108 = arith.constant 0 : index
    %c0_109 = arith.constant 0 : index
    %219 = vector.load %arg31[%c0_108, %c0_109] : memref<1x32xf32, #tpu.memory_space<vmem>>, vector<1x32xf32>
    %220 = vector.broadcast %219 : vector<1x32xf32> to vector<8x32xf32>
    %221 = arith.addf %218, %220 : vector<8x32xf32>
    %cst_110 = arith.constant dense<0.000000e+00> : vector<32xf32>
    %222 = vector.multi_reduction <add>, %221, %cst_110 [0] : vector<8x32xf32> to vector<32xf32>
    %223 = vector.shape_cast %222 : vector<32xf32> to vector<1x32xf32>
    %cst_111 = arith.constant 8.000000e+00 : f32
    %224 = vector.broadcast %cst_111 : f32 to vector<1x32xf32>
    %225 = arith.divf %223, %224 : vector<1x32xf32>
    %226 = vector.broadcast %225 : vector<1x32xf32> to vector<8x32xf32>
    %227 = arith.subf %221, %226 : vector<8x32xf32>
    %228 = arith.mulf %227, %227 : vector<8x32xf32>
    %cst_112 = arith.constant dense<0.000000e+00> : vector<32xf32>
    %229 = vector.multi_reduction <add>, %228, %cst_112 [0] : vector<8x32xf32> to vector<32xf32>
    %230 = vector.shape_cast %229 : vector<32xf32> to vector<1x32xf32>
    %cst_113 = arith.constant 8.000000e+00 : f32
    %231 = vector.broadcast %cst_113 : f32 to vector<1x32xf32>
    %232 = arith.divf %230, %231 : vector<1x32xf32>
    %c0_114 = arith.constant 0 : index
    %c0_115 = arith.constant 0 : index
    %233 = vector.load %arg32[%c0_114, %c0_115] : memref<1x32xf32, #tpu.memory_space<vmem>>, vector<1x32xf32>
    %234 = vector.broadcast %225 : vector<1x32xf32> to vector<8x32xf32>
    %235 = arith.subf %221, %234 : vector<8x32xf32>
    %236 = vector.broadcast %233 : vector<1x32xf32> to vector<8x32xf32>
    %237 = arith.mulf %236, %235 : vector<8x32xf32>
    %cst_116 = arith.constant 9.99999974E-6 : f32
    %238 = vector.broadcast %cst_116 : f32 to vector<1x32xf32>
    %239 = arith.addf %232, %238 : vector<1x32xf32>
    %240 = math.rsqrt %239 : vector<1x32xf32>
    %241 = vector.broadcast %240 : vector<1x32xf32> to vector<8x32xf32>
    %242 = arith.mulf %237, %241 : vector<8x32xf32>
    %c0_117 = arith.constant 0 : index
    %c0_118 = arith.constant 0 : index
    %243 = vector.load %arg33[%c0_117, %c0_118] : memref<1x32xf32, #tpu.memory_space<vmem>>, vector<1x32xf32>
    %244 = vector.broadcast %243 : vector<1x32xf32> to vector<8x32xf32>
    %245 = arith.addf %242, %244 : vector<8x32xf32>
    %cst_119 = arith.constant 0.000000e+00 : f32
    %246 = vector.broadcast %cst_119 : f32 to vector<8x32xf32>
    %247 = arith.maximumf %245, %246 : vector<8x32xf32>
    %c0_120 = arith.constant 0 : index
    %c0_121 = arith.constant 0 : index
    %248 = vector.load %arg34[%c0_120, %c0_121] : memref<32x512xf32, #tpu.memory_space<vmem>>, vector<32x512xf32>
    %cst_122 = arith.constant dense<0.000000e+00> : vector<8x512xf32>
    %249 = tpu.matmul %247, %248, %cst_122 {dimension_numbers = #tpu.dot_dimension_numbers<[1], [0], [0], [1], [0, 0, 1, 1], [], []>} : vector<8x32xf32>, vector<32x512xf32>, vector<8x512xf32> -> vector<8x512xf32>
    %c0_123 = arith.constant 0 : index
    %c0_124 = arith.constant 0 : index
    %250 = vector.load %arg35[%c0_123, %c0_124] : memref<1x512xf32, #tpu.memory_space<vmem>>, vector<1x512xf32>
    %251 = vector.broadcast %250 : vector<1x512xf32> to vector<8x512xf32>
    %252 = arith.addf %249, %251 : vector<8x512xf32>
    %cst_125 = arith.constant dense<0.000000e+00> : vector<512xf32>
    %253 = vector.multi_reduction <add>, %252, %cst_125 [0] : vector<8x512xf32> to vector<512xf32>
    %254 = vector.shape_cast %253 : vector<512xf32> to vector<1x512xf32>
    %cst_126 = arith.constant 8.000000e+00 : f32
    %255 = vector.broadcast %cst_126 : f32 to vector<1x512xf32>
    %256 = arith.divf %254, %255 : vector<1x512xf32>
    %257 = vector.broadcast %256 : vector<1x512xf32> to vector<8x512xf32>
    %258 = arith.subf %252, %257 : vector<8x512xf32>
    %259 = arith.mulf %258, %258 : vector<8x512xf32>
    %cst_127 = arith.constant dense<0.000000e+00> : vector<512xf32>
    %260 = vector.multi_reduction <add>, %259, %cst_127 [0] : vector<8x512xf32> to vector<512xf32>
    %261 = vector.shape_cast %260 : vector<512xf32> to vector<1x512xf32>
    %cst_128 = arith.constant 8.000000e+00 : f32
    %262 = vector.broadcast %cst_128 : f32 to vector<1x512xf32>
    %263 = arith.divf %261, %262 : vector<1x512xf32>
    %c0_129 = arith.constant 0 : index
    %c0_130 = arith.constant 0 : index
    %264 = vector.load %arg36[%c0_129, %c0_130] : memref<1x512xf32, #tpu.memory_space<vmem>>, vector<1x512xf32>
    %265 = vector.broadcast %256 : vector<1x512xf32> to vector<8x512xf32>
    %266 = arith.subf %252, %265 : vector<8x512xf32>
    %267 = vector.broadcast %264 : vector<1x512xf32> to vector<8x512xf32>
    %268 = arith.mulf %267, %266 : vector<8x512xf32>
    %cst_131 = arith.constant 9.99999974E-6 : f32
    %269 = vector.broadcast %cst_131 : f32 to vector<1x512xf32>
    %270 = arith.addf %263, %269 : vector<1x512xf32>
    %271 = math.rsqrt %270 : vector<1x512xf32>
    %272 = vector.broadcast %271 : vector<1x512xf32> to vector<8x512xf32>
    %273 = arith.mulf %268, %272 : vector<8x512xf32>
    %c0_132 = arith.constant 0 : index
    %c0_133 = arith.constant 0 : index
    %274 = vector.load %arg37[%c0_132, %c0_133] : memref<1x512xf32, #tpu.memory_space<vmem>>, vector<1x512xf32>
    %275 = vector.broadcast %274 : vector<1x512xf32> to vector<8x512xf32>
    %276 = arith.addf %273, %275 : vector<8x512xf32>
    %cst_134 = arith.constant 0.000000e+00 : f32
    %277 = vector.broadcast %cst_134 : f32 to vector<8x512xf32>
    %278 = arith.maximumf %276, %277 : vector<8x512xf32>
    %c0_135 = arith.constant 0 : index
    %c0_136 = arith.constant 0 : index
    %279 = vector.load %arg38[%c0_135, %c0_136] : memref<512x128xf32, #tpu.memory_space<vmem>>, vector<512x128xf32>
    %cst_137 = arith.constant dense<0.000000e+00> : vector<8x128xf32>
    %280 = tpu.matmul %278, %279, %cst_137 {dimension_numbers = #tpu.dot_dimension_numbers<[1], [0], [0], [1], [0, 0, 1, 1], [], []>} : vector<8x512xf32>, vector<512x128xf32>, vector<8x128xf32> -> vector<8x128xf32>
    %c0_138 = arith.constant 0 : index
    %c0_139 = arith.constant 0 : index
    %281 = vector.load %arg39[%c0_138, %c0_139] : memref<1x128xf32, #tpu.memory_space<vmem>>, vector<1x128xf32>
    %282 = vector.broadcast %281 : vector<1x128xf32> to vector<8x128xf32>
    %283 = arith.addf %280, %282 : vector<8x128xf32>
    %284 = arith.negf %283 : vector<8x128xf32>
    %285 = math.exp %284 : vector<8x128xf32>
    %cst_140 = arith.constant 1.000000e+00 : f32
    %286 = vector.broadcast %cst_140 : f32 to vector<8x128xf32>
    %287 = arith.addf %286, %285 : vector<8x128xf32>
    %288 = arith.divf %286, %287 : vector<8x128xf32>
    %cst_141 = arith.constant 0.000000e+00 : f32
    %289 = vector.broadcast %cst_141 : f32 to vector<8x16xf32>
    %290 = vector.extract_strided_slice %210 {offsets = [0, 0], sizes = [8, 1], strides = [1, 1]} : vector<8x8xf32> to vector<8x1xf32>
    %291 = vector.extract_strided_slice %288 {offsets = [0, 0], sizes = [8, 16], strides = [1, 1]} : vector<8x128xf32> to vector<8x16xf32>
    %292 = vector.broadcast %290 : vector<8x1xf32> to vector<8x16xf32>
    %293 = arith.mulf %292, %291 : vector<8x16xf32>
    %294 = arith.addf %289, %293 : vector<8x16xf32>
    %295 = vector.extract_strided_slice %210 {offsets = [0, 1], sizes = [8, 1], strides = [1, 1]} : vector<8x8xf32> to vector<8x1xf32>
    %296 = vector.extract_strided_slice %288 {offsets = [0, 16], sizes = [8, 16], strides = [1, 1]} : vector<8x128xf32> to vector<8x16xf32>
    %297 = vector.broadcast %295 : vector<8x1xf32> to vector<8x16xf32>
    %298 = arith.mulf %297, %296 : vector<8x16xf32>
    %299 = arith.addf %294, %298 : vector<8x16xf32>
    %300 = vector.extract_strided_slice %210 {offsets = [0, 2], sizes = [8, 1], strides = [1, 1]} : vector<8x8xf32> to vector<8x1xf32>
    %301 = vector.extract_strided_slice %288 {offsets = [0, 32], sizes = [8, 16], strides = [1, 1]} : vector<8x128xf32> to vector<8x16xf32>
    %302 = vector.broadcast %300 : vector<8x1xf32> to vector<8x16xf32>
    %303 = arith.mulf %302, %301 : vector<8x16xf32>
    %304 = arith.addf %299, %303 : vector<8x16xf32>
    %305 = vector.extract_strided_slice %210 {offsets = [0, 3], sizes = [8, 1], strides = [1, 1]} : vector<8x8xf32> to vector<8x1xf32>
    %306 = vector.extract_strided_slice %288 {offsets = [0, 48], sizes = [8, 16], strides = [1, 1]} : vector<8x128xf32> to vector<8x16xf32>
    %307 = vector.broadcast %305 : vector<8x1xf32> to vector<8x16xf32>
    %308 = arith.mulf %307, %306 : vector<8x16xf32>
    %309 = arith.addf %304, %308 : vector<8x16xf32>
    %310 = vector.extract_strided_slice %210 {offsets = [0, 4], sizes = [8, 1], strides = [1, 1]} : vector<8x8xf32> to vector<8x1xf32>
    %311 = vector.extract_strided_slice %288 {offsets = [0, 64], sizes = [8, 16], strides = [1, 1]} : vector<8x128xf32> to vector<8x16xf32>
    %312 = vector.broadcast %310 : vector<8x1xf32> to vector<8x16xf32>
    %313 = arith.mulf %312, %311 : vector<8x16xf32>
    %314 = arith.addf %309, %313 : vector<8x16xf32>
    %315 = vector.extract_strided_slice %210 {offsets = [0, 5], sizes = [8, 1], strides = [1, 1]} : vector<8x8xf32> to vector<8x1xf32>
    %316 = vector.extract_strided_slice %288 {offsets = [0, 80], sizes = [8, 16], strides = [1, 1]} : vector<8x128xf32> to vector<8x16xf32>
    %317 = vector.broadcast %315 : vector<8x1xf32> to vector<8x16xf32>
    %318 = arith.mulf %317, %316 : vector<8x16xf32>
    %319 = arith.addf %314, %318 : vector<8x16xf32>
    %320 = vector.extract_strided_slice %210 {offsets = [0, 6], sizes = [8, 1], strides = [1, 1]} : vector<8x8xf32> to vector<8x1xf32>
    %321 = vector.extract_strided_slice %288 {offsets = [0, 96], sizes = [8, 16], strides = [1, 1]} : vector<8x128xf32> to vector<8x16xf32>
    %322 = vector.broadcast %320 : vector<8x1xf32> to vector<8x16xf32>
    %323 = arith.mulf %322, %321 : vector<8x16xf32>
    %324 = arith.addf %319, %323 : vector<8x16xf32>
    %325 = vector.extract_strided_slice %210 {offsets = [0, 7], sizes = [8, 1], strides = [1, 1]} : vector<8x8xf32> to vector<8x1xf32>
    %326 = vector.extract_strided_slice %288 {offsets = [0, 112], sizes = [8, 16], strides = [1, 1]} : vector<8x128xf32> to vector<8x16xf32>
    %327 = vector.broadcast %325 : vector<8x1xf32> to vector<8x16xf32>
    %328 = arith.mulf %327, %326 : vector<8x16xf32>
    %329 = arith.addf %324, %328 : vector<8x16xf32>
    %c0_142 = arith.constant 0 : index
    %c0_143 = arith.constant 0 : index
    %330 = vector.load %arg40[%c0_142, %c0_143] : memref<8x16xf32, #tpu.memory_space<vmem>>, vector<8x16xf32>
    tpu.vector_store %arg40[%c0_142, %c0_143], %329 {strides = array<i32>} : memref<8x16xf32, #tpu.memory_space<vmem>>, vector<8x16xf32>,
    %c0_144 = arith.constant 0 : index
    %c0_145 = arith.constant 0 : index
    %331 = vector.load %arg41[%c0_144, %c0_145] : memref<8x4xf32, #tpu.memory_space<vmem>>, vector<8x4xf32>
    tpu.vector_store %arg41[%c0_144, %c0_145], %101 {strides = array<i32>} : memref<8x4xf32, #tpu.memory_space<vmem>>, vector<8x4xf32>,
    %c0_146 = arith.constant 0 : index
    %c0_147 = arith.constant 0 : index
    %332 = vector.load %arg42[%c0_146, %c0_147] : memref<8x4xf32, #tpu.memory_space<vmem>>, vector<8x4xf32>
    tpu.vector_store %arg42[%c0_146, %c0_147], %102 {strides = array<i32>} : memref<8x4xf32, #tpu.memory_space<vmem>>, vector<8x4xf32>,
    %c0_148 = arith.constant 0 : index
    %c0_149 = arith.constant 0 : index
    %333 = vector.load %arg43[%c0_148, %c0_149] : memref<8x8xf32, #tpu.memory_space<vmem>>, vector<8x8xf32>
    tpu.vector_store %arg43[%c0_148, %c0_149], %210 {strides = array<i32>} : memref<8x8xf32, #tpu.memory_space<vmem>>, vector<8x8xf32>,
    %c0_150 = arith.constant 0 : index
    %c0_151 = arith.constant 0 : index
    %334 = vector.load %arg44[%c0_150, %c0_151] : memref<8x128xf32, #tpu.memory_space<vmem>>, vector<8x128xf32>
    tpu.vector_store %arg44[%c0_150, %c0_151], %288 {strides = array<i32>} : memref<8x128xf32, #tpu.memory_space<vmem>>, vector<8x128xf32>,
    return
  }
}

</mosaic_0001>

<llo_original>
// kernel: test_dvd_forward.1
$region0: #{test_dvd_forward.1}
  #allocation0 [shape = 'u32[]', space=smem, size = 0x4, offset = 0x4, fixed_abs, tag = 'smem constant byte address 0x4 - core index']
  #allocation1 [shape = 'u32[144,128]{1,0:T(1,128)}', space=vmem, size = 0x12000, scoped, tag = 'internal scratch']
  %s0 = inlined_call_operand.smem [shape: u32[45], index: -1, kind: input, shape index: {}]
  %s1 = sld [smem:[%s0]]
  %s2 = scalar_lea.smem %s0, 1
  %s3 = sld [smem:[%s2]]
  %s4 = scalar_lea.smem %s0, 2
  %s5 = sld [smem:[%s4]]
  %s6 = scalar_lea.smem %s0, 3
  %s7 = sld [smem:[%s6]]
  %s8 = scalar_lea.smem %s0, 4
  %s9 = sld [smem:[%s8]]
  %s10 = scalar_lea.smem %s0, 5
  %s11 = sld [smem:[%s10]]
  %s12 = scalar_lea.smem %s0, 6
  %s13 = sld [smem:[%s12]]
  %s14 = scalar_lea.smem %s0, 7
  %s15 = sld [smem:[%s14]]
  %s16 = scalar_lea.smem %s0, 8
  %s17 = sld [smem:[%s16]]
  %s18 = scalar_lea.smem %s0, 9
  %s19 = sld [smem:[%s18]]
  %s20 = scalar_lea.smem %s0, 10
  %s21 = sld [smem:[%s20]]
  %s22 = scalar_lea.smem %s0, 11
  %s23 = sld [smem:[%s22]]
  %s24 = scalar_lea.smem %s0, 12
  %s25 = sld [smem:[%s24]]
  %s26 = scalar_lea.smem %s0, 13
  %s27 = sld [smem:[%s26]]
  %s28 = scalar_lea.smem %s0, 14
  %s29 = sld [smem:[%s28]]
  %s30 = scalar_lea.smem %s0, 15
  %s31 = sld [smem:[%s30]]
  %s32 = scalar_lea.smem %s0, 16
  %s33 = sld [smem:[%s32]]
  %s34 = scalar_lea.smem %s0, 17
  %s35 = sld [smem:[%s34]]
  %s36 = scalar_lea.smem %s0, 18
  %s37 = sld [smem:[%s36]]
  %s38 = scalar_lea.smem %s0, 19
  %s39 = sld [smem:[%s38]]
  %s40 = scalar_lea.smem %s0, 20
  %s41 = sld [smem:[%s40]]
  %s42 = scalar_lea.smem %s0, 21
  %s43 = sld [smem:[%s42]]
  %s44 = scalar_lea.smem %s0, 22
  %s45 = sld [smem:[%s44]]
  %s46 = scalar_lea.smem %s0, 23
  %s47 = sld [smem:[%s46]]
  %s48 = scalar_lea.smem %s0, 24
  %s49 = sld [smem:[%s48]]
  %s50 = scalar_lea.smem %s0, 25
  %s51 = sld [smem:[%s50]]
  %s52 = scalar_lea.smem %s0, 26
  %s53 = sld [smem:[%s52]]
  %s54 = scalar_lea.smem %s0, 27
  %s55 = sld [smem:[%s54]]
  %s56 = scalar_lea.smem %s0, 28
  %s57 = sld [smem:[%s56]]
  %s58 = scalar_lea.smem %s0, 29
  %s59 = sld [smem:[%s58]]
  %s60 = scalar_lea.smem %s0, 30
  %s61 = sld [smem:[%s60]]
  %s62 = scalar_lea.smem %s0, 31
  %s63 = sld [smem:[%s62]]
  %s64 = scalar_lea.smem %s0, 32
  %s65 = sld [smem:[%s64]]
  %s66 = scalar_lea.smem %s0, 33
  %s67 = sld [smem:[%s66]]
  %s68 = scalar_lea.smem %s0, 34
  %s69 = sld [smem:[%s68]]
  %s70 = scalar_lea.smem %s0, 35
  %s71 = sld [smem:[%s70]]
  %s72 = scalar_lea.smem %s0, 36
  %s73 = sld [smem:[%s72]]
  %s74 = scalar_lea.smem %s0, 37
  %s75 = sld [smem:[%s74]]
  %s76 = scalar_lea.smem %s0, 38
  %s77 = sld [smem:[%s76]]
  %s78 = scalar_lea.smem %s0, 39
  %s79 = sld [smem:[%s78]]
  %s80 = scalar_lea.smem %s0, 40
  %s81 = sld [smem:[%s80]]
  %s82 = scalar_lea.smem %s0, 41
  %s83 = sld [smem:[%s82]]
  %s84 = scalar_lea.smem %s0, 42
  %s85 = sld [smem:[%s84]]
  %s86 = scalar_lea.smem %s0, 43
  %s87 = sld [smem:[%s86]]
  %s88 = scalar_lea.smem %s0, 44
  %s89 = sld [smem:[%s88]]
  %90 = xla_tuple %s81, %s83, %s85, %s87, %s89
  %s91 = sld [smem:[#allocation0]]
  $region306: #{test_dvd_forward.1} parent=0
    _
  %s93 = ssub.s32 1, %s91
  %s94 = scalar_select 0, %s93, %s91
  $region1: #{test_dvd_forward.1} parent=0
    #allocation2 [shape = 'u8[512]{0}', space=vmem, size = 0x400, scoped, tag = 'input window, operand 7, single buffered']
    #allocation3 [shape = 's32[1]{0}', space=sflag, size = 0x4, scoped, tag = 'scoped memory for test_dvd_forward.1']
    #allocation4 [shape = 's32[1]{0}', space=sflag, size = 0x4, scoped, tag = 'scoped memory for test_dvd_forward.1']
    #allocation5 [shape = 'u8[512]{0}', space=vmem, size = 0x400, scoped, tag = 'input window, operand 8, single buffered']
    #allocation6 [shape = 's32[1]{0}', space=sflag, size = 0x4, scoped, tag = 'scoped memory for test_dvd_forward.1']
    #allocation7 [shape = 'u8[512]{0}', space=vmem, size = 0x400, scoped, tag = 'input window, operand 9, single buffered']
    #allocation8 [shape = 'u8[512]{0}', space=vmem, size = 0x400, scoped, tag = 'input window, operand 11, single buffered']
    #allocation9 [shape = 's32[1]{0}', space=sflag, size = 0x4, scoped, tag = 'scoped memory for test_dvd_forward.1']
    #allocation10 [shape = 'u8[512]{0}', space=vmem, size = 0x400, scoped, tag = 'input window, operand 12, single buffered']
    #allocation11 [shape = 'u8[512]{0}', space=vmem, size = 0x400, scoped, tag = 'input window, operand 13, single buffered']
    #allocation12 [shape = 's32[1]{0}', space=sflag, size = 0x4, scoped, tag = 'scoped memory for test_dvd_forward.1']
    #allocation13 [shape = 'u8[131072]{0}', space=vmem, size = 0x20000, scoped, tag = 'input window, operand 16, single buffered']
    #allocation14 [shape = 'u8[512]{0}', space=vmem, size = 0x400, scoped, tag = 'input window, operand 17, single buffered']
    #allocation15 [shape = 's32[1]{0}', space=sflag, size = 0x4, scoped, tag = 'scoped memory for test_dvd_forward.1']
    #allocation16 [shape = 'u8[512]{0}', space=vmem, size = 0x400, scoped, tag = 'input window, operand 18, single buffered']
    #allocation17 [shape = 'u8[512]{0}', space=vmem, size = 0x400, scoped, tag = 'input window, operand 19, single buffered']
    #allocation18 [shape = 's32[1]{0}', space=sflag, size = 0x4, scoped, tag = 'scoped memory for test_dvd_forward.1']
    #allocation19 [shape = 'u8[512]{0}', space=vmem, size = 0x400, scoped, tag = 'input window, operand 21, single buffered']
    #allocation20 [shape = 'u8[512]{0}', space=vmem, size = 0x400, scoped, tag = 'input window, operand 22, single buffered']
    #allocation21 [shape = 's32[1]{0}', space=sflag, size = 0x4, scoped, tag = 'scoped memory for test_dvd_forward.1']
    #allocation22 [shape = 'u8[512]{0}', space=vmem, size = 0x400, scoped, tag = 'input window, operand 23, single buffered']
    #allocation23 [shape = 'u8[512]{0}', space=vmem, size = 0x400, scoped, tag = 'input window, operand 25, single buffered']
    #allocation24 [shape = 's32[1]{0}', space=sflag, size = 0x4, scoped, tag = 'scoped memory for test_dvd_forward.1']
    #allocation25 [shape = 'u8[512]{0}', space=vmem, size = 0x400, scoped, tag = 'input window, operand 26, single buffered']
    #allocation26 [shape = 'u8[512]{0}', space=vmem, size = 0x400, scoped, tag = 'input window, operand 27, single buffered']
    #allocation27 [shape = 's32[1]{0}', space=sflag, size = 0x4, scoped, tag = 'scoped memory for test_dvd_forward.1']
    #allocation28 [shape = 'u8[512]{0}', space=vmem, size = 0x400, scoped, tag = 'input window, operand 29, single buffered']
    #allocation29 [shape = 'u8[2048]{0}', space=vmem, size = 0x800, scoped, tag = 'input window, operand 30, single buffered']
    #allocation30 [shape = 's32[1]{0}', space=sflag, size = 0x4, scoped, tag = 'scoped memory for test_dvd_forward.1']
    #allocation31 [shape = 'u8[512]{0}', space=vmem, size = 0x400, scoped, tag = 'input window, operand 31, single buffered']
    #allocation32 [shape = 'u8[512]{0}', space=vmem, size = 0x400, scoped, tag = 'input window, operand 32, single buffered']
    #allocation33 [shape = 's32[1]{0}', space=sflag, size = 0x4, scoped, tag = 'scoped memory for test_dvd_forward.1']
    #allocation34 [shape = 'u8[512]{0}', space=vmem, size = 0x400, scoped, tag = 'input window, operand 33, single buffered']
    #allocation35 [shape = 'u8[65536]{0}', space=vmem, size = 0x10000, scoped, tag = 'input window, operand 34, single buffered']
    #allocation36 [shape = 's32[1]{0}', space=sflag, size = 0x4, scoped, tag = 'scoped memory for test_dvd_forward.1']
    #allocation37 [shape = 'u8[2048]{0}', space=vmem, size = 0x800, scoped, tag = 'input window, operand 35, single buffered']
    #allocation38 [shape = 'u8[2048]{0}', space=vmem, size = 0x800, scoped, tag = 'input window, operand 36, single buffered']
    #allocation39 [shape = 's32[1]{0}', space=sflag, size = 0x4, scoped, tag = 'scoped memory for test_dvd_forward.1']
    #allocation40 [shape = 'u8[2048]{0}', space=vmem, size = 0x800, scoped, tag = 'input window, operand 37, single buffered']
    #allocation41 [shape = 'u8[512]{0}', space=vmem, size = 0x400, scoped, tag = 'input window, operand 39, single buffered']
    #allocation42 [shape = 's32[1]{0}', space=sflag, size = 0x4, scoped, tag = 'scoped memory for test_dvd_forward.1']
    #allocation43 [shape = 'u8[4096]{0}', space=vmem, size = 0x1000, scoped, tag = 'output window, operand 0, single buffered']
    #allocation44 [shape = 'u8[4096]{0}', space=vmem, size = 0x1000, scoped, tag = 'output window, operand 3, single buffered']
    #allocation45 [shape = 's32[1]{0}', space=sflag, size = 0x4, scoped, tag = 'scoped memory for test_dvd_forward.1']
    %95 = vsyncpa [#allocation3], 0
    %96 = vsyncpa [#allocation6], 0
    %97 = vsyncpa [#allocation9], 0
    %98 = vsyncpa [#allocation12], 0
    %99 = vsyncpa [#allocation15], 0
    %100 = vsyncpa [#allocation18], 0
    %101 = vsyncpa [#allocation21], 0
    %102 = vsyncpa [#allocation24], 0
    %103 = vsyncpa [#allocation27], 0
    %104 = vsyncpa [#allocation30], 0
    %105 = vsyncpa [#allocation33], 0
    %106 = vsyncpa [#allocation36], 0
    %107 = vsyncpa [#allocation39], 0
    %108 = vsyncpa [#allocation42], 0
    %109 = vsyncpa [#allocation4], 0
    %110 = vsyncpa [#allocation45], 0
    // Predicated region
    $region2: #{test_dvd_forward.1} parent=1 // pred_check
      _
    $region3: #{test_dvd_forward.1} parent=1 // pred_check_branch
      %112 = sbr.rel (0) target = $region5
    $region4: #{test_dvd_forward.1} parent=1 // pred_region
      _
    $region5: #{test_dvd_forward.1} parent=1 // pred_fallthru
      _
    // Predicated region
    $region6: #{test_dvd_forward.1} parent=1 // pred_check
      _
    $region7: #{test_dvd_forward.1} parent=1 // pred_check_branch
      %114 = sbr.rel (0) target = $region9
    $region8: #{test_dvd_forward.1} parent=1 // pred_region
      _
    $region9: #{test_dvd_forward.1} parent=1 // pred_fallthru
      _
    // Predicated region
    $region10: #{test_dvd_forward.1} parent=1 // pred_check
      _
    $region11: #{test_dvd_forward.1} parent=1 // pred_check_branch
      %116 = sbr.rel (0) target = $region13
    $region12: #{test_dvd_forward.1} parent=1 // pred_region
      _
    $region13: #{test_dvd_forward.1} parent=1 // pred_fallthru
      _
    // Predicated region
    $region14: #{test_dvd_forward.1} parent=1 // pred_check
      _
    $region15: #{test_dvd_forward.1} parent=1 // pred_check_branch
      %118 = sbr.rel (0) target = $region17
    $region16: #{test_dvd_forward.1} parent=1 // pred_region
      _
    $region17: #{test_dvd_forward.1} parent=1 // pred_fallthru
      _
    // Predicated region
    $region18: #{test_dvd_forward.1} parent=1 // pred_check
      _
    $region19: #{test_dvd_forward.1} parent=1 // pred_check_branch
      %120 = sbr.rel (0) target = $region21
    $region20: #{test_dvd_forward.1} parent=1 // pred_region
      _
    $region21: #{test_dvd_forward.1} parent=1 // pred_fallthru
      _
    // Predicated region
    $region22: #{test_dvd_forward.1} parent=1 // pred_check
      _
    $region23: #{test_dvd_forward.1} parent=1 // pred_check_branch
      %122 = sbr.rel (0) target = $region25
    $region24: #{test_dvd_forward.1} parent=1 // pred_region
      _
    $region25: #{test_dvd_forward.1} parent=1 // pred_fallthru
      _
    // Predicated region
    $region26: #{test_dvd_forward.1} parent=1 // pred_check
      _
    $region27: #{test_dvd_forward.1} parent=1 // pred_check_branch
      %124 = sbr.rel (0) target = $region29
    $region28: #{test_dvd_forward.1} parent=1 // pred_region
      _
    $region29: #{test_dvd_forward.1} parent=1 // pred_fallthru
      _
    // Predicated region
    $region30: #{test_dvd_forward.1} parent=1 // pred_check
      _
    $region31: #{test_dvd_forward.1} parent=1 // pred_check_branch
      %126 = sbr.rel (0) target = $region33
    $region32: #{test_dvd_forward.1} parent=1 // pred_region
      %s128 = ssub.s32 16, 16
      %129 = vsyncadd [#allocation3], %s128
      %s131 = sshll.u32 [#allocation2], 4
      %s132 = int_to_ptr.vmem [resolvable:$true] %s131
      %134 = dma.hbm_to_vmem [thread:$0]  %s15, 16, %s132, [#allocation3]
    $region33: #{test_dvd_forward.1} parent=1 // pred_fallthru
      _
    // Predicated region
    $region34: #{test_dvd_forward.1} parent=1 // pred_check
      _
    $region35: #{test_dvd_forward.1} parent=1 // pred_check_branch
      %136 = sbr.rel (0) target = $region37
    $region36: #{test_dvd_forward.1} parent=1 // pred_region
      %s138 = ssub.s32 16, 16
      %139 = vsyncadd [#allocation6], %s138
      %s141 = sshll.u32 [#allocation5], 4
      %s142 = int_to_ptr.vmem [resolvable:$true] %s141
      %144 = dma.hbm_to_vmem [thread:$0]  %s17, 16, %s142, [#allocation6]
    $region37: #{test_dvd_forward.1} parent=1 // pred_fallthru
      _
    // Predicated region
    $region38: #{test_dvd_forward.1} parent=1 // pred_check
      _
    $region39: #{test_dvd_forward.1} parent=1 // pred_check_branch
      %146 = sbr.rel (0) target = $region41
    $region40: #{test_dvd_forward.1} parent=1 // pred_region
      %s148 = ssub.s32 16, 16
      %149 = vsyncadd [#allocation6], %s148
      %s151 = sshll.u32 [#allocation7], 4
      %s152 = int_to_ptr.vmem [resolvable:$true] %s151
      %154 = dma.hbm_to_vmem [thread:$0]  %s19, 16, %s152, [#allocation6]
    $region41: #{test_dvd_forward.1} parent=1 // pred_fallthru
      _
    // Predicated region
    $region42: #{test_dvd_forward.1} parent=1 // pred_check
      _
    $region43: #{test_dvd_forward.1} parent=1 // pred_check_branch
      %156 = sbr.rel (0) target = $region45
    $region44: #{test_dvd_forward.1} parent=1 // pred_region
      _
    $region45: #{test_dvd_forward.1} parent=1 // pred_fallthru
      _
    // Predicated region
    $region46: #{test_dvd_forward.1} parent=1 // pred_check
      _
    $region47: #{test_dvd_forward.1} parent=1 // pred_check_branch
      %158 = sbr.rel (0) target = $region49
    $region48: #{test_dvd_forward.1} parent=1 // pred_region
      %s160 = ssub.s32 16, 16
      %161 = vsyncadd [#allocation9], %s160
      %s163 = sshll.u32 [#allocation8], 4
      %s164 = int_to_ptr.vmem [resolvable:$true] %s163
      %166 = dma.hbm_to_vmem [thread:$0]  %s23, 16, %s164, [#allocation9]
    $region49: #{test_dvd_forward.1} parent=1 // pred_fallthru
      _
    // Predicated region
    $region50: #{test_dvd_forward.1} parent=1 // pred_check
      _
    $region51: #{test_dvd_forward.1} parent=1 // pred_check_branch
      %168 = sbr.rel (0) target = $region53
    $region52: #{test_dvd_forward.1} parent=1 // pred_region
      %s170 = ssub.s32 16, 16
      %171 = vsyncadd [#allocation9], %s170
      %s173 = sshll.u32 [#allocation10], 4
      %s174 = int_to_ptr.vmem [resolvable:$true] %s173
      %176 = dma.hbm_to_vmem [thread:$0]  %s25, 16, %s174, [#allocation9]
    $region53: #{test_dvd_forward.1} parent=1 // pred_fallthru
      _
    // Predicated region
    $region54: #{test_dvd_forward.1} parent=1 // pred_check
      _
    $region55: #{test_dvd_forward.1} parent=1 // pred_check_branch
      %178 = sbr.rel (0) target = $region57
    $region56: #{test_dvd_forward.1} parent=1 // pred_region
      %s180 = ssub.s32 16, 16
      %181 = vsyncadd [#allocation12], %s180
      %s183 = sshll.u32 [#allocation11], 4
      %s184 = int_to_ptr.vmem [resolvable:$true] %s183
      %186 = dma.hbm_to_vmem [thread:$0]  %s27, 16, %s184, [#allocation12]
    $region57: #{test_dvd_forward.1} parent=1 // pred_fallthru
      _
    // Predicated region
    $region58: #{test_dvd_forward.1} parent=1 // pred_check
      _
    $region59: #{test_dvd_forward.1} parent=1 // pred_check_branch
      %188 = sbr.rel (0) target = $region61
    $region60: #{test_dvd_forward.1} parent=1 // pred_region
      _
    $region61: #{test_dvd_forward.1} parent=1 // pred_fallthru
      _
    // Predicated region
    $region62: #{test_dvd_forward.1} parent=1 // pred_check
      _
    $region63: #{test_dvd_forward.1} parent=1 // pred_check_branch
      %190 = sbr.rel (0) target = $region65
    $region64: #{test_dvd_forward.1} parent=1 // pred_region
      _
    $region65: #{test_dvd_forward.1} parent=1 // pred_fallthru
      _
    // Predicated region
    $region66: #{test_dvd_forward.1} parent=1 // pred_check
      _
    $region67: #{test_dvd_forward.1} parent=1 // pred_check_branch
      %192 = sbr.rel (0) target = $region69
    $region68: #{test_dvd_forward.1} parent=1 // pred_region
      %s194 = ssub.s32 4096, 4096
      %195 = vsyncadd [#allocation12], %s194
      %s196 = sshll.u32 [#allocation13], 4
      %s197 = int_to_ptr.vmem [resolvable:$true] %s196
      %202 = dma.hbm_to_vmem [thread:$0]  %s33, 4096, %s197, [#allocation12], 128, 128, 8
    $region69: #{test_dvd_forward.1} parent=1 // pred_fallthru
      _
    // Predicated region
    $region70: #{test_dvd_forward.1} parent=1 // pred_check
      _
    $region71: #{test_dvd_forward.1} parent=1 // pred_check_branch
      %204 = sbr.rel (0) target = $region73
    $region72: #{test_dvd_forward.1} parent=1 // pred_region
      %s206 = ssub.s32 16, 16
      %207 = vsyncadd [#allocation15], %s206
      %s209 = sshll.u32 [#allocation14], 4
      %s210 = int_to_ptr.vmem [resolvable:$true] %s209
      %212 = dma.hbm_to_vmem [thread:$0]  %s35, 16, %s210, [#allocation15]
    $region73: #{test_dvd_forward.1} parent=1 // pred_fallthru
      _
    // Predicated region
    $region74: #{test_dvd_forward.1} parent=1 // pred_check
      _
    $region75: #{test_dvd_forward.1} parent=1 // pred_check_branch
      %214 = sbr.rel (0) target = $region77
    $region76: #{test_dvd_forward.1} parent=1 // pred_region
      %s216 = ssub.s32 16, 16
      %217 = vsyncadd [#allocation15], %s216
      %s219 = sshll.u32 [#allocation16], 4
      %s220 = int_to_ptr.vmem [resolvable:$true] %s219
      %222 = dma.hbm_to_vmem [thread:$0]  %s37, 16, %s220, [#allocation15]
    $region77: #{test_dvd_forward.1} parent=1 // pred_fallthru
      _
    // Predicated region
    $region78: #{test_dvd_forward.1} parent=1 // pred_check
      _
    $region79: #{test_dvd_forward.1} parent=1 // pred_check_branch
      %224 = sbr.rel (0) target = $region81
    $region80: #{test_dvd_forward.1} parent=1 // pred_region
      %s226 = ssub.s32 16, 16
      %227 = vsyncadd [#allocation18], %s226
      %s229 = sshll.u32 [#allocation17], 4
      %s230 = int_to_ptr.vmem [resolvable:$true] %s229
      %232 = dma.hbm_to_vmem [thread:$0]  %s39, 16, %s230, [#allocation18]
    $region81: #{test_dvd_forward.1} parent=1 // pred_fallthru
      _
    // Predicated region
    $region82: #{test_dvd_forward.1} parent=1 // pred_check
      _
    $region83: #{test_dvd_forward.1} parent=1 // pred_check_branch
      %234 = sbr.rel (0) target = $region85
    $region84: #{test_dvd_forward.1} parent=1 // pred_region
      _
    $region85: #{test_dvd_forward.1} parent=1 // pred_fallthru
      _
    // Predicated region
    $region86: #{test_dvd_forward.1} parent=1 // pred_check
      _
    $region87: #{test_dvd_forward.1} parent=1 // pred_check_branch
      %236 = sbr.rel (0) target = $region89
    $region88: #{test_dvd_forward.1} parent=1 // pred_region
      %s238 = ssub.s32 16, 16
      %239 = vsyncadd [#allocation18], %s238
      %s241 = sshll.u32 [#allocation19], 4
      %s242 = int_to_ptr.vmem [resolvable:$true] %s241
      %244 = dma.hbm_to_vmem [thread:$0]  %s43, 16, %s242, [#allocation18]
    $region89: #{test_dvd_forward.1} parent=1 // pred_fallthru
      _
    // Predicated region
    $region90: #{test_dvd_forward.1} parent=1 // pred_check
      _
    $region91: #{test_dvd_forward.1} parent=1 // pred_check_branch
      %246 = sbr.rel (0) target = $region93
    $region92: #{test_dvd_forward.1} parent=1 // pred_region
      %s248 = ssub.s32 16, 16
      %249 = vsyncadd [#allocation21], %s248
      %s251 = sshll.u32 [#allocation20], 4
      %s252 = int_to_ptr.vmem [resolvable:$true] %s251
      %254 = dma.hbm_to_vmem [thread:$0]  %s45, 16, %s252, [#allocation21]
    $region93: #{test_dvd_forward.1} parent=1 // pred_fallthru
      _
    // Predicated region
    $region94: #{test_dvd_forward.1} parent=1 // pred_check
      _
    $region95: #{test_dvd_forward.1} parent=1 // pred_check_branch
      %256 = sbr.rel (0) target = $region97
    $region96: #{test_dvd_forward.1} parent=1 // pred_region
      %s258 = ssub.s32 16, 16
      %259 = vsyncadd [#allocation21], %s258
      %s261 = sshll.u32 [#allocation22], 4
      %s262 = int_to_ptr.vmem [resolvable:$true] %s261
      %264 = dma.hbm_to_vmem [thread:$0]  %s47, 16, %s262, [#allocation21]
    $region97: #{test_dvd_forward.1} parent=1 // pred_fallthru
      _
    // Predicated region
    $region98: #{test_dvd_forward.1} parent=1 // pred_check
      _
    $region99: #{test_dvd_forward.1} parent=1 // pred_check_branch
      %266 = sbr.rel (0) target = $region101
    $region100: #{test_dvd_forward.1} parent=1 // pred_region
      _
    $region101: #{test_dvd_forward.1} parent=1 // pred_fallthru
      _
    // Predicated region
    $region102: #{test_dvd_forward.1} parent=1 // pred_check
      _
    $region103: #{test_dvd_forward.1} parent=1 // pred_check_branch
      %268 = sbr.rel (0) target = $region105
    $region104: #{test_dvd_forward.1} parent=1 // pred_region
      %s270 = ssub.s32 16, 16
      %271 = vsyncadd [#allocation24], %s270
      %s273 = sshll.u32 [#allocation23], 4
      %s274 = int_to_ptr.vmem [resolvable:$true] %s273
      %276 = dma.hbm_to_vmem [thread:$0]  %s51, 16, %s274, [#allocation24]
    $region105: #{test_dvd_forward.1} parent=1 // pred_fallthru
      _
    // Predicated region
    $region106: #{test_dvd_forward.1} parent=1 // pred_check
      _
    $region107: #{test_dvd_forward.1} parent=1 // pred_check_branch
      %278 = sbr.rel (0) target = $region109
    $region108: #{test_dvd_forward.1} parent=1 // pred_region
      %s280 = ssub.s32 16, 16
      %281 = vsyncadd [#allocation24], %s280
      %s283 = sshll.u32 [#allocation25], 4
      %s284 = int_to_ptr.vmem [resolvable:$true] %s283
      %286 = dma.hbm_to_vmem [thread:$0]  %s53, 16, %s284, [#allocation24]
    $region109: #{test_dvd_forward.1} parent=1 // pred_fallthru
      _
    // Predicated region
    $region110: #{test_dvd_forward.1} parent=1 // pred_check
      _
    $region111: #{test_dvd_forward.1} parent=1 // pred_check_branch
      %288 = sbr.rel (0) target = $region113
    $region112: #{test_dvd_forward.1} parent=1 // pred_region
      %s290 = ssub.s32 16, 16
      %291 = vsyncadd [#allocation27], %s290
      %s293 = sshll.u32 [#allocation26], 4
      %s294 = int_to_ptr.vmem [resolvable:$true] %s293
      %296 = dma.hbm_to_vmem [thread:$0]  %s55, 16, %s294, [#allocation27]
    $region113: #{test_dvd_forward.1} parent=1 // pred_fallthru
      _
    // Predicated region
    $region114: #{test_dvd_forward.1} parent=1 // pred_check
      _
    $region115: #{test_dvd_forward.1} parent=1 // pred_check_branch
      %298 = sbr.rel (0) target = $region117
    $region116: #{test_dvd_forward.1} parent=1 // pred_region
      _
    $region117: #{test_dvd_forward.1} parent=1 // pred_fallthru
      _
    // Predicated region
    $region118: #{test_dvd_forward.1} parent=1 // pred_check
      _
    $region119: #{test_dvd_forward.1} parent=1 // pred_check_branch
      %300 = sbr.rel (0) target = $region121
    $region120: #{test_dvd_forward.1} parent=1 // pred_region
      %s302 = ssub.s32 16, 16
      %303 = vsyncadd [#allocation27], %s302
      %s305 = sshll.u32 [#allocation28], 4
      %s306 = int_to_ptr.vmem [resolvable:$true] %s305
      %308 = dma.hbm_to_vmem [thread:$0]  %s59, 16, %s306, [#allocation27]
    $region121: #{test_dvd_forward.1} parent=1 // pred_fallthru
      _
    // Predicated region
    $region122: #{test_dvd_forward.1} parent=1 // pred_check
      _
    $region123: #{test_dvd_forward.1} parent=1 // pred_check_branch
      %310 = sbr.rel (0) target = $region125
    $region124: #{test_dvd_forward.1} parent=1 // pred_region
      %s312 = ssub.s32 64, 64
      %313 = vsyncadd [#allocation30], %s312
      %s315 = sshll.u32 [#allocation29], 4
      %s316 = int_to_ptr.vmem [resolvable:$true] %s315
      %318 = dma.hbm_to_vmem [thread:$0]  %s61, 64, %s316, [#allocation30]
    $region125: #{test_dvd_forward.1} parent=1 // pred_fallthru
      _
    // Predicated region
    $region126: #{test_dvd_forward.1} parent=1 // pred_check
      _
    $region127: #{test_dvd_forward.1} parent=1 // pred_check_branch
      %320 = sbr.rel (0) target = $region129
    $region128: #{test_dvd_forward.1} parent=1 // pred_region
      %s322 = ssub.s32 16, 16
      %323 = vsyncadd [#allocation30], %s322
      %s325 = sshll.u32 [#allocation31], 4
      %s326 = int_to_ptr.vmem [resolvable:$true] %s325
      %328 = dma.hbm_to_vmem [thread:$0]  %s63, 16, %s326, [#allocation30]
    $region129: #{test_dvd_forward.1} parent=1 // pred_fallthru
      _
    // Predicated region
    $region130: #{test_dvd_forward.1} parent=1 // pred_check
      _
    $region131: #{test_dvd_forward.1} parent=1 // pred_check_branch
      %330 = sbr.rel (0) target = $region133
    $region132: #{test_dvd_forward.1} parent=1 // pred_region
      %s332 = ssub.s32 16, 16
      %333 = vsyncadd [#allocation33], %s332
      %s335 = sshll.u32 [#allocation32], 4
      %s336 = int_to_ptr.vmem [resolvable:$true] %s335
      %338 = dma.hbm_to_vmem [thread:$0]  %s65, 16, %s336, [#allocation33]
    $region133: #{test_dvd_forward.1} parent=1 // pred_fallthru
      _
    // Predicated region
    $region134: #{test_dvd_forward.1} parent=1 // pred_check
      _
    $region135: #{test_dvd_forward.1} parent=1 // pred_check_branch
      %340 = sbr.rel (0) target = $region137
    $region136: #{test_dvd_forward.1} parent=1 // pred_region
      %s342 = ssub.s32 16, 16
      %343 = vsyncadd [#allocation33], %s342
      %s345 = sshll.u32 [#allocation34], 4
      %s346 = int_to_ptr.vmem [resolvable:$true] %s345
      %348 = dma.hbm_to_vmem [thread:$0]  %s67, 16, %s346, [#allocation33]
    $region137: #{test_dvd_forward.1} parent=1 // pred_fallthru
      _
    // Predicated region
    $region138: #{test_dvd_forward.1} parent=1 // pred_check
      _
    $region139: #{test_dvd_forward.1} parent=1 // pred_check_branch
      %350 = sbr.rel (0) target = $region141
    $region140: #{test_dvd_forward.1} parent=1 // pred_region
      %s352 = ssub.s32 2048, 2048
      %353 = vsyncadd [#allocation36], %s352
      %s354 = sshll.u32 [#allocation35], 4
      %s355 = int_to_ptr.vmem [resolvable:$true] %s354
      %360 = dma.hbm_to_vmem [thread:$0]  %s69, 2048, %s355, [#allocation36], 512, 512, 32
    $region141: #{test_dvd_forward.1} parent=1 // pred_fallthru
      _
    // Predicated region
    $region142: #{test_dvd_forward.1} parent=1 // pred_check
      _
    $region143: #{test_dvd_forward.1} parent=1 // pred_check_branch
      %362 = sbr.rel (0) target = $region145
    $region144: #{test_dvd_forward.1} parent=1 // pred_region
      %s364 = ssub.s32 64, 64
      %365 = vsyncadd [#allocation36], %s364
      %s367 = sshll.u32 [#allocation37], 4
      %s368 = int_to_ptr.vmem [resolvable:$true] %s367
      %370 = dma.hbm_to_vmem [thread:$0]  %s71, 64, %s368, [#allocation36]
    $region145: #{test_dvd_forward.1} parent=1 // pred_fallthru
      _
    // Predicated region
    $region146: #{test_dvd_forward.1} parent=1 // pred_check
      _
    $region147: #{test_dvd_forward.1} parent=1 // pred_check_branch
      %372 = sbr.rel (0) target = $region149
    $region148: #{test_dvd_forward.1} parent=1 // pred_region
      %s374 = ssub.s32 64, 64
      %375 = vsyncadd [#allocation39], %s374
      %s377 = sshll.u32 [#allocation38], 4
      %s378 = int_to_ptr.vmem [resolvable:$true] %s377
      %380 = dma.hbm_to_vmem [thread:$0]  %s73, 64, %s378, [#allocation39]
    $region149: #{test_dvd_forward.1} parent=1 // pred_fallthru
      _
    // Predicated region
    $region150: #{test_dvd_forward.1} parent=1 // pred_check
      _
    $region151: #{test_dvd_forward.1} parent=1 // pred_check_branch
      %382 = sbr.rel (0) target = $region153
    $region152: #{test_dvd_forward.1} parent=1 // pred_region
      %s384 = ssub.s32 64, 64
      %385 = vsyncadd [#allocation39], %s384
      %s387 = sshll.u32 [#allocation40], 4
      %s388 = int_to_ptr.vmem [resolvable:$true] %s387
      %390 = dma.hbm_to_vmem [thread:$0]  %s75, 64, %s388, [#allocation39]
    $region153: #{test_dvd_forward.1} parent=1 // pred_fallthru
      _
    // Predicated region
    $region154: #{test_dvd_forward.1} parent=1 // pred_check
      _
    $region155: #{test_dvd_forward.1} parent=1 // pred_check_branch
      %392 = sbr.rel (0) target = $region157
    $region156: #{test_dvd_forward.1} parent=1 // pred_region
      _
    $region157: #{test_dvd_forward.1} parent=1 // pred_fallthru
      _
    // Predicated region
    $region158: #{test_dvd_forward.1} parent=1 // pred_check
      _
    $region159: #{test_dvd_forward.1} parent=1 // pred_check_branch
      %394 = sbr.rel (0) target = $region161
    $region160: #{test_dvd_forward.1} parent=1 // pred_region
      %s396 = ssub.s32 16, 16
      %397 = vsyncadd [#allocation42], %s396
      %s399 = sshll.u32 [#allocation41], 4
      %s400 = int_to_ptr.vmem [resolvable:$true] %s399
      %402 = dma.hbm_to_vmem [thread:$0]  %s79, 16, %s400, [#allocation42]
    $region161: #{test_dvd_forward.1} parent=1 // pred_fallthru
      _
    // Predicated region
    $region162: #{test_dvd_forward.1} parent=1 // pred_check
      _
    $region163: #{test_dvd_forward.1} parent=1 // pred_check_branch
      %404 = sbr.rel (0) target = $region165
    $region164: #{test_dvd_forward.1} parent=1 // pred_region
      %405 = dma.done [#allocation3], 16
    $region165: #{test_dvd_forward.1} parent=1 // pred_fallthru
      _
    // Predicated region
    $region166: #{test_dvd_forward.1} parent=1 // pred_check
      _
    $region167: #{test_dvd_forward.1} parent=1 // pred_check_branch
      %407 = sbr.rel (0) target = $region169
    $region168: #{test_dvd_forward.1} parent=1 // pred_region
      %408 = dma.done [#allocation6], 16
    $region169: #{test_dvd_forward.1} parent=1 // pred_fallthru
      _
    // Predicated region
    $region170: #{test_dvd_forward.1} parent=1 // pred_check
      _
    $region171: #{test_dvd_forward.1} parent=1 // pred_check_branch
      %410 = sbr.rel (0) target = $region173
    $region172: #{test_dvd_forward.1} parent=1 // pred_region
      %411 = dma.done [#allocation6], 16
    $region173: #{test_dvd_forward.1} parent=1 // pred_fallthru
      _
    // Predicated region
    $region174: #{test_dvd_forward.1} parent=1 // pred_check
      _
    $region175: #{test_dvd_forward.1} parent=1 // pred_check_branch
      %413 = sbr.rel (0) target = $region177
    $region176: #{test_dvd_forward.1} parent=1 // pred_region
      %414 = dma.done [#allocation9], 16
    $region177: #{test_dvd_forward.1} parent=1 // pred_fallthru
      _
    // Predicated region
    $region178: #{test_dvd_forward.1} parent=1 // pred_check
      _
    $region179: #{test_dvd_forward.1} parent=1 // pred_check_branch
      %416 = sbr.rel (0) target = $region181
    $region180: #{test_dvd_forward.1} parent=1 // pred_region
      %417 = dma.done [#allocation9], 16
    $region181: #{test_dvd_forward.1} parent=1 // pred_fallthru
      _
    // Predicated region
    $region182: #{test_dvd_forward.1} parent=1 // pred_check
      _
    $region183: #{test_dvd_forward.1} parent=1 // pred_check_branch
      %419 = sbr.rel (0) target = $region185
    $region184: #{test_dvd_forward.1} parent=1 // pred_region
      %420 = dma.done [#allocation12], 16
    $region185: #{test_dvd_forward.1} parent=1 // pred_fallthru
      _
    // Predicated region
    $region186: #{test_dvd_forward.1} parent=1 // pred_check
      _
    $region187: #{test_dvd_forward.1} parent=1 // pred_check_branch
      %422 = sbr.rel (0) target = $region189
    $region188: #{test_dvd_forward.1} parent=1 // pred_region
      %423 = dma.done [#allocation12], 4096
    $region189: #{test_dvd_forward.1} parent=1 // pred_fallthru
      _
    // Predicated region
    $region190: #{test_dvd_forward.1} parent=1 // pred_check
      _
    $region191: #{test_dvd_forward.1} parent=1 // pred_check_branch
      %425 = sbr.rel (0) target = $region193
    $region192: #{test_dvd_forward.1} parent=1 // pred_region
      %426 = dma.done [#allocation15], 16
    $region193: #{test_dvd_forward.1} parent=1 // pred_fallthru
      _
    // Predicated region
    $region194: #{test_dvd_forward.1} parent=1 // pred_check
      _
    $region195: #{test_dvd_forward.1} parent=1 // pred_check_branch
      %428 = sbr.rel (0) target = $region197
    $region196: #{test_dvd_forward.1} parent=1 // pred_region
      %429 = dma.done [#allocation15], 16
    $region197: #{test_dvd_forward.1} parent=1 // pred_fallthru
      _
    // Predicated region
    $region198: #{test_dvd_forward.1} parent=1 // pred_check
      _
    $region199: #{test_dvd_forward.1} parent=1 // pred_check_branch
      %431 = sbr.rel (0) target = $region201
    $region200: #{test_dvd_forward.1} parent=1 // pred_region
      %432 = dma.done [#allocation18], 16
    $region201: #{test_dvd_forward.1} parent=1 // pred_fallthru
      _
    // Predicated region
    $region202: #{test_dvd_forward.1} parent=1 // pred_check
      _
    $region203: #{test_dvd_forward.1} parent=1 // pred_check_branch
      %434 = sbr.rel (0) target = $region205
    $region204: #{test_dvd_forward.1} parent=1 // pred_region
      %435 = dma.done [#allocation18], 16
    $region205: #{test_dvd_forward.1} parent=1 // pred_fallthru
      _
    // Predicated region
    $region206: #{test_dvd_forward.1} parent=1 // pred_check
      _
    $region207: #{test_dvd_forward.1} parent=1 // pred_check_branch
      %437 = sbr.rel (0) target = $region209
    $region208: #{test_dvd_forward.1} parent=1 // pred_region
      %438 = dma.done [#allocation21], 16
    $region209: #{test_dvd_forward.1} parent=1 // pred_fallthru
      _
    // Predicated region
    $region210: #{test_dvd_forward.1} parent=1 // pred_check
      _
    $region211: #{test_dvd_forward.1} parent=1 // pred_check_branch
      %440 = sbr.rel (0) target = $region213
    $region212: #{test_dvd_forward.1} parent=1 // pred_region
      %441 = dma.done [#allocation21], 16
    $region213: #{test_dvd_forward.1} parent=1 // pred_fallthru
      _
    // Predicated region
    $region214: #{test_dvd_forward.1} parent=1 // pred_check
      _
    $region215: #{test_dvd_forward.1} parent=1 // pred_check_branch
      %443 = sbr.rel (0) target = $region217
    $region216: #{test_dvd_forward.1} parent=1 // pred_region
      %444 = dma.done [#allocation24], 16
    $region217: #{test_dvd_forward.1} parent=1 // pred_fallthru
      _
    // Predicated region
    $region218: #{test_dvd_forward.1} parent=1 // pred_check
      _
    $region219: #{test_dvd_forward.1} parent=1 // pred_check_branch
      %446 = sbr.rel (0) target = $region221
    $region220: #{test_dvd_forward.1} parent=1 // pred_region
      %447 = dma.done [#allocation24], 16
    $region221: #{test_dvd_forward.1} parent=1 // pred_fallthru
      _
    // Predicated region
    $region222: #{test_dvd_forward.1} parent=1 // pred_check
      _
    $region223: #{test_dvd_forward.1} parent=1 // pred_check_branch
      %449 = sbr.rel (0) target = $region225
    $region224: #{test_dvd_forward.1} parent=1 // pred_region
      %450 = dma.done [#allocation27], 16
    $region225: #{test_dvd_forward.1} parent=1 // pred_fallthru
      _
    // Predicated region
    $region226: #{test_dvd_forward.1} parent=1 // pred_check
      _
    $region227: #{test_dvd_forward.1} parent=1 // pred_check_branch
      %452 = sbr.rel (0) target = $region229
    $region228: #{test_dvd_forward.1} parent=1 // pred_region
      %453 = dma.done [#allocation27], 16
    $region229: #{test_dvd_forward.1} parent=1 // pred_fallthru
      _
    // Predicated region
    $region230: #{test_dvd_forward.1} parent=1 // pred_check
      _
    $region231: #{test_dvd_forward.1} parent=1 // pred_check_branch
      %455 = sbr.rel (0) target = $region233
    $region232: #{test_dvd_forward.1} parent=1 // pred_region
      %456 = dma.done [#allocation30], 64
    $region233: #{test_dvd_forward.1} parent=1 // pred_fallthru
      _
    // Predicated region
    $region234: #{test_dvd_forward.1} parent=1 // pred_check
      _
    $region235: #{test_dvd_forward.1} parent=1 // pred_check_branch
      %458 = sbr.rel (0) target = $region237
    $region236: #{test_dvd_forward.1} parent=1 // pred_region
      %459 = dma.done [#allocation30], 16
    $region237: #{test_dvd_forward.1} parent=1 // pred_fallthru
      _
    // Predicated region
    $region238: #{test_dvd_forward.1} parent=1 // pred_check
      _
    $region239: #{test_dvd_forward.1} parent=1 // pred_check_branch
      %461 = sbr.rel (0) target = $region241
    $region240: #{test_dvd_forward.1} parent=1 // pred_region
      %462 = dma.done [#allocation33], 16
    $region241: #{test_dvd_forward.1} parent=1 // pred_fallthru
      _
    // Predicated region
    $region242: #{test_dvd_forward.1} parent=1 // pred_check
      _
    $region243: #{test_dvd_forward.1} parent=1 // pred_check_branch
      %464 = sbr.rel (0) target = $region245
    $region244: #{test_dvd_forward.1} parent=1 // pred_region
      %465 = dma.done [#allocation33], 16
    $region245: #{test_dvd_forward.1} parent=1 // pred_fallthru
      _
    // Predicated region
    $region246: #{test_dvd_forward.1} parent=1 // pred_check
      _
    $region247: #{test_dvd_forward.1} parent=1 // pred_check_branch
      %467 = sbr.rel (0) target = $region249
    $region248: #{test_dvd_forward.1} parent=1 // pred_region
      %468 = dma.done [#allocation36], 2048
    $region249: #{test_dvd_forward.1} parent=1 // pred_fallthru
      _
    // Predicated region
    $region250: #{test_dvd_forward.1} parent=1 // pred_check
      _
    $region251: #{test_dvd_forward.1} parent=1 // pred_check_branch
      %470 = sbr.rel (0) target = $region253
    $region252: #{test_dvd_forward.1} parent=1 // pred_region
      %471 = dma.done [#allocation36], 64
    $region253: #{test_dvd_forward.1} parent=1 // pred_fallthru
      _
    // Predicated region
    $region254: #{test_dvd_forward.1} parent=1 // pred_check
      _
    $region255: #{test_dvd_forward.1} parent=1 // pred_check_branch
      %473 = sbr.rel (0) target = $region257
    $region256: #{test_dvd_forward.1} parent=1 // pred_region
      %474 = dma.done [#allocation39], 64
    $region257: #{test_dvd_forward.1} parent=1 // pred_fallthru
      _
    // Predicated region
    $region258: #{test_dvd_forward.1} parent=1 // pred_check
      _
    $region259: #{test_dvd_forward.1} parent=1 // pred_check_branch
      %476 = sbr.rel (0) target = $region261
    $region260: #{test_dvd_forward.1} parent=1 // pred_region
      %477 = dma.done [#allocation39], 64
    $region261: #{test_dvd_forward.1} parent=1 // pred_fallthru
      _
    // Predicated region
    $region262: #{test_dvd_forward.1} parent=1 // pred_check
      _
    $region263: #{test_dvd_forward.1} parent=1 // pred_check_branch
      %479 = sbr.rel (0) target = $region265
    $region264: #{test_dvd_forward.1} parent=1 // pred_region
      %480 = dma.done [#allocation42], 16
    $region265: #{test_dvd_forward.1} parent=1 // pred_fallthru
      _
    %v481 = vld [vmem:[%s1] sm:$0xff]
    %v482 = vld [vmem:[%s5] sm:$0xff]
    %v483 = vld [vmem:[%s5 + $0x8] sm:$0xff]
    %v484 = vld [vmem:[%s5 + $0x10] sm:$0xff]
    %v485 = vld [vmem:[%s5 + $0x18] sm:$0xff]
    %v486 = vld [vmem:[%s5 + $0x20] sm:$0xff]
    %v487 = vld [vmem:[%s5 + $0x28] sm:$0xff]
    %v488 = vld [vmem:[%s5 + $0x30] sm:$0xff]
    %v489 = vld [vmem:[%s5 + $0x38] sm:$0xff]
    %v490 = vld [vmem:[%s7] sm:$0xf]
    %v492 = vlaneseq
    %v493 = vshrl.u32 %v492, 7
    %v494 = vsub.s32 0, %v493
    %v495 = vrot.slane %v490, %v494
    %v496 = vlaneseq
    %v497 = vshrl.u32 %v496, 7
    %v498 = vsub.s32 1, %v497
    %v499 = vrot.slane %v490, %v498
    %v500 = vlaneseq
    %v501 = vshrl.u32 %v500, 7
    %v502 = vsub.s32 2, %v501
    %v503 = vrot.slane %v490, %v502
    %v504 = vlaneseq
    %v505 = vshrl.u32 %v504, 7
    %v506 = vsub.s32 3, %v505
    %v507 = vrot.slane %v490, %v506
    %vm512 = vcmask 130048
    %v514 = vsel %vm512, %v481, 0
    %516 = vmatprep.subr.mxu0 %v483
    %517 = vmatpush1.msra.mxu0 %v482
    %518 = vmatprep.subr.mxu0 %v487
    %519 = vmatpush1.msra.mxu0 %v486
    %520 = vmatprep.subr.mxu0 0.0
    %521 = vmatpush1.msra.mxu0 0.0
    %522 = vmatprep.subr.mxu0 0.0
    %523 = vmatpush1.msra.mxu0 0.0
    %524 = vmatprep.subr.mxu0 0.0
    %525 = vmatpush1.msra.mxu0 0.0
    %526 = vmatprep.subr.mxu0 0.0
    %527 = vmatpush1.msra.mxu0 0.0
    %528 = vmatprep.subr.mxu0 0.0
    %529 = vmatpush1.msra.mxu0 0.0
    %530 = vmatprep.subr.mxu0 0.0
    %531 = vmatpush1.msra.mxu0 0.0
    %532 = vmatprep.subr.mxu0 0.0
    %533 = vmatpush1.msra.mxu0 0.0
    %534 = vmatprep.subr.mxu0 0.0
    %535 = vmatpush1.msra.mxu0 0.0
    %536 = vmatprep.subr.mxu0 0.0
    %537 = vmatpush1.msra.mxu0 0.0
    %538 = vmatprep.subr.mxu0 0.0
    %539 = vmatpush1.msra.mxu0 0.0
    %540 = vmatprep.subr.mxu0 0.0
    %541 = vmatpush1.msra.mxu0 0.0
    %542 = vmatprep.subr.mxu0 0.0
    %543 = vmatpush1.msra.mxu0 0.0
    %544 = vmatprep.subr.mxu0 0.0
    %545 = vmatpush1.msra.mxu0 0.0
    %546 = vmatprep.subr.mxu0 0.0
    %547 = vmatpush1.msra.mxu0 0.0
    %548 = vmatprep.subr.mxu0 0.0
    %549 = vmatpush1.msra.mxu0 0.0
    %550 = vmatprep.subr.mxu0 0.0
    %551 = vmatpush1.msra.mxu0 0.0
    %552 = vmatprep.subr.mxu0 0.0
    %553 = vmatpush1.msra.mxu0 0.0
    %554 = vmatprep.subr.mxu0 0.0
    %555 = vmatpush1.msra.mxu0 0.0
    %556 = vmatprep.subr.mxu0 0.0
    %557 = vmatpush1.msra.mxu0 0.0
    %558 = vmatprep.subr.mxu0 0.0
    %559 = vmatpush1.msra.mxu0 0.0
    %560 = vmatprep.subr.mxu0 0.0
    %561 = vmatpush1.msra.mxu0 0.0
    %562 = vmatprep.subr.mxu0 0.0
    %563 = vmatpush1.msra.mxu0 0.0
    %564 = vmatprep.subr.mxu0 0.0
    %565 = vmatpush1.msra.mxu0 0.0
    %566 = vmatprep.subr.mxu0 0.0
    %567 = vmatpush1.msra.mxu0 0.0
    %568 = vmatprep.subr.mxu0 0.0
    %569 = vmatpush1.msra.mxu0 0.0
    %570 = vmatprep.subr.mxu0 0.0
    %571 = vmatpush1.msra.mxu0 0.0
    %572 = vmatprep.subr.mxu0 0.0
    %573 = vmatpush1.msra.mxu0 0.0
    %574 = vmatprep.subr.mxu0 0.0
    %575 = vmatpush1.msra.mxu0 0.0
    %576 = vmatprep.subr.mxu0 0.0
    %577 = vmatpush1.msra.mxu0 0.0
    %578 = vmatprep.subr.mxu0 0.0
    %579 = vmatpush1.msra.mxu0 0.0
    %580 = vmatprep.mubr.f32.mxu0 0.0
    %581 = vmatmul.mubr.f32.gmra.mrb[0].mxu0 %v514
    %v582 = vpop.f32.mrb[0].mxu0
    %v583 = vadd.f32 %v495, %v582
    %v584 = vpop.f32.mrb[0].mxu0
    %v585 = vadd.f32 %v499, %v584
    %586 = vdwg.mxu0
    %587 = vmatprep.subr.mxu0 %v485
    %588 = vmatpush1.msra.mxu0 %v484
    %589 = vmatprep.subr.mxu0 %v489
    %590 = vmatpush1.msra.mxu0 %v488
    %591 = vmatprep.subr.mxu0 0.0
    %592 = vmatpush1.msra.mxu0 0.0
    %593 = vmatprep.subr.mxu0 0.0
    %594 = vmatpush1.msra.mxu0 0.0
    %595 = vmatprep.subr.mxu0 0.0
    %596 = vmatpush1.msra.mxu0 0.0
    %597 = vmatprep.subr.mxu0 0.0
    %598 = vmatpush1.msra.mxu0 0.0
    %599 = vmatprep.subr.mxu0 0.0
    %600 = vmatpush1.msra.mxu0 0.0
    %601 = vmatprep.subr.mxu0 0.0
    %602 = vmatpush1.msra.mxu0 0.0
    %603 = vmatprep.subr.mxu0 0.0
    %604 = vmatpush1.msra.mxu0 0.0
    %605 = vmatprep.subr.mxu0 0.0
    %606 = vmatpush1.msra.mxu0 0.0
    %607 = vmatprep.subr.mxu0 0.0
    %608 = vmatpush1.msra.mxu0 0.0
    %609 = vmatprep.subr.mxu0 0.0
    %610 = vmatpush1.msra.mxu0 0.0
    %611 = vmatprep.subr.mxu0 0.0
    %612 = vmatpush1.msra.mxu0 0.0
    %613 = vmatprep.subr.mxu0 0.0
    %614 = vmatpush1.msra.mxu0 0.0
    %615 = vmatprep.subr.mxu0 0.0
    %616 = vmatpush1.msra.mxu0 0.0
    %617 = vmatprep.subr.mxu0 0.0
    %618 = vmatpush1.msra.mxu0 0.0
    %619 = vmatprep.subr.mxu0 0.0
    %620 = vmatpush1.msra.mxu0 0.0
    %621 = vmatprep.subr.mxu0 0.0
    %622 = vmatpush1.msra.mxu0 0.0
    %623 = vmatprep.subr.mxu0 0.0
    %624 = vmatpush1.msra.mxu0 0.0
    %625 = vmatprep.subr.mxu0 0.0
    %626 = vmatpush1.msra.mxu0 0.0
    %627 = vmatprep.subr.mxu0 0.0
    %628 = vmatpush1.msra.mxu0 0.0
    %629 = vmatprep.subr.mxu0 0.0
    %630 = vmatpush1.msra.mxu0 0.0
    %631 = vmatprep.subr.mxu0 0.0
    %632 = vmatpush1.msra.mxu0 0.0
    %633 = vmatprep.subr.mxu0 0.0
    %634 = vmatpush1.msra.mxu0 0.0
    %635 = vmatprep.subr.mxu0 0.0
    %636 = vmatpush1.msra.mxu0 0.0
    %637 = vmatprep.subr.mxu0 0.0
    %638 = vmatpush1.msra.mxu0 0.0
    %639 = vmatprep.subr.mxu0 0.0
    %640 = vmatpush1.msra.mxu0 0.0
    %641 = vmatprep.subr.mxu0 0.0
    %642 = vmatpush1.msra.mxu0 0.0
    %643 = vmatprep.subr.mxu0 0.0
    %644 = vmatpush1.msra.mxu0 0.0
    %645 = vmatprep.subr.mxu0 0.0
    %646 = vmatpush1.msra.mxu0 0.0
    %647 = vmatprep.subr.mxu0 0.0
    %648 = vmatpush1.msra.mxu0 0.0
    %649 = vmatprep.subr.mxu0 0.0
    %650 = vmatpush1.msra.mxu0 0.0
    %651 = vmatprep.mubr.f32.mxu0 0.0
    %652 = vmatmul.mubr.f32.gmra.mrb[0].mxu0 %v514
    %v653 = vpop.f32.mrb[0].mxu0
    %v654 = vadd.f32 %v503, %v653
    %v655 = vpop.f32.mrb[0].mxu0
    %v656 = vadd.f32 %v507, %v655
    %657 = vdwg.mxu0
    %v658 = vrot.slane %v583, 4
    %v659 = vadd.f32 %v583, %v658
    %v660 = vrot.slane %v659, 2
    %v661 = vadd.f32 %v659, %v660
    %v662 = vrot.slane %v661, 1
    %v663 = vadd.f32 %v661, %v662
    %v664 = vrot.slane %v585, 4
    %v665 = vadd.f32 %v585, %v664
    %v666 = vrot.slane %v665, 2
    %v667 = vadd.f32 %v665, %v666
    %v668 = vrot.slane %v667, 1
    %v669 = vadd.f32 %v667, %v668
    %v670 = vrot.slane %v654, 4
    %v671 = vadd.f32 %v654, %v670
    %v672 = vrot.slane %v671, 2
    %v673 = vadd.f32 %v671, %v672
    %v674 = vrot.slane %v673, 1
    %v675 = vadd.f32 %v673, %v674
    %v676 = vrot.slane %v656, 4
    %v677 = vadd.f32 %v656, %v676
    %v678 = vrot.slane %v677, 2
    %v679 = vadd.f32 %v677, %v678
    %v680 = vrot.slane %v679, 1
    %v681 = vadd.f32 %v679, %v680
    %v682 = vrcp.pop 8.0
    %v683 = vmul.f32 %v663, %v682
    %v684 = vmul.f32 %v669, %v682
    %v685 = vmul.f32 %v675, %v682
    %v686 = vmul.f32 %v681, %v682
    %v687 = vsub.f32 %v583, %v683
    %v688 = vsub.f32 %v585, %v684
    %v689 = vsub.f32 %v654, %v685
    %v690 = vsub.f32 %v656, %v686
    %v691 = vmul.f32 %v687, %v687
    %v692 = vmul.f32 %v688, %v688
    %v693 = vmul.f32 %v689, %v689
    %v694 = vmul.f32 %v690, %v690
    %v695 = vrot.slane %v691, 4
    %v696 = vadd.f32 %v691, %v695
    %v697 = vrot.slane %v696, 2
    %v698 = vadd.f32 %v696, %v697
    %v699 = vrot.slane %v698, 1
    %v700 = vadd.f32 %v698, %v699
    %v701 = vrot.slane %v692, 4
    %v702 = vadd.f32 %v692, %v701
    %v703 = vrot.slane %v702, 2
    %v704 = vadd.f32 %v702, %v703
    %v705 = vrot.slane %v704, 1
    %v706 = vadd.f32 %v704, %v705
    %v707 = vrot.slane %v693, 4
    %v708 = vadd.f32 %v693, %v707
    %v709 = vrot.slane %v708, 2
    %v710 = vadd.f32 %v708, %v709
    %v711 = vrot.slane %v710, 1
    %v712 = vadd.f32 %v710, %v711
    %v713 = vrot.slane %v694, 4
    %v714 = vadd.f32 %v694, %v713
    %v715 = vrot.slane %v714, 2
    %v716 = vadd.f32 %v714, %v715
    %v717 = vrot.slane %v716, 1
    %v718 = vadd.f32 %v716, %v717
    %v719 = vmul.f32 %v700, %v682
    %v720 = vmul.f32 %v706, %v682
    %v721 = vmul.f32 %v712, %v682
    %v722 = vmul.f32 %v718, %v682
    %v723 = vld [vmem:[%s9] sm:$0xf]
    %v725 = vlaneseq
    %v726 = vshrl.u32 %v725, 7
    %v727 = vsub.s32 0, %v726
    %v728 = vrot.slane %v723, %v727
    %v729 = vlaneseq
    %v730 = vshrl.u32 %v729, 7
    %v731 = vsub.s32 1, %v730
    %v732 = vrot.slane %v723, %v731
    %v733 = vlaneseq
    %v734 = vshrl.u32 %v733, 7
    %v735 = vsub.s32 2, %v734
    %v736 = vrot.slane %v723, %v735
    %v737 = vlaneseq
    %v738 = vshrl.u32 %v737, 7
    %v739 = vsub.s32 3, %v738
    %v740 = vrot.slane %v723, %v739
    %v745 = vmul.f32 %v728, %v687
    %v746 = vmul.f32 %v732, %v688
    %v747 = vmul.f32 %v736, %v689
    %v748 = vmul.f32 %v740, %v690
    %v749 = vadd.f32 %v719, 1e-05
    %v750 = vadd.f32 %v720, 1e-05
    %v751 = vadd.f32 %v721, 1e-05
    %v752 = vadd.f32 %v722, 1e-05
    %v753 = vrsqrt.pop %v749
    %v754 = vrsqrt.pop %v750
    %v755 = vrsqrt.pop %v751
    %v756 = vrsqrt.pop %v752
    %v757 = vmul.f32 %v745, %v753
    %v758 = vmul.f32 %v746, %v754
    %v759 = vmul.f32 %v747, %v755
    %v760 = vmul.f32 %v748, %v756
    %v761 = vld [vmem:[%s11] sm:$0xf]
    %v763 = vlaneseq
    %v764 = vshrl.u32 %v763, 7
    %v765 = vsub.s32 0, %v764
    %v766 = vrot.slane %v761, %v765
    %v767 = vlaneseq
    %v768 = vshrl.u32 %v767, 7
    %v769 = vsub.s32 1, %v768
    %v770 = vrot.slane %v761, %v769
    %v771 = vlaneseq
    %v772 = vshrl.u32 %v771, 7
    %v773 = vsub.s32 2, %v772
    %v774 = vrot.slane %v761, %v773
    %v775 = vlaneseq
    %v776 = vshrl.u32 %v775, 7
    %v777 = vsub.s32 3, %v776
    %v778 = vrot.slane %v761, %v777
    %v783 = vadd.f32 %v757, %v766
    %v784 = vadd.f32 %v758, %v770
    %v785 = vadd.f32 %v759, %v774
    %v786 = vadd.f32 %v760, %v778
    %v787 = vmax.f32 %v783, 0.0
    %v788 = vmax.f32 %v784, 0.0
    %v789 = vmax.f32 %v785, 0.0
    %v790 = vmax.f32 %v786, 0.0
    %v791 = vld [vmem:[%s13] sm:$0xff]
    %v792 = vld [vmem:[%s13 + $0x8] sm:$0xff]
    %v793 = vld [vmem:[%s13 + $0x10] sm:$0xff]
    %v794 = vld [vmem:[%s13 + $0x18] sm:$0xff]
    %v795 = vld [vmem:[%s13 + $0x20] sm:$0xff]
    %v796 = vld [vmem:[%s13 + $0x28] sm:$0xff]
    %v797 = vld [vmem:[%s13 + $0x30] sm:$0xff]
    %v798 = vld [vmem:[%s13 + $0x38] sm:$0xff]
    %v799 = vld [vmem:[%s13 + $0x40] sm:$0xff]
    %v800 = vld [vmem:[%s13 + $0x48] sm:$0xff]
    %v801 = vld [vmem:[%s13 + $0x50] sm:$0xff]
    %v802 = vld [vmem:[%s13 + $0x58] sm:$0xff]
    %v803 = vld [vmem:[%s13 + $0x60] sm:$0xff]
    %v804 = vld [vmem:[%s13 + $0x68] sm:$0xff]
    %v805 = vld [vmem:[%s13 + $0x70] sm:$0xff]
    %v806 = vld [vmem:[%s13 + $0x78] sm:$0xff]
    %v807 = vld [vmem:[%s13 + $0x80] sm:$0xff]
    %v808 = vld [vmem:[%s13 + $0x88] sm:$0xff]
    %v809 = vld [vmem:[%s13 + $0x90] sm:$0xff]
    %v810 = vld [vmem:[%s13 + $0x98] sm:$0xff]
    %v811 = vld [vmem:[%s13 + $0xa0] sm:$0xff]
    %v812 = vld [vmem:[%s13 + $0xa8] sm:$0xff]
    %v813 = vld [vmem:[%s13 + $0xb0] sm:$0xff]
    %v814 = vld [vmem:[%s13 + $0xb8] sm:$0xff]
    %v815 = vld [vmem:[%s13 + $0xc0] sm:$0xff]
    %v816 = vld [vmem:[%s13 + $0xc8] sm:$0xff]
    %v817 = vld [vmem:[%s13 + $0xd0] sm:$0xff]
    %v818 = vld [vmem:[%s13 + $0xd8] sm:$0xff]
    %v819 = vld [vmem:[%s13 + $0xe0] sm:$0xff]
    %v820 = vld [vmem:[%s13 + $0xe8] sm:$0xff]
    %v821 = vld [vmem:[%s13 + $0xf0] sm:$0xff]
    %v822 = vld [vmem:[%s13 + $0xf8] sm:$0xff]
    %v823 = vld [vmem:[#allocation2] sm:$0x1]
    %v825 = vlaneseq
    %v826 = vshrl.u32 %v825, 7
    %v827 = vsub.s32 0, %v826
    %v828 = vrot.slane %v823, %v827
    %830 = vmatprep.subr.mxu0 0.0
    %831 = vmatpush1.msra.mxu0 %v791
    %832 = vmatprep.subr.mxu0 0.0
    %833 = vmatpush1.msra.mxu0 %v792
    %834 = vmatprep.subr.mxu0 0.0
    %835 = vmatpush1.msra.mxu0 %v793
    %836 = vmatprep.subr.mxu0 0.0
    %837 = vmatpush1.msra.mxu0 %v794
    %838 = vmatprep.subr.mxu0 0.0
    %839 = vmatpush1.msra.mxu0 %v795
    %840 = vmatprep.subr.mxu0 0.0
    %841 = vmatpush1.msra.mxu0 %v796
    %842 = vmatprep.subr.mxu0 0.0
    %843 = vmatpush1.msra.mxu0 %v797
    %844 = vmatprep.subr.mxu0 0.0
    %845 = vmatpush1.msra.mxu0 %v798
    %846 = vmatprep.subr.mxu0 0.0
    %847 = vmatpush1.msra.mxu0 %v799
    %848 = vmatprep.subr.mxu0 0.0
    %849 = vmatpush1.msra.mxu0 %v800
    %850 = vmatprep.subr.mxu0 0.0
    %851 = vmatpush1.msra.mxu0 %v801
    %852 = vmatprep.subr.mxu0 0.0
    %853 = vmatpush1.msra.mxu0 %v802
    %854 = vmatprep.subr.mxu0 0.0
    %855 = vmatpush1.msra.mxu0 %v803
    %856 = vmatprep.subr.mxu0 0.0
    %857 = vmatpush1.msra.mxu0 %v804
    %858 = vmatprep.subr.mxu0 0.0
    %859 = vmatpush1.msra.mxu0 %v805
    %860 = vmatprep.subr.mxu0 0.0
    %861 = vmatpush1.msra.mxu0 %v806
    %862 = vmatprep.subr.mxu0 0.0
    %863 = vmatpush1.msra.mxu0 %v807
    %864 = vmatprep.subr.mxu0 0.0
    %865 = vmatpush1.msra.mxu0 %v808
    %866 = vmatprep.subr.mxu0 0.0
    %867 = vmatpush1.msra.mxu0 %v809
    %868 = vmatprep.subr.mxu0 0.0
    %869 = vmatpush1.msra.mxu0 %v810
    %870 = vmatprep.subr.mxu0 0.0
    %871 = vmatpush1.msra.mxu0 %v811
    %872 = vmatprep.subr.mxu0 0.0
    %873 = vmatpush1.msra.mxu0 %v812
    %874 = vmatprep.subr.mxu0 0.0
    %875 = vmatpush1.msra.mxu0 %v813
    %876 = vmatprep.subr.mxu0 0.0
    %877 = vmatpush1.msra.mxu0 %v814
    %878 = vmatprep.subr.mxu0 0.0
    %879 = vmatpush1.msra.mxu0 %v815
    %880 = vmatprep.subr.mxu0 0.0
    %881 = vmatpush1.msra.mxu0 %v816
    %882 = vmatprep.subr.mxu0 0.0
    %883 = vmatpush1.msra.mxu0 %v817
    %884 = vmatprep.subr.mxu0 0.0
    %885 = vmatpush1.msra.mxu0 %v818
    %886 = vmatprep.subr.mxu0 0.0
    %887 = vmatpush1.msra.mxu0 %v819
    %888 = vmatprep.subr.mxu0 0.0
    %889 = vmatpush1.msra.mxu0 %v820
    %890 = vmatprep.subr.mxu0 0.0
    %891 = vmatpush1.msra.mxu0 %v821
    %892 = vmatprep.subr.mxu0 0.0
    %893 = vmatpush1.msra.mxu0 %v822
    %894 = vmatprep.mubr.f32.mxu0 %v788
    %895 = vmatmul.mubr.f32.gmra.mrb[0].mxu0 %v787
    %v896 = vpop.f32.mrb[0].mxu0
    %v897 = vadd.f32 %v828, %v896
    %v898 = vpop.f32.mrb[0].mxu0
    %899 = vdwg.mxu0
    %v900 = vrot.slane %v897, 4
    %v901 = vadd.f32 %v897, %v900
    %v902 = vrot.slane %v901, 2
    %v903 = vadd.f32 %v901, %v902
    %v904 = vrot.slane %v903, 1
    %v905 = vadd.f32 %v903, %v904
    %v906 = vmul.f32 %v905, %v682
    %v907 = vsub.f32 %v897, %v906
    %v908 = vmul.f32 %v907, %v907
    %v909 = vrot.slane %v908, 4
    %v910 = vadd.f32 %v908, %v909
    %v911 = vrot.slane %v910, 2
    %v912 = vadd.f32 %v910, %v911
    %v913 = vrot.slane %v912, 1
    %v914 = vadd.f32 %v912, %v913
    %v915 = vmul.f32 %v914, %v682
    %v916 = vld [vmem:[#allocation5] sm:$0x1]
    %v918 = vlaneseq
    %v919 = vshrl.u32 %v918, 7
    %v920 = vsub.s32 0, %v919
    %v921 = vrot.slane %v916, %v920
    %v923 = vmul.f32 %v921, %v907
    %v924 = vadd.f32 %v915, 1e-05
    %v925 = vrsqrt.pop %v924
    %v926 = vmul.f32 %v923, %v925
    %v927 = vld [vmem:[#allocation7] sm:$0x1]
    %v929 = vlaneseq
    %v930 = vshrl.u32 %v929, 7
    %v931 = vsub.s32 0, %v930
    %v932 = vrot.slane %v927, %v931
    %v934 = vadd.f32 %v926, %v932
    %v935 = vmax.f32 %v934, 0.0
    %v936 = vld [vmem:[%s21] sm:$0xff]
    %v937 = vld [vmem:[%s21 + $0x8] sm:$0xff]
    %v938 = vld [vmem:[%s21 + $0x10] sm:$0xff]
    %v939 = vld [vmem:[%s21 + $0x18] sm:$0xff]
    %v940 = vld [vmem:[%s21 + $0x20] sm:$0xff]
    %v941 = vld [vmem:[%s21 + $0x28] sm:$0xff]
    %v942 = vld [vmem:[%s21 + $0x30] sm:$0xff]
    %v943 = vld [vmem:[%s21 + $0x38] sm:$0xff]
    %v944 = vld [vmem:[%s21 + $0x40] sm:$0xff]
    %v945 = vld [vmem:[%s21 + $0x48] sm:$0xff]
    %v946 = vld [vmem:[%s21 + $0x50] sm:$0xff]
    %v947 = vld [vmem:[%s21 + $0x58] sm:$0xff]
    %v948 = vld [vmem:[%s21 + $0x60] sm:$0xff]
    %v949 = vld [vmem:[%s21 + $0x68] sm:$0xff]
    %v950 = vld [vmem:[%s21 + $0x70] sm:$0xff]
    %v951 = vld [vmem:[%s21 + $0x78] sm:$0xff]
    %v952 = vld [vmem:[#allocation8] sm:$0x1]
    %v954 = vlaneseq
    %v955 = vshrl.u32 %v954, 7
    %v956 = vsub.s32 0, %v955
    %v957 = vrot.slane %v952, %v956
    %959 = vmatprep.subr.mxu0 0.0
    %960 = vmatpush1.msra.mxu0 %v936
    %961 = vmatprep.subr.mxu0 0.0
    %962 = vmatpush1.msra.mxu0 %v937
    %963 = vmatprep.subr.mxu0 0.0
    %964 = vmatpush1.msra.mxu0 %v938
    %965 = vmatprep.subr.mxu0 0.0
    %966 = vmatpush1.msra.mxu0 %v939
    %967 = vmatprep.subr.mxu0 0.0
    %968 = vmatpush1.msra.mxu0 %v940
    %969 = vmatprep.subr.mxu0 0.0
    %970 = vmatpush1.msra.mxu0 %v941
    %971 = vmatprep.subr.mxu0 0.0
    %972 = vmatpush1.msra.mxu0 %v942
    %973 = vmatprep.subr.mxu0 0.0
    %974 = vmatpush1.msra.mxu0 %v943
    %975 = vmatprep.subr.mxu0 0.0
    %976 = vmatpush1.msra.mxu0 %v944
    %977 = vmatprep.subr.mxu0 0.0
    %978 = vmatpush1.msra.mxu0 %v945
    %979 = vmatprep.subr.mxu0 0.0
    %980 = vmatpush1.msra.mxu0 %v946
    %981 = vmatprep.subr.mxu0 0.0
    %982 = vmatpush1.msra.mxu0 %v947
    %983 = vmatprep.subr.mxu0 0.0
    %984 = vmatpush1.msra.mxu0 %v948
    %985 = vmatprep.subr.mxu0 0.0
    %986 = vmatpush1.msra.mxu0 %v949
    %987 = vmatprep.subr.mxu0 0.0
    %988 = vmatpush1.msra.mxu0 %v950
    %989 = vmatprep.subr.mxu0 0.0
    %990 = vmatpush1.msra.mxu0 %v951
    %991 = vmatprep.subr.mxu0 0.0
    %992 = vmatpush1.msra.mxu0 0.0
    %993 = vmatprep.subr.mxu0 0.0
    %994 = vmatpush1.msra.mxu0 0.0
    %995 = vmatprep.subr.mxu0 0.0
    %996 = vmatpush1.msra.mxu0 0.0
    %997 = vmatprep.subr.mxu0 0.0
    %998 = vmatpush1.msra.mxu0 0.0
    %999 = vmatprep.subr.mxu0 0.0
    %1000 = vmatpush1.msra.mxu0 0.0
    %1001 = vmatprep.subr.mxu0 0.0
    %1002 = vmatpush1.msra.mxu0 0.0
    %1003 = vmatprep.subr.mxu0 0.0
    %1004 = vmatpush1.msra.mxu0 0.0
    %1005 = vmatprep.subr.mxu0 0.0
    %1006 = vmatpush1.msra.mxu0 0.0
    %1007 = vmatprep.subr.mxu0 0.0
    %1008 = vmatpush1.msra.mxu0 0.0
    %1009 = vmatprep.subr.mxu0 0.0
    %1010 = vmatpush1.msra.mxu0 0.0
    %1011 = vmatprep.subr.mxu0 0.0
    %1012 = vmatpush1.msra.mxu0 0.0
    %1013 = vmatprep.subr.mxu0 0.0
    %1014 = vmatpush1.msra.mxu0 0.0
    %1015 = vmatprep.subr.mxu0 0.0
    %1016 = vmatpush1.msra.mxu0 0.0
    %1017 = vmatprep.subr.mxu0 0.0
    %1018 = vmatpush1.msra.mxu0 0.0
    %1019 = vmatprep.subr.mxu0 0.0
    %1020 = vmatpush1.msra.mxu0 0.0
    %1021 = vmatprep.subr.mxu0 0.0
    %1022 = vmatpush1.msra.mxu0 0.0
    %1023 = vmatprep.mubr.f32.mxu0 0.0
    %1024 = vmatmul.mubr.f32.gmra.mrb[0].mxu0 %v935
    %v1025 = vpop.f32.mrb[0].mxu0
    %v1026 = vadd.f32 %v957, %v1025
    %v1027 = vpop.f32.mrb[0].mxu0
    %1028 = vdwg.mxu0
    %vm1029 = vcmask 261120
    %v1030 = vsel %vm1029, %v1026, 0.0
    %v1031 = vrot.slane %v1030, 4
    %v1032 = vadd.f32 %v1030, %v1031
    %v1033 = vrot.slane %v1032, 2
    %v1034 = vadd.f32 %v1032, %v1033
    %v1035 = vrot.slane %v1034, 1
    %v1036 = vadd.f32 %v1034, %v1035
    %v1037 = vmul.f32 %v1036, %v682
    %v1038 = vsub.f32 %v1026, %v1037
    %v1039 = vmul.f32 %v1038, %v1038
    %v1040 = vsel %vm1029, %v1039, 0.0
    %v1041 = vrot.slane %v1040, 4
    %v1042 = vadd.f32 %v1040, %v1041
    %v1043 = vrot.slane %v1042, 2
    %v1044 = vadd.f32 %v1042, %v1043
    %v1045 = vrot.slane %v1044, 1
    %v1046 = vadd.f32 %v1044, %v1045
    %v1047 = vmul.f32 %v1046, %v682
    %v1048 = vld [vmem:[#allocation10] sm:$0x1]
    %v1050 = vlaneseq
    %v1051 = vshrl.u32 %v1050, 7
    %v1052 = vsub.s32 0, %v1051
    %v1053 = vrot.slane %v1048, %v1052
    %v1055 = vmul.f32 %v1053, %v1038
    %v1056 = vadd.f32 %v1047, 1e-05
    %v1057 = vrsqrt.pop %v1056
    %v1058 = vmul.f32 %v1055, %v1057
    %v1059 = vld [vmem:[#allocation11] sm:$0x1]
    %v1061 = vlaneseq
    %v1062 = vshrl.u32 %v1061, 7
    %v1063 = vsub.s32 0, %v1062
    %v1064 = vrot.slane %v1059, %v1063
    %v1066 = vadd.f32 %v1058, %v1064
    %v1067 = vmax.f32 %v1066, 0.0
    %v1068 = vld [vmem:[%s29] sm:$0xff]
    %v1069 = vld [vmem:[%s29 + $0x8] sm:$0xff]
    %v1070 = vld [vmem:[%s29 + $0x10] sm:$0xff]
    %v1071 = vld [vmem:[%s29 + $0x18] sm:$0xff]
    %v1072 = vld [vmem:[%s31] sm:$0x1]
    %v1074 = vlaneseq
    %v1075 = vshrl.u32 %v1074, 7
    %v1076 = vsub.s32 0, %v1075
    %v1077 = vrot.slane %v1072, %v1076
    %v1080 = vsel %vm1029, %v1067, 0
    %1082 = vmatprep.subr.mxu0 0.0
    %1083 = vmatpush1.msra.mxu0 %v1068
    %1084 = vmatprep.subr.mxu0 0.0
    %1085 = vmatpush1.msra.mxu0 %v1069
    %1086 = vmatprep.subr.mxu0 0.0
    %1087 = vmatpush1.msra.mxu0 %v1070
    %1088 = vmatprep.subr.mxu0 0.0
    %1089 = vmatpush1.msra.mxu0 %v1071
    %1090 = vmatprep.subr.mxu0 0.0
    %1091 = vmatpush1.msra.mxu0 0.0
    %1092 = vmatprep.subr.mxu0 0.0
    %1093 = vmatpush1.msra.mxu0 0.0
    %1094 = vmatprep.subr.mxu0 0.0
    %1095 = vmatpush1.msra.mxu0 0.0
    %1096 = vmatprep.subr.mxu0 0.0
    %1097 = vmatpush1.msra.mxu0 0.0
    %1098 = vmatprep.subr.mxu0 0.0
    %1099 = vmatpush1.msra.mxu0 0.0
    %1100 = vmatprep.subr.mxu0 0.0
    %1101 = vmatpush1.msra.mxu0 0.0
    %1102 = vmatprep.subr.mxu0 0.0
    %1103 = vmatpush1.msra.mxu0 0.0
    %1104 = vmatprep.subr.mxu0 0.0
    %1105 = vmatpush1.msra.mxu0 0.0
    %1106 = vmatprep.subr.mxu0 0.0
    %1107 = vmatpush1.msra.mxu0 0.0
    %1108 = vmatprep.subr.mxu0 0.0
    %1109 = vmatpush1.msra.mxu0 0.0
    %1110 = vmatprep.subr.mxu0 0.0
    %1111 = vmatpush1.msra.mxu0 0.0
    %1112 = vmatprep.subr.mxu0 0.0
    %1113 = vmatpush1.msra.mxu0 0.0
    %1114 = vmatprep.subr.mxu0 0.0
    %1115 = vmatpush1.msra.mxu0 0.0
    %1116 = vmatprep.subr.mxu0 0.0
    %1117 = vmatpush1.msra.mxu0 0.0
    %1118 = vmatprep.subr.mxu0 0.0
    %1119 = vmatpush1.msra.mxu0 0.0
    %1120 = vmatprep.subr.mxu0 0.0
    %1121 = vmatpush1.msra.mxu0 0.0
    %1122 = vmatprep.subr.mxu0 0.0
    %1123 = vmatpush1.msra.mxu0 0.0
    %1124 = vmatprep.subr.mxu0 0.0
    %1125 = vmatpush1.msra.mxu0 0.0
    %1126 = vmatprep.subr.mxu0 0.0
    %1127 = vmatpush1.msra.mxu0 0.0
    %1128 = vmatprep.subr.mxu0 0.0
    %1129 = vmatpush1.msra.mxu0 0.0
    %1130 = vmatprep.subr.mxu0 0.0
    %1131 = vmatpush1.msra.mxu0 0.0
    %1132 = vmatprep.subr.mxu0 0.0
    %1133 = vmatpush1.msra.mxu0 0.0
    %1134 = vmatprep.subr.mxu0 0.0
    %1135 = vmatpush1.msra.mxu0 0.0
    %1136 = vmatprep.subr.mxu0 0.0
    %1137 = vmatpush1.msra.mxu0 0.0
    %1138 = vmatprep.subr.mxu0 0.0
    %1139 = vmatpush1.msra.mxu0 0.0
    %1140 = vmatprep.subr.mxu0 0.0
    %1141 = vmatpush1.msra.mxu0 0.0
    %1142 = vmatprep.subr.mxu0 0.0
    %1143 = vmatpush1.msra.mxu0 0.0
    %1144 = vmatprep.subr.mxu0 0.0
    %1145 = vmatpush1.msra.mxu0 0.0
    %1146 = vmatprep.mubr.f32.mxu0 0.0
    %1147 = vmatmul.mubr.f32.gmra.mrb[0].mxu0 %v1080
    %v1148 = vpop.f32.mrb[0].mxu0
    %v1149 = vadd.f32 %v1077, %v1148
    %v1150 = vpop.f32.mrb[0].mxu0
    %1151 = vdwg.mxu0
    %v1152 = vld [vmem:[#allocation13] sm:$0xff]
    %v1153 = vld [vmem:[#allocation13 + $0x8] sm:$0xff]
    %v1154 = vld [vmem:[#allocation13 + $0x10] sm:$0xff]
    %v1155 = vld [vmem:[#allocation13 + $0x18] sm:$0xff]
    %v1156 = vld [vmem:[#allocation13 + $0x20] sm:$0xff]
    %v1157 = vld [vmem:[#allocation13 + $0x28] sm:$0xff]
    %v1158 = vld [vmem:[#allocation13 + $0x30] sm:$0xff]
    %v1159 = vld [vmem:[#allocation13 + $0x38] sm:$0xff]
    %v1160 = vld [vmem:[#allocation13 + $0x40] sm:$0xff]
    %v1161 = vld [vmem:[#allocation13 + $0x48] sm:$0xff]
    %v1162 = vld [vmem:[#allocation13 + $0x50] sm:$0xff]
    %v1163 = vld [vmem:[#allocation13 + $0x58] sm:$0xff]
    %v1164 = vld [vmem:[#allocation13 + $0x60] sm:$0xff]
    %v1165 = vld [vmem:[#allocation13 + $0x68] sm:$0xff]
    %v1166 = vld [vmem:[#allocation13 + $0x70] sm:$0xff]
    %v1167 = vld [vmem:[#allocation13 + $0x78] sm:$0xff]
    %v1168 = vld [vmem:[#allocation13 + $0x80] sm:$0xff]
    %v1169 = vld [vmem:[#allocation13 + $0x88] sm:$0xff]
    %v1170 = vld [vmem:[#allocation13 + $0x90] sm:$0xff]
    %v1171 = vld [vmem:[#allocation13 + $0x98] sm:$0xff]
    %v1172 = vld [vmem:[#allocation13 + $0xa0] sm:$0xff]
    %v1173 = vld [vmem:[#allocation13 + $0xa8] sm:$0xff]
    %v1174 = vld [vmem:[#allocation13 + $0xb0] sm:$0xff]
    %v1175 = vld [vmem:[#allocation13 + $0xb8] sm:$0xff]
    %v1176 = vld [vmem:[#allocation13 + $0xc0] sm:$0xff]
    %v1177 = vld [vmem:[#allocation13 + $0xc8] sm:$0xff]
    %v1178 = vld [vmem:[#allocation13 + $0xd0] sm:$0xff]
    %v1179 = vld [vmem:[#allocation13 + $0xd8] sm:$0xff]
    %v1180 = vld [vmem:[#allocation13 + $0xe0] sm:$0xff]
    %v1181 = vld [vmem:[#allocation13 + $0xe8] sm:$0xff]
    %v1182 = vld [vmem:[#allocation13 + $0xf0] sm:$0xff]
    %v1183 = vld [vmem:[#allocation13 + $0xf8] sm:$0xff]
    %v1184 = vld [vmem:[#allocation14] sm:$0x1]
    %v1186 = vlaneseq
    %v1187 = vshrl.u32 %v1186, 7
    %v1188 = vsub.s32 0, %v1187
    %v1189 = vrot.slane %v1184, %v1188
    %1191 = vmatprep.subr.mxu0 0.0
    %1192 = vmatpush1.msra.mxu0 %v1152
    %1193 = vmatprep.subr.mxu0 0.0
    %1194 = vmatpush1.msra.mxu0 %v1153
    %1195 = vmatprep.subr.mxu0 0.0
    %1196 = vmatpush1.msra.mxu0 %v1154
    %1197 = vmatprep.subr.mxu0 0.0
    %1198 = vmatpush1.msra.mxu0 %v1155
    %1199 = vmatprep.subr.mxu0 0.0
    %1200 = vmatpush1.msra.mxu0 %v1156
    %1201 = vmatprep.subr.mxu0 0.0
    %1202 = vmatpush1.msra.mxu0 %v1157
    %1203 = vmatprep.subr.mxu0 0.0
    %1204 = vmatpush1.msra.mxu0 %v1158
    %1205 = vmatprep.subr.mxu0 0.0
    %1206 = vmatpush1.msra.mxu0 %v1159
    %1207 = vmatprep.subr.mxu0 0.0
    %1208 = vmatpush1.msra.mxu0 %v1160
    %1209 = vmatprep.subr.mxu0 0.0
    %1210 = vmatpush1.msra.mxu0 %v1161
    %1211 = vmatprep.subr.mxu0 0.0
    %1212 = vmatpush1.msra.mxu0 %v1162
    %1213 = vmatprep.subr.mxu0 0.0
    %1214 = vmatpush1.msra.mxu0 %v1163
    %1215 = vmatprep.subr.mxu0 0.0
    %1216 = vmatpush1.msra.mxu0 %v1164
    %1217 = vmatprep.subr.mxu0 0.0
    %1218 = vmatpush1.msra.mxu0 %v1165
    %1219 = vmatprep.subr.mxu0 0.0
    %1220 = vmatpush1.msra.mxu0 %v1166
    %1221 = vmatprep.subr.mxu0 0.0
    %1222 = vmatpush1.msra.mxu0 %v1167
    %1223 = vmatprep.subr.mxu0 0.0
    %1224 = vmatpush1.msra.mxu0 %v1168
    %1225 = vmatprep.subr.mxu0 0.0
    %1226 = vmatpush1.msra.mxu0 %v1169
    %1227 = vmatprep.subr.mxu0 0.0
    %1228 = vmatpush1.msra.mxu0 %v1170
    %1229 = vmatprep.subr.mxu0 0.0
    %1230 = vmatpush1.msra.mxu0 %v1171
    %1231 = vmatprep.subr.mxu0 0.0
    %1232 = vmatpush1.msra.mxu0 %v1172
    %1233 = vmatprep.subr.mxu0 0.0
    %1234 = vmatpush1.msra.mxu0 %v1173
    %1235 = vmatprep.subr.mxu0 0.0
    %1236 = vmatpush1.msra.mxu0 %v1174
    %1237 = vmatprep.subr.mxu0 0.0
    %1238 = vmatpush1.msra.mxu0 %v1175
    %1239 = vmatprep.subr.mxu0 0.0
    %1240 = vmatpush1.msra.mxu0 %v1176
    %1241 = vmatprep.subr.mxu0 0.0
    %1242 = vmatpush1.msra.mxu0 %v1177
    %1243 = vmatprep.subr.mxu0 0.0
    %1244 = vmatpush1.msra.mxu0 %v1178
    %1245 = vmatprep.subr.mxu0 0.0
    %1246 = vmatpush1.msra.mxu0 %v1179
    %1247 = vmatprep.subr.mxu0 0.0
    %1248 = vmatpush1.msra.mxu0 %v1180
    %1249 = vmatprep.subr.mxu0 0.0
    %1250 = vmatpush1.msra.mxu0 %v1181
    %1251 = vmatprep.subr.mxu0 0.0
    %1252 = vmatpush1.msra.mxu0 %v1182
    %1253 = vmatprep.subr.mxu0 0.0
    %1254 = vmatpush1.msra.mxu0 %v1183
    %1255 = vmatprep.mubr.f32.mxu0 %v790
    %1256 = vmatmul.mubr.f32.gmra.mrb[0].mxu0 %v789
    %v1257 = vpop.f32.mrb[0].mxu0
    %v1258 = vadd.f32 %v1189, %v1257
    %v1259 = vpop.f32.mrb[0].mxu0
    %1260 = vdwg.mxu0
    %v1261 = vrot.slane %v1258, 4
    %v1262 = vadd.f32 %v1258, %v1261
    %v1263 = vrot.slane %v1262, 2
    %v1264 = vadd.f32 %v1262, %v1263
    %v1265 = vrot.slane %v1264, 1
    %v1266 = vadd.f32 %v1264, %v1265
    %v1267 = vmul.f32 %v1266, %v682
    %v1268 = vsub.f32 %v1258, %v1267
    %v1269 = vmul.f32 %v1268, %v1268
    %v1270 = vrot.slane %v1269, 4
    %v1271 = vadd.f32 %v1269, %v1270
    %v1272 = vrot.slane %v1271, 2
    %v1273 = vadd.f32 %v1271, %v1272
    %v1274 = vrot.slane %v1273, 1
    %v1275 = vadd.f32 %v1273, %v1274
    %v1276 = vmul.f32 %v1275, %v682
    %v1277 = vld [vmem:[#allocation16] sm:$0x1]
    %v1279 = vlaneseq
    %v1280 = vshrl.u32 %v1279, 7
    %v1281 = vsub.s32 0, %v1280
    %v1282 = vrot.slane %v1277, %v1281
    %v1284 = vmul.f32 %v1282, %v1268
    %v1285 = vadd.f32 %v1276, 1e-05
    %v1286 = vrsqrt.pop %v1285
    %v1287 = vmul.f32 %v1284, %v1286
    %v1288 = vld [vmem:[#allocation17] sm:$0x1]
    %v1290 = vlaneseq
    %v1291 = vshrl.u32 %v1290, 7
    %v1292 = vsub.s32 0, %v1291
    %v1293 = vrot.slane %v1288, %v1292
    %v1295 = vadd.f32 %v1287, %v1293
    %v1296 = vmax.f32 %v1295, 0.0
    %v1297 = vld [vmem:[%s41] sm:$0xff]
    %v1298 = vld [vmem:[%s41 + $0x8] sm:$0xff]
    %v1299 = vld [vmem:[%s41 + $0x10] sm:$0xff]
    %v1300 = vld [vmem:[%s41 + $0x18] sm:$0xff]
    %v1301 = vld [vmem:[%s41 + $0x20] sm:$0xff]
    %v1302 = vld [vmem:[%s41 + $0x28] sm:$0xff]
    %v1303 = vld [vmem:[%s41 + $0x30] sm:$0xff]
    %v1304 = vld [vmem:[%s41 + $0x38] sm:$0xff]
    %v1305 = vld [vmem:[%s41 + $0x40] sm:$0xff]
    %v1306 = vld [vmem:[%s41 + $0x48] sm:$0xff]
    %v1307 = vld [vmem:[%s41 + $0x50] sm:$0xff]
    %v1308 = vld [vmem:[%s41 + $0x58] sm:$0xff]
    %v1309 = vld [vmem:[%s41 + $0x60] sm:$0xff]
    %v1310 = vld [vmem:[%s41 + $0x68] sm:$0xff]
    %v1311 = vld [vmem:[%s41 + $0x70] sm:$0xff]
    %v1312 = vld [vmem:[%s41 + $0x78] sm:$0xff]
    %v1313 = vld [vmem:[#allocation19] sm:$0x1]
    %v1315 = vlaneseq
    %v1316 = vshrl.u32 %v1315, 7
    %v1317 = vsub.s32 0, %v1316
    %v1318 = vrot.slane %v1313, %v1317
    %1320 = vmatprep.subr.mxu0 0.0
    %1321 = vmatpush1.msra.mxu0 %v1297
    %1322 = vmatprep.subr.mxu0 0.0
    %1323 = vmatpush1.msra.mxu0 %v1298
    %1324 = vmatprep.subr.mxu0 0.0
    %1325 = vmatpush1.msra.mxu0 %v1299
    %1326 = vmatprep.subr.mxu0 0.0
    %1327 = vmatpush1.msra.mxu0 %v1300
    %1328 = vmatprep.subr.mxu0 0.0
    %1329 = vmatpush1.msra.mxu0 %v1301
    %1330 = vmatprep.subr.mxu0 0.0
    %1331 = vmatpush1.msra.mxu0 %v1302
    %1332 = vmatprep.subr.mxu0 0.0
    %1333 = vmatpush1.msra.mxu0 %v1303
    %1334 = vmatprep.subr.mxu0 0.0
    %1335 = vmatpush1.msra.mxu0 %v1304
    %1336 = vmatprep.subr.mxu0 0.0
    %1337 = vmatpush1.msra.mxu0 %v1305
    %1338 = vmatprep.subr.mxu0 0.0
    %1339 = vmatpush1.msra.mxu0 %v1306
    %1340 = vmatprep.subr.mxu0 0.0
    %1341 = vmatpush1.msra.mxu0 %v1307
    %1342 = vmatprep.subr.mxu0 0.0
    %1343 = vmatpush1.msra.mxu0 %v1308
    %1344 = vmatprep.subr.mxu0 0.0
    %1345 = vmatpush1.msra.mxu0 %v1309
    %1346 = vmatprep.subr.mxu0 0.0
    %1347 = vmatpush1.msra.mxu0 %v1310
    %1348 = vmatprep.subr.mxu0 0.0
    %1349 = vmatpush1.msra.mxu0 %v1311
    %1350 = vmatprep.subr.mxu0 0.0
    %1351 = vmatpush1.msra.mxu0 %v1312
    %1352 = vmatprep.subr.mxu0 0.0
    %1353 = vmatpush1.msra.mxu0 0.0
    %1354 = vmatprep.subr.mxu0 0.0
    %1355 = vmatpush1.msra.mxu0 0.0
    %1356 = vmatprep.subr.mxu0 0.0
    %1357 = vmatpush1.msra.mxu0 0.0
    %1358 = vmatprep.subr.mxu0 0.0
    %1359 = vmatpush1.msra.mxu0 0.0
    %1360 = vmatprep.subr.mxu0 0.0
    %1361 = vmatpush1.msra.mxu0 0.0
    %1362 = vmatprep.subr.mxu0 0.0
    %1363 = vmatpush1.msra.mxu0 0.0
    %1364 = vmatprep.subr.mxu0 0.0
    %1365 = vmatpush1.msra.mxu0 0.0
    %1366 = vmatprep.subr.mxu0 0.0
    %1367 = vmatpush1.msra.mxu0 0.0
    %1368 = vmatprep.subr.mxu0 0.0
    %1369 = vmatpush1.msra.mxu0 0.0
    %1370 = vmatprep.subr.mxu0 0.0
    %1371 = vmatpush1.msra.mxu0 0.0
    %1372 = vmatprep.subr.mxu0 0.0
    %1373 = vmatpush1.msra.mxu0 0.0
    %1374 = vmatprep.subr.mxu0 0.0
    %1375 = vmatpush1.msra.mxu0 0.0
    %1376 = vmatprep.subr.mxu0 0.0
    %1377 = vmatpush1.msra.mxu0 0.0
    %1378 = vmatprep.subr.mxu0 0.0
    %1379 = vmatpush1.msra.mxu0 0.0
    %1380 = vmatprep.subr.mxu0 0.0
    %1381 = vmatpush1.msra.mxu0 0.0
    %1382 = vmatprep.subr.mxu0 0.0
    %1383 = vmatpush1.msra.mxu0 0.0
    %1384 = vmatprep.mubr.f32.mxu0 0.0
    %1385 = vmatmul.mubr.f32.gmra.mrb[0].mxu0 %v1296
    %v1386 = vpop.f32.mrb[0].mxu0
    %v1387 = vadd.f32 %v1318, %v1386
    %v1388 = vpop.f32.mrb[0].mxu0
    %1389 = vdwg.mxu0
    %v1390 = vsel %vm1029, %v1387, 0.0
    %v1391 = vrot.slane %v1390, 4
    %v1392 = vadd.f32 %v1390, %v1391
    %v1393 = vrot.slane %v1392, 2
    %v1394 = vadd.f32 %v1392, %v1393
    %v1395 = vrot.slane %v1394, 1
    %v1396 = vadd.f32 %v1394, %v1395
    %v1397 = vmul.f32 %v1396, %v682
    %v1398 = vsub.f32 %v1387, %v1397
    %v1399 = vmul.f32 %v1398, %v1398
    %v1400 = vsel %vm1029, %v1399, 0.0
    %v1401 = vrot.slane %v1400, 4
    %v1402 = vadd.f32 %v1400, %v1401
    %v1403 = vrot.slane %v1402, 2
    %v1404 = vadd.f32 %v1402, %v1403
    %v1405 = vrot.slane %v1404, 1
    %v1406 = vadd.f32 %v1404, %v1405
    %v1407 = vmul.f32 %v1406, %v682
    %v1408 = vld [vmem:[#allocation20] sm:$0x1]
    %v1410 = vlaneseq
    %v1411 = vshrl.u32 %v1410, 7
    %v1412 = vsub.s32 0, %v1411
    %v1413 = vrot.slane %v1408, %v1412
    %v1415 = vmul.f32 %v1413, %v1398
    %v1416 = vadd.f32 %v1407, 1e-05
    %v1417 = vrsqrt.pop %v1416
    %v1418 = vmul.f32 %v1415, %v1417
    %v1419 = vld [vmem:[#allocation22] sm:$0x1]
    %v1421 = vlaneseq
    %v1422 = vshrl.u32 %v1421, 7
    %v1423 = vsub.s32 0, %v1422
    %v1424 = vrot.slane %v1419, %v1423
    %v1426 = vadd.f32 %v1418, %v1424
    %v1427 = vmax.f32 %v1426, 0.0
    %v1428 = vld [vmem:[%s49] sm:$0xff]
    %v1429 = vld [vmem:[%s49 + $0x8] sm:$0xff]
    %v1430 = vld [vmem:[%s49 + $0x10] sm:$0xff]
    %v1431 = vld [vmem:[%s49 + $0x18] sm:$0xff]
    %v1432 = vld [vmem:[#allocation23] sm:$0x1]
    %v1434 = vlaneseq
    %v1435 = vshrl.u32 %v1434, 7
    %v1436 = vsub.s32 0, %v1435
    %v1437 = vrot.slane %v1432, %v1436
    %v1440 = vsel %vm1029, %v1427, 0
    %1442 = vmatprep.subr.mxu0 0.0
    %1443 = vmatpush1.msra.mxu0 %v1428
    %1444 = vmatprep.subr.mxu0 0.0
    %1445 = vmatpush1.msra.mxu0 %v1429
    %1446 = vmatprep.subr.mxu0 0.0
    %1447 = vmatpush1.msra.mxu0 %v1430
    %1448 = vmatprep.subr.mxu0 0.0
    %1449 = vmatpush1.msra.mxu0 %v1431
    %1450 = vmatprep.subr.mxu0 0.0
    %1451 = vmatpush1.msra.mxu0 0.0
    %1452 = vmatprep.subr.mxu0 0.0
    %1453 = vmatpush1.msra.mxu0 0.0
    %1454 = vmatprep.subr.mxu0 0.0
    %1455 = vmatpush1.msra.mxu0 0.0
    %1456 = vmatprep.subr.mxu0 0.0
    %1457 = vmatpush1.msra.mxu0 0.0
    %1458 = vmatprep.subr.mxu0 0.0
    %1459 = vmatpush1.msra.mxu0 0.0
    %1460 = vmatprep.subr.mxu0 0.0
    %1461 = vmatpush1.msra.mxu0 0.0
    %1462 = vmatprep.subr.mxu0 0.0
    %1463 = vmatpush1.msra.mxu0 0.0
    %1464 = vmatprep.subr.mxu0 0.0
    %1465 = vmatpush1.msra.mxu0 0.0
    %1466 = vmatprep.subr.mxu0 0.0
    %1467 = vmatpush1.msra.mxu0 0.0
    %1468 = vmatprep.subr.mxu0 0.0
    %1469 = vmatpush1.msra.mxu0 0.0
    %1470 = vmatprep.subr.mxu0 0.0
    %1471 = vmatpush1.msra.mxu0 0.0
    %1472 = vmatprep.subr.mxu0 0.0
    %1473 = vmatpush1.msra.mxu0 0.0
    %1474 = vmatprep.subr.mxu0 0.0
    %1475 = vmatpush1.msra.mxu0 0.0
    %1476 = vmatprep.subr.mxu0 0.0
    %1477 = vmatpush1.msra.mxu0 0.0
    %1478 = vmatprep.subr.mxu0 0.0
    %1479 = vmatpush1.msra.mxu0 0.0
    %1480 = vmatprep.subr.mxu0 0.0
    %1481 = vmatpush1.msra.mxu0 0.0
    %1482 = vmatprep.subr.mxu0 0.0
    %1483 = vmatpush1.msra.mxu0 0.0
    %1484 = vmatprep.subr.mxu0 0.0
    %1485 = vmatpush1.msra.mxu0 0.0
    %1486 = vmatprep.subr.mxu0 0.0
    %1487 = vmatpush1.msra.mxu0 0.0
    %1488 = vmatprep.subr.mxu0 0.0
    %1489 = vmatpush1.msra.mxu0 0.0
    %1490 = vmatprep.subr.mxu0 0.0
    %1491 = vmatpush1.msra.mxu0 0.0
    %1492 = vmatprep.subr.mxu0 0.0
    %1493 = vmatpush1.msra.mxu0 0.0
    %1494 = vmatprep.subr.mxu0 0.0
    %1495 = vmatpush1.msra.mxu0 0.0
    %1496 = vmatprep.subr.mxu0 0.0
    %1497 = vmatpush1.msra.mxu0 0.0
    %1498 = vmatprep.subr.mxu0 0.0
    %1499 = vmatpush1.msra.mxu0 0.0
    %1500 = vmatprep.subr.mxu0 0.0
    %1501 = vmatpush1.msra.mxu0 0.0
    %1502 = vmatprep.subr.mxu0 0.0
    %1503 = vmatpush1.msra.mxu0 0.0
    %1504 = vmatprep.subr.mxu0 0.0
    %1505 = vmatpush1.msra.mxu0 0.0
    %1506 = vmatprep.mubr.f32.mxu0 0.0
    %1507 = vmatmul.mubr.f32.gmra.mrb[0].mxu0 %v1440
    %v1508 = vpop.f32.mrb[0].mxu0
    %v1509 = vadd.f32 %v1437, %v1508
    %v1510 = vpop.f32.mrb[0].mxu0
    %1511 = vdwg.mxu0
    %v1512 = vsel %vm1029, %v1509, 0.0
    %v1513 = vrot.slane %v1512, 4
    %v1514 = vadd.f32 %v1512, %v1513
    %v1515 = vrot.slane %v1514, 2
    %v1516 = vadd.f32 %v1514, %v1515
    %v1517 = vrot.slane %v1516, 1
    %v1518 = vadd.f32 %v1516, %v1517
    %v1519 = vmul.f32 %v1518, %v682
    %v1520 = vsub.f32 %v1509, %v1519
    %v1521 = vmul.f32 %v1520, %v1520
    %v1522 = vsel %vm1029, %v1521, 0.0
    %v1523 = vrot.slane %v1522, 4
    %v1524 = vadd.f32 %v1522, %v1523
    %v1525 = vrot.slane %v1524, 2
    %v1526 = vadd.f32 %v1524, %v1525
    %v1527 = vrot.slane %v1526, 1
    %v1528 = vadd.f32 %v1526, %v1527
    %v1529 = vmul.f32 %v1528, %v682
    %v1530 = vld [vmem:[#allocation25] sm:$0x1]
    %v1532 = vlaneseq
    %v1533 = vshrl.u32 %v1532, 7
    %v1534 = vsub.s32 0, %v1533
    %v1535 = vrot.slane %v1530, %v1534
    %v1537 = vmul.f32 %v1535, %v1520
    %v1538 = vadd.f32 %v1529, 1e-05
    %v1539 = vrsqrt.pop %v1538
    %v1540 = vmul.f32 %v1537, %v1539
    %v1541 = vld [vmem:[#allocation26] sm:$0x1]
    %v1543 = vlaneseq
    %v1544 = vshrl.u32 %v1543, 7
    %v1545 = vsub.s32 0, %v1544
    %v1546 = vrot.slane %v1541, %v1545
    %v1548 = vadd.f32 %v1540, %v1546
    %v1549 = vmax.f32 %v1548, 0.0
    %v1550 = vld [vmem:[%s57] sm:$0xff]
    %v1551 = vld [vmem:[%s57 + $0x8] sm:$0xff]
    %v1552 = vld [vmem:[%s57 + $0x10] sm:$0xff]
    %v1553 = vld [vmem:[%s57 + $0x18] sm:$0xff]
    %v1554 = vld [vmem:[#allocation28] sm:$0x1]
    %v1556 = vlaneseq
    %v1557 = vshrl.u32 %v1556, 7
    %v1558 = vsub.s32 0, %v1557
    %v1559 = vrot.slane %v1554, %v1558
    %v1562 = vsel %vm1029, %v1549, 0
    %1564 = vmatprep.subr.mxu0 0.0
    %1565 = vmatpush1.msra.mxu0 %v1550
    %1566 = vmatprep.subr.mxu0 0.0
    %1567 = vmatpush1.msra.mxu0 %v1551
    %1568 = vmatprep.subr.mxu0 0.0
    %1569 = vmatpush1.msra.mxu0 %v1552
    %1570 = vmatprep.subr.mxu0 0.0
    %1571 = vmatpush1.msra.mxu0 %v1553
    %1572 = vmatprep.subr.mxu0 0.0
    %1573 = vmatpush1.msra.mxu0 0.0
    %1574 = vmatprep.subr.mxu0 0.0
    %1575 = vmatpush1.msra.mxu0 0.0
    %1576 = vmatprep.subr.mxu0 0.0
    %1577 = vmatpush1.msra.mxu0 0.0
    %1578 = vmatprep.subr.mxu0 0.0
    %1579 = vmatpush1.msra.mxu0 0.0
    %1580 = vmatprep.subr.mxu0 0.0
    %1581 = vmatpush1.msra.mxu0 0.0
    %1582 = vmatprep.subr.mxu0 0.0
    %1583 = vmatpush1.msra.mxu0 0.0
    %1584 = vmatprep.subr.mxu0 0.0
    %1585 = vmatpush1.msra.mxu0 0.0
    %1586 = vmatprep.subr.mxu0 0.0
    %1587 = vmatpush1.msra.mxu0 0.0
    %1588 = vmatprep.subr.mxu0 0.0
    %1589 = vmatpush1.msra.mxu0 0.0
    %1590 = vmatprep.subr.mxu0 0.0
    %1591 = vmatpush1.msra.mxu0 0.0
    %1592 = vmatprep.subr.mxu0 0.0
    %1593 = vmatpush1.msra.mxu0 0.0
    %1594 = vmatprep.subr.mxu0 0.0
    %1595 = vmatpush1.msra.mxu0 0.0
    %1596 = vmatprep.subr.mxu0 0.0
    %1597 = vmatpush1.msra.mxu0 0.0
    %1598 = vmatprep.subr.mxu0 0.0
    %1599 = vmatpush1.msra.mxu0 0.0
    %1600 = vmatprep.subr.mxu0 0.0
    %1601 = vmatpush1.msra.mxu0 0.0
    %1602 = vmatprep.subr.mxu0 0.0
    %1603 = vmatpush1.msra.mxu0 0.0
    %1604 = vmatprep.subr.mxu0 0.0
    %1605 = vmatpush1.msra.mxu0 0.0
    %1606 = vmatprep.subr.mxu0 0.0
    %1607 = vmatpush1.msra.mxu0 0.0
    %1608 = vmatprep.subr.mxu0 0.0
    %1609 = vmatpush1.msra.mxu0 0.0
    %1610 = vmatprep.subr.mxu0 0.0
    %1611 = vmatpush1.msra.mxu0 0.0
    %1612 = vmatprep.subr.mxu0 0.0
    %1613 = vmatpush1.msra.mxu0 0.0
    %1614 = vmatprep.subr.mxu0 0.0
    %1615 = vmatpush1.msra.mxu0 0.0
    %1616 = vmatprep.subr.mxu0 0.0
    %1617 = vmatpush1.msra.mxu0 0.0
    %1618 = vmatprep.subr.mxu0 0.0
    %1619 = vmatpush1.msra.mxu0 0.0
    %1620 = vmatprep.subr.mxu0 0.0
    %1621 = vmatpush1.msra.mxu0 0.0
    %1622 = vmatprep.subr.mxu0 0.0
    %1623 = vmatpush1.msra.mxu0 0.0
    %1624 = vmatprep.subr.mxu0 0.0
    %1625 = vmatpush1.msra.mxu0 0.0
    %1626 = vmatprep.subr.mxu0 0.0
    %1627 = vmatpush1.msra.mxu0 0.0
    %1628 = vmatprep.mubr.f32.mxu0 0.0
    %1629 = vmatmul.mubr.f32.gmra.mrb[0].mxu0 %v1562
    %v1630 = vpop.f32.mrb[0].mxu0
    %v1631 = vadd.f32 %v1559, %v1630
    %v1632 = vpop.f32.mrb[0].mxu0
    %1633 = vdwg.mxu0
    %vm1634 = vcmask 64512
    %v1635 = vsel %vm1634, %v1631, -inf
    %1636 = vmax.xlane.f32.xlu0 %v1635
    %v1637 = vpop.xlane.xlu0 %1636
    %v1638 = vsub.f32 %v1631, %v1637
    %v1639 = vmul.f32 %v1638, 1.442695
    %v1640 = vpow.pop %v1639
    %v1641 = vsel %vm1634, %v1640, 0.0
    %1642 = vadd.xlane.f32.xlu0 %v1641
    %v1643 = vpop.xlane.xlu0 %1642
    %v1644 = vrcp.pop %v1643
    %v1645 = vmul.f32 %v1640, %v1644
    %v1646 = vld [vmem:[%s3] sm:$0xff]
    %v1647 = vmul.f32 %v1149, 0.5
    %v1648 = vmul.f32 %v1647, 1.442695
    %v1649 = vpow.pop %v1648
    %1651 = vrot.lane.b32.xlu0 %v1649, 124
    %v1652 = vpop.permute.xlu0 %1651
    %v1654 = vmul.f32 %v1646, %v1652
    %v1655 = vadd.f32 %v1149, %v1654
    %v1656 = vld [vmem:[#allocation29] sm:$0xf]
    %v1657 = vld [vmem:[#allocation31] sm:$0x1]
    %v1659 = vlaneseq
    %v1660 = vshrl.u32 %v1659, 7
    %v1661 = vsub.s32 0, %v1660
    %v1662 = vrot.slane %v1657, %v1661
    %vm1664 = vcmask 31744
    %v1666 = vsel %vm1664, %v1655, 0
    %vm1668 = vcmask 1043456
    %v1670 = vsel %vm1668, %v1656, 0
    %1672 = vmatprep.subr.mxu0 0.0
    %1673 = vmatpush1.msra.mxu0 %v1670
    %1674 = vmatprep.subr.mxu0 0.0
    %1675 = vmatpush1.msra.mxu0 0.0
    %1676 = vmatprep.subr.mxu0 0.0
    %1677 = vmatpush1.msra.mxu0 0.0
    %1678 = vmatprep.subr.mxu0 0.0
    %1679 = vmatpush1.msra.mxu0 0.0
    %1680 = vmatprep.subr.mxu0 0.0
    %1681 = vmatpush1.msra.mxu0 0.0
    %1682 = vmatprep.subr.mxu0 0.0
    %1683 = vmatpush1.msra.mxu0 0.0
    %1684 = vmatprep.subr.mxu0 0.0
    %1685 = vmatpush1.msra.mxu0 0.0
    %1686 = vmatprep.subr.mxu0 0.0
    %1687 = vmatpush1.msra.mxu0 0.0
    %1688 = vmatprep.subr.mxu0 0.0
    %1689 = vmatpush1.msra.mxu0 0.0
    %1690 = vmatprep.subr.mxu0 0.0
    %1691 = vmatpush1.msra.mxu0 0.0
    %1692 = vmatprep.subr.mxu0 0.0
    %1693 = vmatpush1.msra.mxu0 0.0
    %1694 = vmatprep.subr.mxu0 0.0
    %1695 = vmatpush1.msra.mxu0 0.0
    %1696 = vmatprep.subr.mxu0 0.0
    %1697 = vmatpush1.msra.mxu0 0.0
    %1698 = vmatprep.subr.mxu0 0.0
    %1699 = vmatpush1.msra.mxu0 0.0
    %1700 = vmatprep.subr.mxu0 0.0
    %1701 = vmatpush1.msra.mxu0 0.0
    %1702 = vmatprep.subr.mxu0 0.0
    %1703 = vmatpush1.msra.mxu0 0.0
    %1704 = vmatprep.subr.mxu0 0.0
    %1705 = vmatpush1.msra.mxu0 0.0
    %1706 = vmatprep.subr.mxu0 0.0
    %1707 = vmatpush1.msra.mxu0 0.0
    %1708 = vmatprep.subr.mxu0 0.0
    %1709 = vmatpush1.msra.mxu0 0.0
    %1710 = vmatprep.subr.mxu0 0.0
    %1711 = vmatpush1.msra.mxu0 0.0
    %1712 = vmatprep.subr.mxu0 0.0
    %1713 = vmatpush1.msra.mxu0 0.0
    %1714 = vmatprep.subr.mxu0 0.0
    %1715 = vmatpush1.msra.mxu0 0.0
    %1716 = vmatprep.subr.mxu0 0.0
    %1717 = vmatpush1.msra.mxu0 0.0
    %1718 = vmatprep.subr.mxu0 0.0
    %1719 = vmatpush1.msra.mxu0 0.0
    %1720 = vmatprep.subr.mxu0 0.0
    %1721 = vmatpush1.msra.mxu0 0.0
    %1722 = vmatprep.subr.mxu0 0.0
    %1723 = vmatpush1.msra.mxu0 0.0
    %1724 = vmatprep.subr.mxu0 0.0
    %1725 = vmatpush1.msra.mxu0 0.0
    %1726 = vmatprep.subr.mxu0 0.0
    %1727 = vmatpush1.msra.mxu0 0.0
    %1728 = vmatprep.subr.mxu0 0.0
    %1729 = vmatpush1.msra.mxu0 0.0
    %1730 = vmatprep.subr.mxu0 0.0
    %1731 = vmatpush1.msra.mxu0 0.0
    %1732 = vmatprep.subr.mxu0 0.0
    %1733 = vmatpush1.msra.mxu0 0.0
    %1734 = vmatprep.subr.mxu0 0.0
    %1735 = vmatpush1.msra.mxu0 0.0
    %1736 = vmatprep.mubr.f32.mxu0 0.0
    %1737 = vmatmul.mubr.f32.gmra.mrb[0].mxu0 %v1666
    %v1738 = vpop.f32.mrb[0].mxu0
    %v1739 = vadd.f32 %v1662, %v1738
    %v1740 = vpop.f32.mrb[0].mxu0
    %1741 = vdwg.mxu0
    %v1742 = vsel %vm1029, %v1739, 0.0
    %v1743 = vrot.slane %v1742, 4
    %v1744 = vadd.f32 %v1742, %v1743
    %v1745 = vrot.slane %v1744, 2
    %v1746 = vadd.f32 %v1744, %v1745
    %v1747 = vrot.slane %v1746, 1
    %v1748 = vadd.f32 %v1746, %v1747
    %v1749 = vmul.f32 %v1748, %v682
    %v1750 = vsub.f32 %v1739, %v1749
    %v1751 = vmul.f32 %v1750, %v1750
    %v1752 = vsel %vm1029, %v1751, 0.0
    %v1753 = vrot.slane %v1752, 4
    %v1754 = vadd.f32 %v1752, %v1753
    %v1755 = vrot.slane %v1754, 2
    %v1756 = vadd.f32 %v1754, %v1755
    %v1757 = vrot.slane %v1756, 1
    %v1758 = vadd.f32 %v1756, %v1757
    %v1759 = vmul.f32 %v1758, %v682
    %v1760 = vld [vmem:[#allocation32] sm:$0x1]
    %v1762 = vlaneseq
    %v1763 = vshrl.u32 %v1762, 7
    %v1764 = vsub.s32 0, %v1763
    %v1765 = vrot.slane %v1760, %v1764
    %v1767 = vmul.f32 %v1765, %v1750
    %v1768 = vadd.f32 %v1759, 1e-05
    %v1769 = vrsqrt.pop %v1768
    %v1770 = vmul.f32 %v1767, %v1769
    %v1771 = vld [vmem:[#allocation34] sm:$0x1]
    %v1773 = vlaneseq
    %v1774 = vshrl.u32 %v1773, 7
    %v1775 = vsub.s32 0, %v1774
    %v1776 = vrot.slane %v1771, %v1775
    %v1778 = vadd.f32 %v1770, %v1776
    %v1779 = vmax.f32 %v1778, 0.0
    %v1780 = vld [vmem:[#allocation35] sm:$0xff]
    %v1781 = vld [vmem:[#allocation35 + $0x8] sm:$0xff]
    %v1782 = vld [vmem:[#allocation35 + $0x10] sm:$0xff]
    %v1783 = vld [vmem:[#allocation35 + $0x18] sm:$0xff]
    %v1784 = vld [vmem:[#allocation35 + $0x20] sm:$0xff]
    %v1785 = vld [vmem:[#allocation35 + $0x28] sm:$0xff]
    %v1786 = vld [vmem:[#allocation35 + $0x30] sm:$0xff]
    %v1787 = vld [vmem:[#allocation35 + $0x38] sm:$0xff]
    %v1788 = vld [vmem:[#allocation35 + $0x40] sm:$0xff]
    %v1789 = vld [vmem:[#allocation35 + $0x48] sm:$0xff]
    %v1790 = vld [vmem:[#allocation35 + $0x50] sm:$0xff]
    %v1791 = vld [vmem:[#allocation35 + $0x58] sm:$0xff]
    %v1792 = vld [vmem:[#allocation35 + $0x60] sm:$0xff]
    %v1793 = vld [vmem:[#allocation35 + $0x68] sm:$0xff]
    %v1794 = vld [vmem:[#allocation35 + $0x70] sm:$0xff]
    %v1795 = vld [vmem:[#allocation35 + $0x78] sm:$0xff]
    %v1796 = vld [vmem:[#allocation37] sm:$0xf]
    %v1798 = vlaneseq
    %v1799 = vshrl.u32 %v1798, 7
    %v1800 = vsub.s32 0, %v1799
    %v1801 = vrot.slane %v1796, %v1800
    %v1802 = vlaneseq
    %v1803 = vshrl.u32 %v1802, 7
    %v1804 = vsub.s32 1, %v1803
    %v1805 = vrot.slane %v1796, %v1804
    %v1806 = vlaneseq
    %v1807 = vshrl.u32 %v1806, 7
    %v1808 = vsub.s32 2, %v1807
    %v1809 = vrot.slane %v1796, %v1808
    %v1810 = vlaneseq
    %v1811 = vshrl.u32 %v1810, 7
    %v1812 = vsub.s32 3, %v1811
    %v1813 = vrot.slane %v1796, %v1812
    %v1819 = vsel %vm1029, %v1779, 0
    %1821 = vmatprep.subr.mxu0 %v1781
    %1822 = vmatpush1.msra.mxu0 %v1780
    %1823 = vmatprep.subr.mxu0 %v1785
    %1824 = vmatpush1.msra.mxu0 %v1784
    %1825 = vmatprep.subr.mxu0 %v1789
    %1826 = vmatpush1.msra.mxu0 %v1788
    %1827 = vmatprep.subr.mxu0 %v1793
    %1828 = vmatpush1.msra.mxu0 %v1792
    %1829 = vmatprep.subr.mxu0 0.0
    %1830 = vmatpush1.msra.mxu0 0.0
    %1831 = vmatprep.subr.mxu0 0.0
    %1832 = vmatpush1.msra.mxu0 0.0
    %1833 = vmatprep.subr.mxu0 0.0
    %1834 = vmatpush1.msra.mxu0 0.0
    %1835 = vmatprep.subr.mxu0 0.0
    %1836 = vmatpush1.msra.mxu0 0.0
    %1837 = vmatprep.subr.mxu0 0.0
    %1838 = vmatpush1.msra.mxu0 0.0
    %1839 = vmatprep.subr.mxu0 0.0
    %1840 = vmatpush1.msra.mxu0 0.0
    %1841 = vmatprep.subr.mxu0 0.0
    %1842 = vmatpush1.msra.mxu0 0.0
    %1843 = vmatprep.subr.mxu0 0.0
    %1844 = vmatpush1.msra.mxu0 0.0
    %1845 = vmatprep.subr.mxu0 0.0
    %1846 = vmatpush1.msra.mxu0 0.0
    %1847 = vmatprep.subr.mxu0 0.0
    %1848 = vmatpush1.msra.mxu0 0.0
    %1849 = vmatprep.subr.mxu0 0.0
    %1850 = vmatpush1.msra.mxu0 0.0
    %1851 = vmatprep.subr.mxu0 0.0
    %1852 = vmatpush1.msra.mxu0 0.0
    %1853 = vmatprep.subr.mxu0 0.0
    %1854 = vmatpush1.msra.mxu0 0.0
    %1855 = vmatprep.subr.mxu0 0.0
    %1856 = vmatpush1.msra.mxu0 0.0
    %1857 = vmatprep.subr.mxu0 0.0
    %1858 = vmatpush1.msra.mxu0 0.0
    %1859 = vmatprep.subr.mxu0 0.0
    %1860 = vmatpush1.msra.mxu0 0.0
    %1861 = vmatprep.subr.mxu0 0.0
    %1862 = vmatpush1.msra.mxu0 0.0
    %1863 = vmatprep.subr.mxu0 0.0
    %1864 = vmatpush1.msra.mxu0 0.0
    %1865 = vmatprep.subr.mxu0 0.0
    %1866 = vmatpush1.msra.mxu0 0.0
    %1867 = vmatprep.subr.mxu0 0.0
    %1868 = vmatpush1.msra.mxu0 0.0
    %1869 = vmatprep.subr.mxu0 0.0
    %1870 = vmatpush1.msra.mxu0 0.0
    %1871 = vmatprep.subr.mxu0 0.0
    %1872 = vmatpush1.msra.mxu0 0.0
    %1873 = vmatprep.subr.mxu0 0.0
    %1874 = vmatpush1.msra.mxu0 0.0
    %1875 = vmatprep.subr.mxu0 0.0
    %1876 = vmatpush1.msra.mxu0 0.0
    %1877 = vmatprep.subr.mxu0 0.0
    %1878 = vmatpush1.msra.mxu0 0.0
    %1879 = vmatprep.subr.mxu0 0.0
    %1880 = vmatpush1.msra.mxu0 0.0
    %1881 = vmatprep.subr.mxu0 0.0
    %1882 = vmatpush1.msra.mxu0 0.0
    %1883 = vmatprep.subr.mxu0 0.0
    %1884 = vmatpush1.msra.mxu0 0.0
    %1885 = vmatprep.mubr.f32.mxu0 0.0
    %1886 = vmatmul.mubr.f32.gmra.mrb[0].mxu0 %v1819
    %v1887 = vpop.f32.mrb[0].mxu0
    %v1888 = vadd.f32 %v1801, %v1887
    %v1889 = vpop.f32.mrb[0].mxu0
    %v1890 = vadd.f32 %v1805, %v1889
    %1891 = vdwg.mxu0
    %1892 = vmatprep.subr.mxu0 %v1783
    %1893 = vmatpush1.msra.mxu0 %v1782
    %1894 = vmatprep.subr.mxu0 %v1787
    %1895 = vmatpush1.msra.mxu0 %v1786
    %1896 = vmatprep.subr.mxu0 %v1791
    %1897 = vmatpush1.msra.mxu0 %v1790
    %1898 = vmatprep.subr.mxu0 %v1795
    %1899 = vmatpush1.msra.mxu0 %v1794
    %1900 = vmatprep.subr.mxu0 0.0
    %1901 = vmatpush1.msra.mxu0 0.0
    %1902 = vmatprep.subr.mxu0 0.0
    %1903 = vmatpush1.msra.mxu0 0.0
    %1904 = vmatprep.subr.mxu0 0.0
    %1905 = vmatpush1.msra.mxu0 0.0
    %1906 = vmatprep.subr.mxu0 0.0
    %1907 = vmatpush1.msra.mxu0 0.0
    %1908 = vmatprep.subr.mxu0 0.0
    %1909 = vmatpush1.msra.mxu0 0.0
    %1910 = vmatprep.subr.mxu0 0.0
    %1911 = vmatpush1.msra.mxu0 0.0
    %1912 = vmatprep.subr.mxu0 0.0
    %1913 = vmatpush1.msra.mxu0 0.0
    %1914 = vmatprep.subr.mxu0 0.0
    %1915 = vmatpush1.msra.mxu0 0.0
    %1916 = vmatprep.subr.mxu0 0.0
    %1917 = vmatpush1.msra.mxu0 0.0
    %1918 = vmatprep.subr.mxu0 0.0
    %1919 = vmatpush1.msra.mxu0 0.0
    %1920 = vmatprep.subr.mxu0 0.0
    %1921 = vmatpush1.msra.mxu0 0.0
    %1922 = vmatprep.subr.mxu0 0.0
    %1923 = vmatpush1.msra.mxu0 0.0
    %1924 = vmatprep.subr.mxu0 0.0
    %1925 = vmatpush1.msra.mxu0 0.0
    %1926 = vmatprep.subr.mxu0 0.0
    %1927 = vmatpush1.msra.mxu0 0.0
    %1928 = vmatprep.subr.mxu0 0.0
    %1929 = vmatpush1.msra.mxu0 0.0
    %1930 = vmatprep.subr.mxu0 0.0
    %1931 = vmatpush1.msra.mxu0 0.0
    %1932 = vmatprep.subr.mxu0 0.0
    %1933 = vmatpush1.msra.mxu0 0.0
    %1934 = vmatprep.subr.mxu0 0.0
    %1935 = vmatpush1.msra.mxu0 0.0
    %1936 = vmatprep.subr.mxu0 0.0
    %1937 = vmatpush1.msra.mxu0 0.0
    %1938 = vmatprep.subr.mxu0 0.0
    %1939 = vmatpush1.msra.mxu0 0.0
    %1940 = vmatprep.subr.mxu0 0.0
    %1941 = vmatpush1.msra.mxu0 0.0
    %1942 = vmatprep.subr.mxu0 0.0
    %1943 = vmatpush1.msra.mxu0 0.0
    %1944 = vmatprep.subr.mxu0 0.0
    %1945 = vmatpush1.msra.mxu0 0.0
    %1946 = vmatprep.subr.mxu0 0.0
    %1947 = vmatpush1.msra.mxu0 0.0
    %1948 = vmatprep.subr.mxu0 0.0
    %1949 = vmatpush1.msra.mxu0 0.0
    %1950 = vmatprep.subr.mxu0 0.0
    %1951 = vmatpush1.msra.mxu0 0.0
    %1952 = vmatprep.subr.mxu0 0.0
    %1953 = vmatpush1.msra.mxu0 0.0
    %1954 = vmatprep.subr.mxu0 0.0
    %1955 = vmatpush1.msra.mxu0 0.0
    %1956 = vmatprep.mubr.f32.mxu0 0.0
    %1957 = vmatmul.mubr.f32.gmra.mrb[0].mxu0 %v1819
    %v1958 = vpop.f32.mrb[0].mxu0
    %v1959 = vadd.f32 %v1809, %v1958
    %v1960 = vpop.f32.mrb[0].mxu0
    %v1961 = vadd.f32 %v1813, %v1960
    %1962 = vdwg.mxu0
    %v1963 = vrot.slane %v1888, 4
    %v1964 = vadd.f32 %v1888, %v1963
    %v1965 = vrot.slane %v1964, 2
    %v1966 = vadd.f32 %v1964, %v1965
    %v1967 = vrot.slane %v1966, 1
    %v1968 = vadd.f32 %v1966, %v1967
    %v1969 = vrot.slane %v1890, 4
    %v1970 = vadd.f32 %v1890, %v1969
    %v1971 = vrot.slane %v1970, 2
    %v1972 = vadd.f32 %v1970, %v1971
    %v1973 = vrot.slane %v1972, 1
    %v1974 = vadd.f32 %v1972, %v1973
    %v1975 = vrot.slane %v1959, 4
    %v1976 = vadd.f32 %v1959, %v1975
    %v1977 = vrot.slane %v1976, 2
    %v1978 = vadd.f32 %v1976, %v1977
    %v1979 = vrot.slane %v1978, 1
    %v1980 = vadd.f32 %v1978, %v1979
    %v1981 = vrot.slane %v1961, 4
    %v1982 = vadd.f32 %v1961, %v1981
    %v1983 = vrot.slane %v1982, 2
    %v1984 = vadd.f32 %v1982, %v1983
    %v1985 = vrot.slane %v1984, 1
    %v1986 = vadd.f32 %v1984, %v1985
    %v1987 = vmul.f32 %v1968, %v682
    %v1988 = vmul.f32 %v1974, %v682
    %v1989 = vmul.f32 %v1980, %v682
    %v1990 = vmul.f32 %v1986, %v682
    %v1991 = vsub.f32 %v1888, %v1987
    %v1992 = vsub.f32 %v1890, %v1988
    %v1993 = vsub.f32 %v1959, %v1989
    %v1994 = vsub.f32 %v1961, %v1990
    %v1995 = vmul.f32 %v1991, %v1991
    %v1996 = vmul.f32 %v1992, %v1992
    %v1997 = vmul.f32 %v1993, %v1993
    %v1998 = vmul.f32 %v1994, %v1994
    %v1999 = vrot.slane %v1995, 4
    %v2000 = vadd.f32 %v1995, %v1999
    %v2001 = vrot.slane %v2000, 2
    %v2002 = vadd.f32 %v2000, %v2001
    %v2003 = vrot.slane %v2002, 1
    %v2004 = vadd.f32 %v2002, %v2003
    %v2005 = vrot.slane %v1996, 4
    %v2006 = vadd.f32 %v1996, %v2005
    %v2007 = vrot.slane %v2006, 2
    %v2008 = vadd.f32 %v2006, %v2007
    %v2009 = vrot.slane %v2008, 1
    %v2010 = vadd.f32 %v2008, %v2009
    %v2011 = vrot.slane %v1997, 4
    %v2012 = vadd.f32 %v1997, %v2011
    %v2013 = vrot.slane %v2012, 2
    %v2014 = vadd.f32 %v2012, %v2013
    %v2015 = vrot.slane %v2014, 1
    %v2016 = vadd.f32 %v2014, %v2015
    %v2017 = vrot.slane %v1998, 4
    %v2018 = vadd.f32 %v1998, %v2017
    %v2019 = vrot.slane %v2018, 2
    %v2020 = vadd.f32 %v2018, %v2019
    %v2021 = vrot.slane %v2020, 1
    %v2022 = vadd.f32 %v2020, %v2021
    %v2023 = vmul.f32 %v2004, %v682
    %v2024 = vmul.f32 %v2010, %v682
    %v2025 = vmul.f32 %v2016, %v682
    %v2026 = vmul.f32 %v2022, %v682
    %v2027 = vld [vmem:[#allocation38] sm:$0xf]
    %v2029 = vlaneseq
    %v2030 = vshrl.u32 %v2029, 7
    %v2031 = vsub.s32 0, %v2030
    %v2032 = vrot.slane %v2027, %v2031
    %v2033 = vlaneseq
    %v2034 = vshrl.u32 %v2033, 7
    %v2035 = vsub.s32 1, %v2034
    %v2036 = vrot.slane %v2027, %v2035
    %v2037 = vlaneseq
    %v2038 = vshrl.u32 %v2037, 7
    %v2039 = vsub.s32 2, %v2038
    %v2040 = vrot.slane %v2027, %v2039
    %v2041 = vlaneseq
    %v2042 = vshrl.u32 %v2041, 7
    %v2043 = vsub.s32 3, %v2042
    %v2044 = vrot.slane %v2027, %v2043
    %v2049 = vmul.f32 %v2032, %v1991
    %v2050 = vmul.f32 %v2036, %v1992
    %v2051 = vmul.f32 %v2040, %v1993
    %v2052 = vmul.f32 %v2044, %v1994
    %v2053 = vadd.f32 %v2023, 1e-05
    %v2054 = vadd.f32 %v2024, 1e-05
    %v2055 = vadd.f32 %v2025, 1e-05
    %v2056 = vadd.f32 %v2026, 1e-05
    %v2057 = vrsqrt.pop %v2053
    %v2058 = vrsqrt.pop %v2054
    %v2059 = vrsqrt.pop %v2055
    %v2060 = vrsqrt.pop %v2056
    %v2061 = vmul.f32 %v2049, %v2057
    %v2062 = vmul.f32 %v2050, %v2058
    %v2063 = vmul.f32 %v2051, %v2059
    %v2064 = vmul.f32 %v2052, %v2060
    %v2065 = vld [vmem:[#allocation40] sm:$0xf]
    %v2067 = vlaneseq
    %v2068 = vshrl.u32 %v2067, 7
    %v2069 = vsub.s32 0, %v2068
    %v2070 = vrot.slane %v2065, %v2069
    %v2071 = vlaneseq
    %v2072 = vshrl.u32 %v2071, 7
    %v2073 = vsub.s32 1, %v2072
    %v2074 = vrot.slane %v2065, %v2073
    %v2075 = vlaneseq
    %v2076 = vshrl.u32 %v2075, 7
    %v2077 = vsub.s32 2, %v2076
    %v2078 = vrot.slane %v2065, %v2077
    %v2079 = vlaneseq
    %v2080 = vshrl.u32 %v2079, 7
    %v2081 = vsub.s32 3, %v2080
    %v2082 = vrot.slane %v2065, %v2081
    %v2087 = vadd.f32 %v2061, %v2070
    %v2088 = vadd.f32 %v2062, %v2074
    %v2089 = vadd.f32 %v2063, %v2078
    %v2090 = vadd.f32 %v2064, %v2082
    %v2091 = vmax.f32 %v2087, 0.0
    %v2092 = vmax.f32 %v2088, 0.0
    %v2093 = vmax.f32 %v2089, 0.0
    %v2094 = vmax.f32 %v2090, 0.0
    %v2095 = vld [vmem:[%s77] sm:$0xff]
    %v2096 = vld [vmem:[%s77 + $0x8] sm:$0xff]
    %v2097 = vld [vmem:[%s77 + $0x10] sm:$0xff]
    %v2098 = vld [vmem:[%s77 + $0x18] sm:$0xff]
    %v2099 = vld [vmem:[%s77 + $0x20] sm:$0xff]
    %v2100 = vld [vmem:[%s77 + $0x28] sm:$0xff]
    %v2101 = vld [vmem:[%s77 + $0x30] sm:$0xff]
    %v2102 = vld [vmem:[%s77 + $0x38] sm:$0xff]
    %v2103 = vld [vmem:[%s77 + $0x40] sm:$0xff]
    %v2104 = vld [vmem:[%s77 + $0x48] sm:$0xff]
    %v2105 = vld [vmem:[%s77 + $0x50] sm:$0xff]
    %v2106 = vld [vmem:[%s77 + $0x58] sm:$0xff]
    %v2107 = vld [vmem:[%s77 + $0x60] sm:$0xff]
    %v2108 = vld [vmem:[%s77 + $0x68] sm:$0xff]
    %v2109 = vld [vmem:[%s77 + $0x70] sm:$0xff]
    %v2110 = vld [vmem:[%s77 + $0x78] sm:$0xff]
    %v2111 = vld [vmem:[%s77 + $0x80] sm:$0xff]
    %v2112 = vld [vmem:[%s77 + $0x88] sm:$0xff]
    %v2113 = vld [vmem:[%s77 + $0x90] sm:$0xff]
    %v2114 = vld [vmem:[%s77 + $0x98] sm:$0xff]
    %v2115 = vld [vmem:[%s77 + $0xa0] sm:$0xff]
    %v2116 = vld [vmem:[%s77 + $0xa8] sm:$0xff]
    %v2117 = vld [vmem:[%s77 + $0xb0] sm:$0xff]
    %v2118 = vld [vmem:[%s77 + $0xb8] sm:$0xff]
    %v2119 = vld [vmem:[%s77 + $0xc0] sm:$0xff]
    %v2120 = vld [vmem:[%s77 + $0xc8] sm:$0xff]
    %v2121 = vld [vmem:[%s77 + $0xd0] sm:$0xff]
    %v2122 = vld [vmem:[%s77 + $0xd8] sm:$0xff]
    %v2123 = vld [vmem:[%s77 + $0xe0] sm:$0xff]
    %v2124 = vld [vmem:[%s77 + $0xe8] sm:$0xff]
    %v2125 = vld [vmem:[%s77 + $0xf0] sm:$0xff]
    %v2126 = vld [vmem:[%s77 + $0xf8] sm:$0xff]
    %v2127 = vld [vmem:[%s77 + $0x100] sm:$0xff]
    %v2128 = vld [vmem:[%s77 + $0x108] sm:$0xff]
    %v2129 = vld [vmem:[%s77 + $0x110] sm:$0xff]
    %v2130 = vld [vmem:[%s77 + $0x118] sm:$0xff]
    %v2131 = vld [vmem:[%s77 + $0x120] sm:$0xff]
    %v2132 = vld [vmem:[%s77 + $0x128] sm:$0xff]
    %v2133 = vld [vmem:[%s77 + $0x130] sm:$0xff]
    %v2134 = vld [vmem:[%s77 + $0x138] sm:$0xff]
    %v2135 = vld [vmem:[%s77 + $0x140] sm:$0xff]
    %v2136 = vld [vmem:[%s77 + $0x148] sm:$0xff]
    %v2137 = vld [vmem:[%s77 + $0x150] sm:$0xff]
    %v2138 = vld [vmem:[%s77 + $0x158] sm:$0xff]
    %v2139 = vld [vmem:[%s77 + $0x160] sm:$0xff]
    %v2140 = vld [vmem:[%s77 + $0x168] sm:$0xff]
    %v2141 = vld [vmem:[%s77 + $0x170] sm:$0xff]
    %v2142 = vld [vmem:[%s77 + $0x178] sm:$0xff]
    %v2143 = vld [vmem:[%s77 + $0x180] sm:$0xff]
    %v2144 = vld [vmem:[%s77 + $0x188] sm:$0xff]
    %v2145 = vld [vmem:[%s77 + $0x190] sm:$0xff]
    %v2146 = vld [vmem:[%s77 + $0x198] sm:$0xff]
    %v2147 = vld [vmem:[%s77 + $0x1a0] sm:$0xff]
    %v2148 = vld [vmem:[%s77 + $0x1a8] sm:$0xff]
    %v2149 = vld [vmem:[%s77 + $0x1b0] sm:$0xff]
    %v2150 = vld [vmem:[%s77 + $0x1b8] sm:$0xff]
    %v2151 = vld [vmem:[%s77 + $0x1c0] sm:$0xff]
    %v2152 = vld [vmem:[%s77 + $0x1c8] sm:$0xff]
    %v2153 = vld [vmem:[%s77 + $0x1d0] sm:$0xff]
    %v2154 = vld [vmem:[%s77 + $0x1d8] sm:$0xff]
    %v2155 = vld [vmem:[%s77 + $0x1e0] sm:$0xff]
    %v2156 = vld [vmem:[%s77 + $0x1e8] sm:$0xff]
    %v2157 = vld [vmem:[%s77 + $0x1f0] sm:$0xff]
    %v2158 = vld [vmem:[%s77 + $0x1f8] sm:$0xff]
    %v2159 = vld [vmem:[#allocation41] sm:$0x1]
    %v2161 = vlaneseq
    %v2162 = vshrl.u32 %v2161, 7
    %v2163 = vsub.s32 0, %v2162
    %v2164 = vrot.slane %v2159, %v2163
    %2166 = vmatprep.subr.mxu0 0.0
    %2167 = vmatpush1.msra.mxu0 %v2095
    %2168 = vmatprep.subr.mxu0 0.0
    %2169 = vmatpush1.msra.mxu0 %v2096
    %2170 = vmatprep.subr.mxu0 0.0
    %2171 = vmatpush1.msra.mxu0 %v2097
    %2172 = vmatprep.subr.mxu0 0.0
    %2173 = vmatpush1.msra.mxu0 %v2098
    %2174 = vmatprep.subr.mxu0 0.0
    %2175 = vmatpush1.msra.mxu0 %v2099
    %2176 = vmatprep.subr.mxu0 0.0
    %2177 = vmatpush1.msra.mxu0 %v2100
    %2178 = vmatprep.subr.mxu0 0.0
    %2179 = vmatpush1.msra.mxu0 %v2101
    %2180 = vmatprep.subr.mxu0 0.0
    %2181 = vmatpush1.msra.mxu0 %v2102
    %2182 = vmatprep.subr.mxu0 0.0
    %2183 = vmatpush1.msra.mxu0 %v2103
    %2184 = vmatprep.subr.mxu0 0.0
    %2185 = vmatpush1.msra.mxu0 %v2104
    %2186 = vmatprep.subr.mxu0 0.0
    %2187 = vmatpush1.msra.mxu0 %v2105
    %2188 = vmatprep.subr.mxu0 0.0
    %2189 = vmatpush1.msra.mxu0 %v2106
    %2190 = vmatprep.subr.mxu0 0.0
    %2191 = vmatpush1.msra.mxu0 %v2107
    %2192 = vmatprep.subr.mxu0 0.0
    %2193 = vmatpush1.msra.mxu0 %v2108
    %2194 = vmatprep.subr.mxu0 0.0
    %2195 = vmatpush1.msra.mxu0 %v2109
    %2196 = vmatprep.subr.mxu0 0.0
    %2197 = vmatpush1.msra.mxu0 %v2110
    %2198 = vmatprep.subr.mxu0 0.0
    %2199 = vmatpush1.msra.mxu0 %v2111
    %2200 = vmatprep.subr.mxu0 0.0
    %2201 = vmatpush1.msra.mxu0 %v2112
    %2202 = vmatprep.subr.mxu0 0.0
    %2203 = vmatpush1.msra.mxu0 %v2113
    %2204 = vmatprep.subr.mxu0 0.0
    %2205 = vmatpush1.msra.mxu0 %v2114
    %2206 = vmatprep.subr.mxu0 0.0
    %2207 = vmatpush1.msra.mxu0 %v2115
    %2208 = vmatprep.subr.mxu0 0.0
    %2209 = vmatpush1.msra.mxu0 %v2116
    %2210 = vmatprep.subr.mxu0 0.0
    %2211 = vmatpush1.msra.mxu0 %v2117
    %2212 = vmatprep.subr.mxu0 0.0
    %2213 = vmatpush1.msra.mxu0 %v2118
    %2214 = vmatprep.subr.mxu0 0.0
    %2215 = vmatpush1.msra.mxu0 %v2119
    %2216 = vmatprep.subr.mxu0 0.0
    %2217 = vmatpush1.msra.mxu0 %v2120
    %2218 = vmatprep.subr.mxu0 0.0
    %2219 = vmatpush1.msra.mxu0 %v2121
    %2220 = vmatprep.subr.mxu0 0.0
    %2221 = vmatpush1.msra.mxu0 %v2122
    %2222 = vmatprep.subr.mxu0 0.0
    %2223 = vmatpush1.msra.mxu0 %v2123
    %2224 = vmatprep.subr.mxu0 0.0
    %2225 = vmatpush1.msra.mxu0 %v2124
    %2226 = vmatprep.subr.mxu0 0.0
    %2227 = vmatpush1.msra.mxu0 %v2125
    %2228 = vmatprep.subr.mxu0 0.0
    %2229 = vmatpush1.msra.mxu0 %v2126
    %2230 = vmatprep.mubr.f32.mxu0 %v2092
    %2231 = vmatmul.mubr.f32.gmra.mrb[0].mxu0 %v2091
    %v2232 = vpop.f32.mrb[0].mxu0
    %v2233 = vadd.f32 %v2164, %v2232
    %v2234 = vpop.f32.mrb[0].mxu0
    %2235 = vdwg.mxu0
    %2236 = vmatprep.subr.mxu0 0.0
    %2237 = vmatpush1.msra.mxu0 %v2127
    %2238 = vmatprep.subr.mxu0 0.0
    %2239 = vmatpush1.msra.mxu0 %v2128
    %2240 = vmatprep.subr.mxu0 0.0
    %2241 = vmatpush1.msra.mxu0 %v2129
    %2242 = vmatprep.subr.mxu0 0.0
    %2243 = vmatpush1.msra.mxu0 %v2130
    %2244 = vmatprep.subr.mxu0 0.0
    %2245 = vmatpush1.msra.mxu0 %v2131
    %2246 = vmatprep.subr.mxu0 0.0
    %2247 = vmatpush1.msra.mxu0 %v2132
    %2248 = vmatprep.subr.mxu0 0.0
    %2249 = vmatpush1.msra.mxu0 %v2133
    %2250 = vmatprep.subr.mxu0 0.0
    %2251 = vmatpush1.msra.mxu0 %v2134
    %2252 = vmatprep.subr.mxu0 0.0
    %2253 = vmatpush1.msra.mxu0 %v2135
    %2254 = vmatprep.subr.mxu0 0.0
    %2255 = vmatpush1.msra.mxu0 %v2136
    %2256 = vmatprep.subr.mxu0 0.0
    %2257 = vmatpush1.msra.mxu0 %v2137
    %2258 = vmatprep.subr.mxu0 0.0
    %2259 = vmatpush1.msra.mxu0 %v2138
    %2260 = vmatprep.subr.mxu0 0.0
    %2261 = vmatpush1.msra.mxu0 %v2139
    %2262 = vmatprep.subr.mxu0 0.0
    %2263 = vmatpush1.msra.mxu0 %v2140
    %2264 = vmatprep.subr.mxu0 0.0
    %2265 = vmatpush1.msra.mxu0 %v2141
    %2266 = vmatprep.subr.mxu0 0.0
    %2267 = vmatpush1.msra.mxu0 %v2142
    %2268 = vmatprep.subr.mxu0 0.0
    %2269 = vmatpush1.msra.mxu0 %v2143
    %2270 = vmatprep.subr.mxu0 0.0
    %2271 = vmatpush1.msra.mxu0 %v2144
    %2272 = vmatprep.subr.mxu0 0.0
    %2273 = vmatpush1.msra.mxu0 %v2145
    %2274 = vmatprep.subr.mxu0 0.0
    %2275 = vmatpush1.msra.mxu0 %v2146
    %2276 = vmatprep.subr.mxu0 0.0
    %2277 = vmatpush1.msra.mxu0 %v2147
    %2278 = vmatprep.subr.mxu0 0.0
    %2279 = vmatpush1.msra.mxu0 %v2148
    %2280 = vmatprep.subr.mxu0 0.0
    %2281 = vmatpush1.msra.mxu0 %v2149
    %2282 = vmatprep.subr.mxu0 0.0
    %2283 = vmatpush1.msra.mxu0 %v2150
    %2284 = vmatprep.subr.mxu0 0.0
    %2285 = vmatpush1.msra.mxu0 %v2151
    %2286 = vmatprep.subr.mxu0 0.0
    %2287 = vmatpush1.msra.mxu0 %v2152
    %2288 = vmatprep.subr.mxu0 0.0
    %2289 = vmatpush1.msra.mxu0 %v2153
    %2290 = vmatprep.subr.mxu0 0.0
    %2291 = vmatpush1.msra.mxu0 %v2154
    %2292 = vmatprep.subr.mxu0 0.0
    %2293 = vmatpush1.msra.mxu0 %v2155
    %2294 = vmatprep.subr.mxu0 0.0
    %2295 = vmatpush1.msra.mxu0 %v2156
    %2296 = vmatprep.subr.mxu0 0.0
    %2297 = vmatpush1.msra.mxu0 %v2157
    %2298 = vmatprep.subr.mxu0 0.0
    %2299 = vmatpush1.msra.mxu0 %v2158
    %2300 = vmatprep.mubr.f32.mxu0 %v2094
    %2301 = vmatmul.mubr.f32.gmra.mrb[0].mxu0 %v2093
    %v2302 = vpop.f32.mrb[0].mxu0
    %v2303 = vadd.f32 %v2233, %v2302
    %v2304 = vpop.f32.mrb[0].mxu0
    %2305 = vdwg.mxu0
    %v2306 = vxor.u32 %v2303, 2147483648
    %v2307 = vmul.f32 %v2306, 1.442695
    %v2308 = vpow.pop %v2307
    %v2309 = vadd.f32 %v2308, 1.0
    %v2310 = vrcp.pop %v2309
    %v2311 = vmul.f32 1.0, %v2310
    %2313 = vset.pattern.permute.xlu0 0
    %2314 = vperm.xlu0 %2313, %v1645
    %v2315 = vpop.permute.xlu0 %2314
    %v2317 = vmul.f32 %v2315, %v2311
    %v2318 = vadd.f32 %v2317, 0.0
    %2319 = vset.pattern.permute.xlu0 1
    %2320 = vperm.xlu0 %2319, %v1645
    %v2321 = vpop.permute.xlu0 %2320
    %v2323 = vmul.f32 %v2321, %v2311
    %2325 = vrot.lane.b32.xlu0 %v2323, 112
    %v2326 = vpop.permute.xlu0 %2325
    %v2328 = vadd.f32 %v2318, %v2326
    %2329 = vset.pattern.permute.xlu0 2
    %2330 = vperm.xlu0 %2329, %v1645
    %v2331 = vpop.permute.xlu0 %2330
    %v2333 = vmul.f32 %v2331, %v2311
    %2335 = vrot.lane.b32.xlu0 %v2333, 96
    %v2336 = vpop.permute.xlu0 %2335
    %v2338 = vadd.f32 %v2328, %v2336
    %2339 = vset.pattern.permute.xlu0 3
    %2340 = vperm.xlu0 %2339, %v1645
    %v2341 = vpop.permute.xlu0 %2340
    %v2343 = vmul.f32 %v2341, %v2311
    %2345 = vrot.lane.b32.xlu0 %v2343, 80
    %v2346 = vpop.permute.xlu0 %2345
    %v2348 = vadd.f32 %v2338, %v2346
    %2349 = vset.pattern.permute.xlu0 4
    %2350 = vperm.xlu0 %2349, %v1645
    %v2351 = vpop.permute.xlu0 %2350
    %v2353 = vmul.f32 %v2351, %v2311
    %2355 = vrot.lane.b32.xlu0 %v2353, 64
    %v2356 = vpop.permute.xlu0 %2355
    %v2358 = vadd.f32 %v2348, %v2356
    %2359 = vset.pattern.permute.xlu0 5
    %2360 = vperm.xlu0 %2359, %v1645
    %v2361 = vpop.permute.xlu0 %2360
    %v2363 = vmul.f32 %v2361, %v2311
    %2365 = vrot.lane.b32.xlu0 %v2363, 48
    %v2366 = vpop.permute.xlu0 %2365
    %v2368 = vadd.f32 %v2358, %v2366
    %2369 = vset.pattern.permute.xlu0 6
    %2370 = vperm.xlu0 %2369, %v1645
    %v2371 = vpop.permute.xlu0 %2370
    %v2373 = vmul.f32 %v2371, %v2311
    %2375 = vrot.lane.b32.xlu0 %v2373, 32
    %v2376 = vpop.permute.xlu0 %2375
    %v2378 = vadd.f32 %v2368, %v2376
    %2379 = vset.pattern.permute.xlu0 7
    %2380 = vperm.xlu0 %2379, %v1645
    %v2381 = vpop.permute.xlu0 %2380
    %v2383 = vmul.f32 %v2381, %v2311
    %2385 = vrot.lane.b32.xlu0 %v2383, 16
    %v2386 = vpop.permute.xlu0 %2385
    %v2388 = vadd.f32 %v2378, %v2386
    %2389 = vst.msk [vmem:[#allocation43] sm:$0xff] %vm512, %v2388
    %2390 = vst.msk [vmem:[%s83] sm:$0xff] %vm1664, %v1149
    %2392 = vrot.lane.b32.xlu0 %v1149, 124
    %v2393 = vpop.permute.xlu0 %2392
    %2395 = vst.msk [vmem:[%s85] sm:$0xff] %vm1664, %v2393
    %2396 = vst.msk [vmem:[#allocation44] sm:$0xff] %vm1634, %v1645
    %2397 = vst [vmem:[%s89] sm:$0xff] %v2311
    // Predicated region
    $region266: #{test_dvd_forward.1} parent=1 // pred_check
      _
    $region267: #{test_dvd_forward.1} parent=1 // pred_check_branch
      %2399 = sbr.rel (0) target = $region269
    $region268: #{test_dvd_forward.1} parent=1 // pred_region
      %s2401 = ssub.s32 128, 128
      %2402 = vsyncadd [#allocation4], %s2401
      %s2404 = sshll.u32 [#allocation43], 4
      %s2405 = int_to_ptr.vmem [resolvable:$true] %s2404
      %2407 = dma.vmem_to_hbm [thread:$0]  %s2405, 128, %s81, [#allocation4]
    $region269: #{test_dvd_forward.1} parent=1 // pred_fallthru
      _
    // Predicated region
    $region270: #{test_dvd_forward.1} parent=1 // pred_check
      _
    $region271: #{test_dvd_forward.1} parent=1 // pred_check_branch
      %2409 = sbr.rel (0) target = $region273
    $region272: #{test_dvd_forward.1} parent=1 // pred_region
      _
    $region273: #{test_dvd_forward.1} parent=1 // pred_fallthru
      _
    // Predicated region
    $region274: #{test_dvd_forward.1} parent=1 // pred_check
      _
    $region275: #{test_dvd_forward.1} parent=1 // pred_check_branch
      %2411 = sbr.rel (0) target = $region277
    $region276: #{test_dvd_forward.1} parent=1 // pred_region
      _
    $region277: #{test_dvd_forward.1} parent=1 // pred_fallthru
      _
    // Predicated region
    $region278: #{test_dvd_forward.1} parent=1 // pred_check
      _
    $region279: #{test_dvd_forward.1} parent=1 // pred_check_branch
      %2413 = sbr.rel (0) target = $region281
    $region280: #{test_dvd_forward.1} parent=1 // pred_region
      %s2415 = ssub.s32 128, 128
      %2416 = vsyncadd [#allocation45], %s2415
      %s2418 = sshll.u32 [#allocation44], 4
      %s2419 = int_to_ptr.vmem [resolvable:$true] %s2418
      %2421 = dma.vmem_to_hbm [thread:$0]  %s2419, 128, %s87, [#allocation45]
    $region281: #{test_dvd_forward.1} parent=1 // pred_fallthru
      _
    // Predicated region
    $region282: #{test_dvd_forward.1} parent=1 // pred_check
      _
    $region283: #{test_dvd_forward.1} parent=1 // pred_check_branch
      %2423 = sbr.rel (0) target = $region285
    $region284: #{test_dvd_forward.1} parent=1 // pred_region
      _
    $region285: #{test_dvd_forward.1} parent=1 // pred_fallthru
      _
    // Predicated region
    $region286: #{test_dvd_forward.1} parent=1 // pred_check
      _
    $region287: #{test_dvd_forward.1} parent=1 // pred_check_branch
      %2425 = sbr.rel (0) target = $region289
    $region288: #{test_dvd_forward.1} parent=1 // pred_region
      %2426 = dma.done [#allocation4], 128
    $region289: #{test_dvd_forward.1} parent=1 // pred_fallthru
      _
    // Predicated region
    $region290: #{test_dvd_forward.1} parent=1 // pred_check
      _
    $region291: #{test_dvd_forward.1} parent=1 // pred_check_branch
      %2428 = sbr.rel (0) target = $region293
    $region292: #{test_dvd_forward.1} parent=1 // pred_region
      _
    $region293: #{test_dvd_forward.1} parent=1 // pred_fallthru
      _
    // Predicated region
    $region294: #{test_dvd_forward.1} parent=1 // pred_check
      _
    $region295: #{test_dvd_forward.1} parent=1 // pred_check_branch
      %2430 = sbr.rel (0) target = $region297
    $region296: #{test_dvd_forward.1} parent=1 // pred_region
      _
    $region297: #{test_dvd_forward.1} parent=1 // pred_fallthru
      _
    // Predicated region
    $region298: #{test_dvd_forward.1} parent=1 // pred_check
      _
    $region299: #{test_dvd_forward.1} parent=1 // pred_check_branch
      %2432 = sbr.rel (0) target = $region301
    $region300: #{test_dvd_forward.1} parent=1 // pred_region
      %2433 = dma.done [#allocation45], 128
    $region301: #{test_dvd_forward.1} parent=1 // pred_fallthru
      _
    // Predicated region
    $region302: #{test_dvd_forward.1} parent=1 // pred_check
      _
    $region303: #{test_dvd_forward.1} parent=1 // pred_check_branch
      %2435 = sbr.rel (0) target = $region305
    $region304: #{test_dvd_forward.1} parent=1 // pred_region
      _
    $region305: #{test_dvd_forward.1} parent=1 // pred_fallthru
      _
    %2436 = vsyncpa [#allocation3], 1
    %2437 = vsyncpa [#allocation6], 1
    %2438 = vsyncpa [#allocation9], 1
    %2439 = vsyncpa [#allocation12], 1
    %2440 = vsyncpa [#allocation15], 1
    %2441 = vsyncpa [#allocation18], 1
    %2442 = vsyncpa [#allocation21], 1
    %2443 = vsyncpa [#allocation24], 1
    %2444 = vsyncpa [#allocation27], 1
    %2445 = vsyncpa [#allocation30], 1
    %2446 = vsyncpa [#allocation33], 1
    %2447 = vsyncpa [#allocation36], 1
    %2448 = vsyncpa [#allocation39], 1
    %2449 = vsyncpa [#allocation42], 1
    %2450 = vsyncpa [#allocation4], 1
    %2451 = vsyncpa [#allocation45], 1

</llo_original>
